<compile_context>
chip_gen: v6e
topology: v6e:2x2x1
jax: 0.10.0
libtpu: 0.0.40
codegen_flags: <defaults>
</compile_context>

<pallas_src>
import jax
import jax.numpy as jnp
from jax import lax
from jax.experimental import pallas as pl
from jax.experimental.pallas import tpu as pltpu


# ----------------------------------------------------------------------------
# Pallas kernel: full LSTM recurrence + FNN head, everything VMEM-resident.
# Layout: batch on the 128-lane axis, gate/hidden axis on sublanes.
# ----------------------------------------------------------------------------
def lstm_fnn_kernel(x_ref,      # (T, Bt)   raw inputs, batch on lanes
                    whh_ref,    # (4H, H)   W_hh (g-gate rows pre-scaled by 2)
                    wb_ref,     # (4H, 2)   [w_ih | b_ih+b_hh] (g rows scaled)
                    head_ref,   # (32, max(H,16)+1) packed FNN head [W | b]
                    out_ref):   # (1, Bt)   lane-dense output row
    T, Bt = x_ref.shape
    H = whh_ref.shape[1]

    whh = whh_ref[...]          # loop-invariant matmul operand
    wih = wb_ref[:, 0:1]        # (4H, 1)
    bias = wb_ref[:, 1:2]       # (4H, 1)

    h = jnp.zeros((H, Bt), jnp.float32)
    c = jnp.zeros((H, Bt), jnp.float32)

    def step(t, h, c):
        x_t = x_ref[pl.ds(t, 1), :]                          # (1, Bt)
        # gates (4H, Bt): MXU matmul + in-kernel input projection (VPU
        # broadcast-multiply, since input_size == 1).
        gates = (jnp.dot(whh, h, preferred_element_type=jnp.float32)
                 + wih * x_t + bias)
        # Single EUP pass over all gates.  The g-gate rows were pre-scaled by
        # 2, so tanh(z_g) == 2*sigmoid(2*z_g) - 1 falls out of the same
        # sigmoid.  Gate blocks sit on 32-sublane boundaries (free slices).
        s = jax.nn.sigmoid(gates)
        i_g = s[0 * H:1 * H, :]
        f_g = s[1 * H:2 * H, :]
        g_g = 2.0 * s[2 * H:3 * H, :] - 1.0
        o_g = s[3 * H:4 * H, :]
        c_new = f_g * c + i_g * g_g
        h_new = o_g * jnp.tanh(c_new)
        return h_new, c_new

    if T <= 16:
        # Fully unrolled: lets the LLO scheduler interleave adjacent steps.
        for t in range(T):
            h, c = step(t, h, c)
    else:
        # Long traces: bound vreg live ranges with a real loop.
        def body(t, carry):
            hh, cc = carry
            return step(t, hh, cc)
        h, c = lax.fori_loop(0, T, body, (h, c))

    # FNN head, still in transposed (feature, batch) layout.
    hp = head_ref[...]
    w1 = hp[0:16, 0:H]
    b1 = hp[0:16, H:H + 1]
    w2 = hp[16:24, 0:16]
    b2 = hp[16:24, 16:17]
    w3 = hp[24:25, 0:8]
    b3 = hp[24:25, 8:9]

    z1 = jnp.maximum(
        jnp.dot(w1, h, preferred_element_type=jnp.float32) + b1, 0.0)
    z2 = jnp.maximum(
        jnp.dot(w2, z1, preferred_element_type=jnp.float32) + b2, 0.0)
    out_ref[...] = (jnp.dot(w3, z2, preferred_element_type=jnp.float32) + b3)


def lstm_voltage_forward(x, params, *, b_tile=128):
    """x: (B, input_size, T) float32 (PyTorch NCW layout).  Returns (B, 1)."""
    B, I, T = x.shape
    H = params["whh"].shape[1]            # whh: (4H, H)
    H4 = 4 * H
    # TODO(synk): only input_size == 1 (the model default) is supported; a
    # general input_size would need a per-step x_t @ W_ih^T projection.
    assert I == 1, "kernel specialized for input_size == 1"
    assert b_tile % 128 == 0

    # Glue (matches torch permute): (B, 1, T) -> time-major, batch-on-lanes
    # (T, B) raw input buffer.  Pad batch to a multiple of 128 lanes.
    x_tb = x[:, 0, :].T.astype(jnp.float32)                    # (T, B)
    B_tile = b_tile
    Bp = ((B + B_tile - 1) // B_tile) * B_tile
    if Bp != B:
        x_tb = jnp.pad(x_tb, ((0, 0), (0, Bp - B)))
    grid_b = Bp // B_tile                                      # shards TCs on v7x

    # Pre-scale the g-gate rows by 2 (single-sigmoid trick), and pack the
    # per-step vectors [w_ih | combined bias] next to W_hh.
    gscale = jnp.ones((H4, 1), jnp.float32).at[2 * H:3 * H].set(2.0)
    whh_s = params["whh"].astype(jnp.float32) * gscale                   # (4H, H)
    wb = jnp.concatenate(
        [params["wih"].astype(jnp.float32).reshape(H4, 1),
         (params["bih"] + params["bhh"]).astype(jnp.float32).reshape(H4, 1)],
        axis=1) * gscale                                                 # (4H, 2)

    # Packed FNN head: rows 0:16 = [w1 | b1], rows 16:24 = [w2 | b2],
    # row 24 = [w3 | b3].
    hc = max(H, 16) + 1
    head = jnp.zeros((32, hc), jnp.float32)
    head = head.at[0:16, 0:H].set(params["w1"].astype(jnp.float32))
    head = head.at[0:16, H].set(params["b1"].astype(jnp.float32))
    head = head.at[16:24, 0:16].set(params["w2"].astype(jnp.float32))
    head = head.at[16:24, 16].set(params["b2"].astype(jnp.float32))
    head = head.at[24, 0:8].set(params["w3"][0].astype(jnp.float32))
    head = head.at[24, 8].set(params["b3"][0].astype(jnp.float32))

    in_specs = [
        pl.BlockSpec((T, B_tile), lambda b: (0, b)),     # x, batch-tiled
        pl.BlockSpec(whh_s.shape, lambda b: (0, 0)),
        pl.BlockSpec(wb.shape, lambda b: (0, 0)),
        pl.BlockSpec(head.shape, lambda b: (0, 0)),
    ]
    # Lane-dense output: one (1, B_tile) row per grid step.
    out_specs = pl.BlockSpec((1, B_tile), lambda b: (b, 0))

    flops = int(2 * T * Bp * H4 * H + 8 * T * Bp * H
                + 2 * Bp * (16 * H + 8 * 16 + 8))
    transcendentals = int(T * Bp * 5 * H)
    bytes_accessed = int(4 * (x_tb.size + Bp + whh_s.size + wb.size + head.size))

    out = pl.pallas_call(
        lstm_fnn_kernel,
        out_shape=jax.ShapeDtypeStruct((grid_b, B_tile), jnp.float32),
        grid_spec=pltpu.PrefetchScalarGridSpec(
            num_scalar_prefetch=0,
            grid=(grid_b,),
            in_specs=in_specs,
            out_specs=out_specs,
        ),
        compiler_params=pltpu.CompilerParams(
            dimension_semantics=("parallel",)),
        cost_estimate=pl.CostEstimate(
            flops=flops,
            transcendentals=transcendentals,
            bytes_accessed=bytes_accessed),
    )(x_tb, whh_s, wb, head)

    # (grid_b, B_tile) -> (Bp,) -> drop batch padding -> (B, 1).
    return out.reshape(Bp)[:B].reshape(B, 1)


# ----------------------------------------------------------------------------
# Pure-JAX reference (correctness check only).
# ----------------------------------------------------------------------------
def reference_forward(x, params):
    B, I, T = x.shape
    H = params["whh"].shape[1]
    xs = jnp.transpose(x, (2, 0, 1)).astype(jnp.float32)  # (T, B, I)

    def step(carry, x_t):
        h, c = carry
        gates = (x_t @ params["wih"].T + h @ params["whh"].T
                 + params["bih"] + params["bhh"])
        i_g = jax.nn.sigmoid(gates[:, 0:H])
        f_g = jax.nn.sigmoid(gates[:, H:2 * H])
        g_g = jnp.tanh(gates[:, 2 * H:3 * H])
        o_g = jax.nn.sigmoid(gates[:, 3 * H:4 * H])
        c_new = f_g * c + i_g * g_g
        h_new = o_g * jnp.tanh(c_new)
        return (h_new, c_new), None

    (h_fin, _), _ = lax.scan(step, (jnp.zeros((B, H)), jnp.zeros((B, H))), xs)
    z1 = jnp.maximum(h_fin @ params["w1"].T + params["b1"], 0.0)
    z2 = jnp.maximum(z1 @ params["w2"].T + params["b2"], 0.0)
    return z2 @ params["w3"].T + params["b3"]


def init_params(key, input_size=1, hidden_size=32):
    H = hidden_size
    ks = jax.random.split(key, 10)
    s = 1.0 / jnp.sqrt(H)
    u = lambda k, shape: jax.random.uniform(k, shape, jnp.float32, -s, s)
    return {
        "wih": u(ks[0], (4 * H, input_size)),
        "whh": u(ks[1], (4 * H, H)),
        "bih": u(ks[2], (4 * H,)),
        "bhh": u(ks[3], (4 * H,)),
        "w1": u(ks[4], (16, H)),
        "b1": u(ks[5], (16,)),
        "w2": u(ks[6], (8, 16)),
        "b2": u(ks[7], (8,)),
        "w3": u(ks[8], (1, 8)),
        "b3": u(ks[9], (1,)),
    }


if __name__ == "__main__":
    key = jax.random.PRNGKey(0)
    k_x, k_p = jax.random.split(key)

    B, input_size, T, H = 2, 1, 8, 32
    x = jax.random.normal(k_x, (B, input_size, T), jnp.float32)
    params = init_params(k_p, input_size=input_size, hidden_size=H)

    out = lstm_voltage_forward(x, params)
    out = jax.block_until_ready(out)

    ref = reference_forward(x, params)
    assert out.shape == (B, 1)
    assert jnp.allclose(out, ref, atol=1e-4, rtol=1e-4), (out, ref)
    print("KERNEL_OK")
</pallas_src>

<mosaic_0001>
module attributes {stable_mosaic.version = 11 : i64} {
  func.func @lstm_fnn_kernel(%arg0: i32, %arg1: memref<8x128xf32, #tpu.memory_space<vmem>>, %arg2: memref<128x32xf32, #tpu.memory_space<vmem>>, %arg3: memref<128x2xf32, #tpu.memory_space<vmem>>, %arg4: memref<32x33xf32, #tpu.memory_space<vmem>>, %arg5: memref<1x128xf32, #tpu.memory_space<vmem>>) attributes {dimension_semantics = [#tpu.dimension_semantics<parallel>], iteration_bounds = array<i64: 1>, scalar_prefetch = 0 : i64, scratch_operands = 0 : i64, tpu.core_type = #tpu.core_type<tc>, window_params = [{transform_indices = @transform_0, window_bounds = array<i64: 8, 128>}, {pipeline_mode = #tpu.pipeline_mode<synchronous>, transform_indices = @transform_1, window_bounds = array<i64: 128, 32>}, {pipeline_mode = #tpu.pipeline_mode<synchronous>, transform_indices = @transform_2, window_bounds = array<i64: 128, 2>}, {pipeline_mode = #tpu.pipeline_mode<synchronous>, transform_indices = @transform_3, window_bounds = array<i64: 32, 33>}, {transform_indices = @transform_4, window_bounds = array<i64: 1, 128>}]} {
    %c0 = arith.constant 0 : index
    %c0_0 = arith.constant 0 : index
    %0 = vector.load %arg2[%c0, %c0_0] : memref<128x32xf32, #tpu.memory_space<vmem>>, vector<128x32xf32>
    %c0_1 = arith.constant 0 : index
    %c0_2 = arith.constant 0 : index
    %1 = vector.load %arg3[%c0_1, %c0_2] : memref<128x2xf32, #tpu.memory_space<vmem>>, vector<128x1xf32>
    %c0_3 = arith.constant 0 : index
    %c1 = arith.constant 1 : index
    %2 = vector.load %arg3[%c0_3, %c1] : memref<128x2xf32, #tpu.memory_space<vmem>>, vector<128x1xf32>
    %cst = arith.constant 0.000000e+00 : f32
    %3 = vector.broadcast %cst : f32 to vector<32x128xf32>
    %cst_4 = arith.constant 0.000000e+00 : f32
    %4 = vector.broadcast %cst_4 : f32 to vector<32x128xf32>
    %c0_5 = arith.constant 0 : index
    %c0_6 = arith.constant 0 : index
    %5 = vector.load %arg1[%c0_5, %c0_6] : memref<8x128xf32, #tpu.memory_space<vmem>>, vector<1x128xf32>
    %cst_7 = arith.constant dense<0.000000e+00> : vector<128x128xf32>
    %6 = tpu.matmul %0, %3, %cst_7 {dimension_numbers = #tpu.dot_dimension_numbers<[1], [0], [0], [1], [0, 0, 1, 1], [], []>} : vector<128x32xf32>, vector<32x128xf32>, vector<128x128xf32> -> vector<128x128xf32>
    %7 = vector.broadcast %1 : vector<128x1xf32> to vector<128x128xf32>
    %8 = vector.broadcast %5 : vector<1x128xf32> to vector<128x128xf32>
    %9 = arith.mulf %7, %8 : vector<128x128xf32>
    %10 = arith.addf %6, %9 : vector<128x128xf32>
    %11 = vector.broadcast %2 : vector<128x1xf32> to vector<128x128xf32>
    %12 = arith.addf %10, %11 : vector<128x128xf32>
    %13 = arith.negf %12 : vector<128x128xf32>
    %14 = math.exp %13 : vector<128x128xf32>
    %cst_8 = arith.constant 1.000000e+00 : f32
    %15 = vector.broadcast %cst_8 : f32 to vector<128x128xf32>
    %16 = arith.addf %15, %14 : vector<128x128xf32>
    %17 = arith.divf %15, %16 : vector<128x128xf32>
    %18 = vector.extract_strided_slice %17 {offsets = [0, 0], sizes = [32, 128], strides = [1, 1]} : vector<128x128xf32> to vector<32x128xf32>
    %19 = vector.extract_strided_slice %17 {offsets = [32, 0], sizes = [32, 128], strides = [1, 1]} : vector<128x128xf32> to vector<32x128xf32>
    %20 = vector.extract_strided_slice %17 {offsets = [64, 0], sizes = [32, 128], strides = [1, 1]} : vector<128x128xf32> to vector<32x128xf32>
    %cst_9 = arith.constant 2.000000e+00 : f32
    %21 = vector.broadcast %cst_9 : f32 to vector<32x128xf32>
    %22 = arith.mulf %21, %20 : vector<32x128xf32>
    %cst_10 = arith.constant 1.000000e+00 : f32
    %23 = vector.broadcast %cst_10 : f32 to vector<32x128xf32>
    %24 = arith.subf %22, %23 : vector<32x128xf32>
    %25 = vector.extract_strided_slice %17 {offsets = [96, 0], sizes = [32, 128], strides = [1, 1]} : vector<128x128xf32> to vector<32x128xf32>
    %26 = arith.mulf %19, %4 : vector<32x128xf32>
    %27 = arith.mulf %18, %24 : vector<32x128xf32>
    %28 = arith.addf %26, %27 : vector<32x128xf32>
    %29 = math.tanh %28 : vector<32x128xf32>
    %30 = arith.mulf %25, %29 : vector<32x128xf32>
    %c1_11 = arith.constant 1 : index
    %c0_12 = arith.constant 0 : index
    %31 = vector.load %arg1[%c1_11, %c0_12] : memref<8x128xf32, #tpu.memory_space<vmem>>, vector<1x128xf32>
    %cst_13 = arith.constant dense<0.000000e+00> : vector<128x128xf32>
    %32 = tpu.matmul %0, %30, %cst_13 {dimension_numbers = #tpu.dot_dimension_numbers<[1], [0], [0], [1], [0, 0, 1, 1], [], []>} : vector<128x32xf32>, vector<32x128xf32>, vector<128x128xf32> -> vector<128x128xf32>
    %33 = vector.broadcast %1 : vector<128x1xf32> to vector<128x128xf32>
    %34 = vector.broadcast %31 : vector<1x128xf32> to vector<128x128xf32>
    %35 = arith.mulf %33, %34 : vector<128x128xf32>
    %36 = arith.addf %32, %35 : vector<128x128xf32>
    %37 = vector.broadcast %2 : vector<128x1xf32> to vector<128x128xf32>
    %38 = arith.addf %36, %37 : vector<128x128xf32>
    %39 = arith.negf %38 : vector<128x128xf32>
    %40 = math.exp %39 : vector<128x128xf32>
    %cst_14 = arith.constant 1.000000e+00 : f32
    %41 = vector.broadcast %cst_14 : f32 to vector<128x128xf32>
    %42 = arith.addf %41, %40 : vector<128x128xf32>
    %43 = arith.divf %41, %42 : vector<128x128xf32>
    %44 = vector.extract_strided_slice %43 {offsets = [0, 0], sizes = [32, 128], strides = [1, 1]} : vector<128x128xf32> to vector<32x128xf32>
    %45 = vector.extract_strided_slice %43 {offsets = [32, 0], sizes = [32, 128], strides = [1, 1]} : vector<128x128xf32> to vector<32x128xf32>
    %46 = vector.extract_strided_slice %43 {offsets = [64, 0], sizes = [32, 128], strides = [1, 1]} : vector<128x128xf32> to vector<32x128xf32>
    %cst_15 = arith.constant 2.000000e+00 : f32
    %47 = vector.broadcast %cst_15 : f32 to vector<32x128xf32>
    %48 = arith.mulf %47, %46 : vector<32x128xf32>
    %cst_16 = arith.constant 1.000000e+00 : f32
    %49 = vector.broadcast %cst_16 : f32 to vector<32x128xf32>
    %50 = arith.subf %48, %49 : vector<32x128xf32>
    %51 = vector.extract_strided_slice %43 {offsets = [96, 0], sizes = [32, 128], strides = [1, 1]} : vector<128x128xf32> to vector<32x128xf32>
    %52 = arith.mulf %45, %28 : vector<32x128xf32>
    %53 = arith.mulf %44, %50 : vector<32x128xf32>
    %54 = arith.addf %52, %53 : vector<32x128xf32>
    %55 = math.tanh %54 : vector<32x128xf32>
    %56 = arith.mulf %51, %55 : vector<32x128xf32>
    %c2 = arith.constant 2 : index
    %c0_17 = arith.constant 0 : index
    %57 = vector.load %arg1[%c2, %c0_17] : memref<8x128xf32, #tpu.memory_space<vmem>>, vector<1x128xf32>
    %cst_18 = arith.constant dense<0.000000e+00> : vector<128x128xf32>
    %58 = tpu.matmul %0, %56, %cst_18 {dimension_numbers = #tpu.dot_dimension_numbers<[1], [0], [0], [1], [0, 0, 1, 1], [], []>} : vector<128x32xf32>, vector<32x128xf32>, vector<128x128xf32> -> vector<128x128xf32>
    %59 = vector.broadcast %1 : vector<128x1xf32> to vector<128x128xf32>
    %60 = vector.broadcast %57 : vector<1x128xf32> to vector<128x128xf32>
    %61 = arith.mulf %59, %60 : vector<128x128xf32>
    %62 = arith.addf %58, %61 : vector<128x128xf32>
    %63 = vector.broadcast %2 : vector<128x1xf32> to vector<128x128xf32>
    %64 = arith.addf %62, %63 : vector<128x128xf32>
    %65 = arith.negf %64 : vector<128x128xf32>
    %66 = math.exp %65 : vector<128x128xf32>
    %cst_19 = arith.constant 1.000000e+00 : f32
    %67 = vector.broadcast %cst_19 : f32 to vector<128x128xf32>
    %68 = arith.addf %67, %66 : vector<128x128xf32>
    %69 = arith.divf %67, %68 : vector<128x128xf32>
    %70 = vector.extract_strided_slice %69 {offsets = [0, 0], sizes = [32, 128], strides = [1, 1]} : vector<128x128xf32> to vector<32x128xf32>
    %71 = vector.extract_strided_slice %69 {offsets = [32, 0], sizes = [32, 128], strides = [1, 1]} : vector<128x128xf32> to vector<32x128xf32>
    %72 = vector.extract_strided_slice %69 {offsets = [64, 0], sizes = [32, 128], strides = [1, 1]} : vector<128x128xf32> to vector<32x128xf32>
    %cst_20 = arith.constant 2.000000e+00 : f32
    %73 = vector.broadcast %cst_20 : f32 to vector<32x128xf32>
    %74 = arith.mulf %73, %72 : vector<32x128xf32>
    %cst_21 = arith.constant 1.000000e+00 : f32
    %75 = vector.broadcast %cst_21 : f32 to vector<32x128xf32>
    %76 = arith.subf %74, %75 : vector<32x128xf32>
    %77 = vector.extract_strided_slice %69 {offsets = [96, 0], sizes = [32, 128], strides = [1, 1]} : vector<128x128xf32> to vector<32x128xf32>
    %78 = arith.mulf %71, %54 : vector<32x128xf32>
    %79 = arith.mulf %70, %76 : vector<32x128xf32>
    %80 = arith.addf %78, %79 : vector<32x128xf32>
    %81 = math.tanh %80 : vector<32x128xf32>
    %82 = arith.mulf %77, %81 : vector<32x128xf32>
    %c3 = arith.constant 3 : index
    %c0_22 = arith.constant 0 : index
    %83 = vector.load %arg1[%c3, %c0_22] : memref<8x128xf32, #tpu.memory_space<vmem>>, vector<1x128xf32>
    %cst_23 = arith.constant dense<0.000000e+00> : vector<128x128xf32>
    %84 = tpu.matmul %0, %82, %cst_23 {dimension_numbers = #tpu.dot_dimension_numbers<[1], [0], [0], [1], [0, 0, 1, 1], [], []>} : vector<128x32xf32>, vector<32x128xf32>, vector<128x128xf32> -> vector<128x128xf32>
    %85 = vector.broadcast %1 : vector<128x1xf32> to vector<128x128xf32>
    %86 = vector.broadcast %83 : vector<1x128xf32> to vector<128x128xf32>
    %87 = arith.mulf %85, %86 : vector<128x128xf32>
    %88 = arith.addf %84, %87 : vector<128x128xf32>
    %89 = vector.broadcast %2 : vector<128x1xf32> to vector<128x128xf32>
    %90 = arith.addf %88, %89 : vector<128x128xf32>
    %91 = arith.negf %90 : vector<128x128xf32>
    %92 = math.exp %91 : vector<128x128xf32>
    %cst_24 = arith.constant 1.000000e+00 : f32
    %93 = vector.broadcast %cst_24 : f32 to vector<128x128xf32>
    %94 = arith.addf %93, %92 : vector<128x128xf32>
    %95 = arith.divf %93, %94 : vector<128x128xf32>
    %96 = vector.extract_strided_slice %95 {offsets = [0, 0], sizes = [32, 128], strides = [1, 1]} : vector<128x128xf32> to vector<32x128xf32>
    %97 = vector.extract_strided_slice %95 {offsets = [32, 0], sizes = [32, 128], strides = [1, 1]} : vector<128x128xf32> to vector<32x128xf32>
    %98 = vector.extract_strided_slice %95 {offsets = [64, 0], sizes = [32, 128], strides = [1, 1]} : vector<128x128xf32> to vector<32x128xf32>
    %cst_25 = arith.constant 2.000000e+00 : f32
    %99 = vector.broadcast %cst_25 : f32 to vector<32x128xf32>
    %100 = arith.mulf %99, %98 : vector<32x128xf32>
    %cst_26 = arith.constant 1.000000e+00 : f32
    %101 = vector.broadcast %cst_26 : f32 to vector<32x128xf32>
    %102 = arith.subf %100, %101 : vector<32x128xf32>
    %103 = vector.extract_strided_slice %95 {offsets = [96, 0], sizes = [32, 128], strides = [1, 1]} : vector<128x128xf32> to vector<32x128xf32>
    %104 = arith.mulf %97, %80 : vector<32x128xf32>
    %105 = arith.mulf %96, %102 : vector<32x128xf32>
    %106 = arith.addf %104, %105 : vector<32x128xf32>
    %107 = math.tanh %106 : vector<32x128xf32>
    %108 = arith.mulf %103, %107 : vector<32x128xf32>
    %c4 = arith.constant 4 : index
    %c0_27 = arith.constant 0 : index
    %109 = vector.load %arg1[%c4, %c0_27] : memref<8x128xf32, #tpu.memory_space<vmem>>, vector<1x128xf32>
    %cst_28 = arith.constant dense<0.000000e+00> : vector<128x128xf32>
    %110 = tpu.matmul %0, %108, %cst_28 {dimension_numbers = #tpu.dot_dimension_numbers<[1], [0], [0], [1], [0, 0, 1, 1], [], []>} : vector<128x32xf32>, vector<32x128xf32>, vector<128x128xf32> -> vector<128x128xf32>
    %111 = vector.broadcast %1 : vector<128x1xf32> to vector<128x128xf32>
    %112 = vector.broadcast %109 : vector<1x128xf32> to vector<128x128xf32>
    %113 = arith.mulf %111, %112 : vector<128x128xf32>
    %114 = arith.addf %110, %113 : vector<128x128xf32>
    %115 = vector.broadcast %2 : vector<128x1xf32> to vector<128x128xf32>
    %116 = arith.addf %114, %115 : vector<128x128xf32>
    %117 = arith.negf %116 : vector<128x128xf32>
    %118 = math.exp %117 : vector<128x128xf32>
    %cst_29 = arith.constant 1.000000e+00 : f32
    %119 = vector.broadcast %cst_29 : f32 to vector<128x128xf32>
    %120 = arith.addf %119, %118 : vector<128x128xf32>
    %121 = arith.divf %119, %120 : vector<128x128xf32>
    %122 = vector.extract_strided_slice %121 {offsets = [0, 0], sizes = [32, 128], strides = [1, 1]} : vector<128x128xf32> to vector<32x128xf32>
    %123 = vector.extract_strided_slice %121 {offsets = [32, 0], sizes = [32, 128], strides = [1, 1]} : vector<128x128xf32> to vector<32x128xf32>
    %124 = vector.extract_strided_slice %121 {offsets = [64, 0], sizes = [32, 128], strides = [1, 1]} : vector<128x128xf32> to vector<32x128xf32>
    %cst_30 = arith.constant 2.000000e+00 : f32
    %125 = vector.broadcast %cst_30 : f32 to vector<32x128xf32>
    %126 = arith.mulf %125, %124 : vector<32x128xf32>
    %cst_31 = arith.constant 1.000000e+00 : f32
    %127 = vector.broadcast %cst_31 : f32 to vector<32x128xf32>
    %128 = arith.subf %126, %127 : vector<32x128xf32>
    %129 = vector.extract_strided_slice %121 {offsets = [96, 0], sizes = [32, 128], strides = [1, 1]} : vector<128x128xf32> to vector<32x128xf32>
    %130 = arith.mulf %123, %106 : vector<32x128xf32>
    %131 = arith.mulf %122, %128 : vector<32x128xf32>
    %132 = arith.addf %130, %131 : vector<32x128xf32>
    %133 = math.tanh %132 : vector<32x128xf32>
    %134 = arith.mulf %129, %133 : vector<32x128xf32>
    %c5 = arith.constant 5 : index
    %c0_32 = arith.constant 0 : index
    %135 = vector.load %arg1[%c5, %c0_32] : memref<8x128xf32, #tpu.memory_space<vmem>>, vector<1x128xf32>
    %cst_33 = arith.constant dense<0.000000e+00> : vector<128x128xf32>
    %136 = tpu.matmul %0, %134, %cst_33 {dimension_numbers = #tpu.dot_dimension_numbers<[1], [0], [0], [1], [0, 0, 1, 1], [], []>} : vector<128x32xf32>, vector<32x128xf32>, vector<128x128xf32> -> vector<128x128xf32>
    %137 = vector.broadcast %1 : vector<128x1xf32> to vector<128x128xf32>
    %138 = vector.broadcast %135 : vector<1x128xf32> to vector<128x128xf32>
    %139 = arith.mulf %137, %138 : vector<128x128xf32>
    %140 = arith.addf %136, %139 : vector<128x128xf32>
    %141 = vector.broadcast %2 : vector<128x1xf32> to vector<128x128xf32>
    %142 = arith.addf %140, %141 : vector<128x128xf32>
    %143 = arith.negf %142 : vector<128x128xf32>
    %144 = math.exp %143 : vector<128x128xf32>
    %cst_34 = arith.constant 1.000000e+00 : f32
    %145 = vector.broadcast %cst_34 : f32 to vector<128x128xf32>
    %146 = arith.addf %145, %144 : vector<128x128xf32>
    %147 = arith.divf %145, %146 : vector<128x128xf32>
    %148 = vector.extract_strided_slice %147 {offsets = [0, 0], sizes = [32, 128], strides = [1, 1]} : vector<128x128xf32> to vector<32x128xf32>
    %149 = vector.extract_strided_slice %147 {offsets = [32, 0], sizes = [32, 128], strides = [1, 1]} : vector<128x128xf32> to vector<32x128xf32>
    %150 = vector.extract_strided_slice %147 {offsets = [64, 0], sizes = [32, 128], strides = [1, 1]} : vector<128x128xf32> to vector<32x128xf32>
    %cst_35 = arith.constant 2.000000e+00 : f32
    %151 = vector.broadcast %cst_35 : f32 to vector<32x128xf32>
    %152 = arith.mulf %151, %150 : vector<32x128xf32>
    %cst_36 = arith.constant 1.000000e+00 : f32
    %153 = vector.broadcast %cst_36 : f32 to vector<32x128xf32>
    %154 = arith.subf %152, %153 : vector<32x128xf32>
    %155 = vector.extract_strided_slice %147 {offsets = [96, 0], sizes = [32, 128], strides = [1, 1]} : vector<128x128xf32> to vector<32x128xf32>
    %156 = arith.mulf %149, %132 : vector<32x128xf32>
    %157 = arith.mulf %148, %154 : vector<32x128xf32>
    %158 = arith.addf %156, %157 : vector<32x128xf32>
    %159 = math.tanh %158 : vector<32x128xf32>
    %160 = arith.mulf %155, %159 : vector<32x128xf32>
    %c6 = arith.constant 6 : index
    %c0_37 = arith.constant 0 : index
    %161 = vector.load %arg1[%c6, %c0_37] : memref<8x128xf32, #tpu.memory_space<vmem>>, vector<1x128xf32>
    %cst_38 = arith.constant dense<0.000000e+00> : vector<128x128xf32>
    %162 = tpu.matmul %0, %160, %cst_38 {dimension_numbers = #tpu.dot_dimension_numbers<[1], [0], [0], [1], [0, 0, 1, 1], [], []>} : vector<128x32xf32>, vector<32x128xf32>, vector<128x128xf32> -> vector<128x128xf32>
    %163 = vector.broadcast %1 : vector<128x1xf32> to vector<128x128xf32>
    %164 = vector.broadcast %161 : vector<1x128xf32> to vector<128x128xf32>
    %165 = arith.mulf %163, %164 : vector<128x128xf32>
    %166 = arith.addf %162, %165 : vector<128x128xf32>
    %167 = vector.broadcast %2 : vector<128x1xf32> to vector<128x128xf32>
    %168 = arith.addf %166, %167 : vector<128x128xf32>
    %169 = arith.negf %168 : vector<128x128xf32>
    %170 = math.exp %169 : vector<128x128xf32>
    %cst_39 = arith.constant 1.000000e+00 : f32
    %171 = vector.broadcast %cst_39 : f32 to vector<128x128xf32>
    %172 = arith.addf %171, %170 : vector<128x128xf32>
    %173 = arith.divf %171, %172 : vector<128x128xf32>
    %174 = vector.extract_strided_slice %173 {offsets = [0, 0], sizes = [32, 128], strides = [1, 1]} : vector<128x128xf32> to vector<32x128xf32>
    %175 = vector.extract_strided_slice %173 {offsets = [32, 0], sizes = [32, 128], strides = [1, 1]} : vector<128x128xf32> to vector<32x128xf32>
    %176 = vector.extract_strided_slice %173 {offsets = [64, 0], sizes = [32, 128], strides = [1, 1]} : vector<128x128xf32> to vector<32x128xf32>
    %cst_40 = arith.constant 2.000000e+00 : f32
    %177 = vector.broadcast %cst_40 : f32 to vector<32x128xf32>
    %178 = arith.mulf %177, %176 : vector<32x128xf32>
    %cst_41 = arith.constant 1.000000e+00 : f32
    %179 = vector.broadcast %cst_41 : f32 to vector<32x128xf32>
    %180 = arith.subf %178, %179 : vector<32x128xf32>
    %181 = vector.extract_strided_slice %173 {offsets = [96, 0], sizes = [32, 128], strides = [1, 1]} : vector<128x128xf32> to vector<32x128xf32>
    %182 = arith.mulf %175, %158 : vector<32x128xf32>
    %183 = arith.mulf %174, %180 : vector<32x128xf32>
    %184 = arith.addf %182, %183 : vector<32x128xf32>
    %185 = math.tanh %184 : vector<32x128xf32>
    %186 = arith.mulf %181, %185 : vector<32x128xf32>
    %c7 = arith.constant 7 : index
    %c0_42 = arith.constant 0 : index
    %187 = vector.load %arg1[%c7, %c0_42] : memref<8x128xf32, #tpu.memory_space<vmem>>, vector<1x128xf32>
    %cst_43 = arith.constant dense<0.000000e+00> : vector<128x128xf32>
    %188 = tpu.matmul %0, %186, %cst_43 {dimension_numbers = #tpu.dot_dimension_numbers<[1], [0], [0], [1], [0, 0, 1, 1], [], []>} : vector<128x32xf32>, vector<32x128xf32>, vector<128x128xf32> -> vector<128x128xf32>
    %189 = vector.broadcast %1 : vector<128x1xf32> to vector<128x128xf32>
    %190 = vector.broadcast %187 : vector<1x128xf32> to vector<128x128xf32>
    %191 = arith.mulf %189, %190 : vector<128x128xf32>
    %192 = arith.addf %188, %191 : vector<128x128xf32>
    %193 = vector.broadcast %2 : vector<128x1xf32> to vector<128x128xf32>
    %194 = arith.addf %192, %193 : vector<128x128xf32>
    %195 = arith.negf %194 : vector<128x128xf32>
    %196 = math.exp %195 : vector<128x128xf32>
    %cst_44 = arith.constant 1.000000e+00 : f32
    %197 = vector.broadcast %cst_44 : f32 to vector<128x128xf32>
    %198 = arith.addf %197, %196 : vector<128x128xf32>
    %199 = arith.divf %197, %198 : vector<128x128xf32>
    %200 = vector.extract_strided_slice %199 {offsets = [0, 0], sizes = [32, 128], strides = [1, 1]} : vector<128x128xf32> to vector<32x128xf32>
    %201 = vector.extract_strided_slice %199 {offsets = [32, 0], sizes = [32, 128], strides = [1, 1]} : vector<128x128xf32> to vector<32x128xf32>
    %202 = vector.extract_strided_slice %199 {offsets = [64, 0], sizes = [32, 128], strides = [1, 1]} : vector<128x128xf32> to vector<32x128xf32>
    %cst_45 = arith.constant 2.000000e+00 : f32
    %203 = vector.broadcast %cst_45 : f32 to vector<32x128xf32>
    %204 = arith.mulf %203, %202 : vector<32x128xf32>
    %cst_46 = arith.constant 1.000000e+00 : f32
    %205 = vector.broadcast %cst_46 : f32 to vector<32x128xf32>
    %206 = arith.subf %204, %205 : vector<32x128xf32>
    %207 = vector.extract_strided_slice %199 {offsets = [96, 0], sizes = [32, 128], strides = [1, 1]} : vector<128x128xf32> to vector<32x128xf32>
    %208 = arith.mulf %201, %184 : vector<32x128xf32>
    %209 = arith.mulf %200, %206 : vector<32x128xf32>
    %210 = arith.addf %208, %209 : vector<32x128xf32>
    %211 = math.tanh %210 : vector<32x128xf32>
    %212 = arith.mulf %207, %211 : vector<32x128xf32>
    %c0_47 = arith.constant 0 : index
    %c0_48 = arith.constant 0 : index
    %213 = vector.load %arg4[%c0_47, %c0_48] : memref<32x33xf32, #tpu.memory_space<vmem>>, vector<32x33xf32>
    %214 = vector.extract_strided_slice %213 {offsets = [0, 0], sizes = [16, 32], strides = [1, 1]} : vector<32x33xf32> to vector<16x32xf32>
    %215 = vector.extract_strided_slice %213 {offsets = [0, 32], sizes = [16, 1], strides = [1, 1]} : vector<32x33xf32> to vector<16x1xf32>
    %216 = vector.extract_strided_slice %213 {offsets = [16, 0], sizes = [8, 16], strides = [1, 1]} : vector<32x33xf32> to vector<8x16xf32>
    %217 = vector.extract_strided_slice %213 {offsets = [16, 16], sizes = [8, 1], strides = [1, 1]} : vector<32x33xf32> to vector<8x1xf32>
    %218 = vector.extract_strided_slice %213 {offsets = [24, 0], sizes = [1, 8], strides = [1, 1]} : vector<32x33xf32> to vector<1x8xf32>
    %219 = vector.extract_strided_slice %213 {offsets = [24, 8], sizes = [1, 1], strides = [1, 1]} : vector<32x33xf32> to vector<1x1xf32>
    %cst_49 = arith.constant dense<0.000000e+00> : vector<16x128xf32>
    %220 = tpu.matmul %214, %212, %cst_49 {dimension_numbers = #tpu.dot_dimension_numbers<[1], [0], [0], [1], [0, 0, 1, 1], [], []>} : vector<16x32xf32>, vector<32x128xf32>, vector<16x128xf32> -> vector<16x128xf32>
    %221 = vector.broadcast %215 : vector<16x1xf32> to vector<16x128xf32>
    %222 = arith.addf %220, %221 : vector<16x128xf32>
    %cst_50 = arith.constant 0.000000e+00 : f32
    %223 = vector.broadcast %cst_50 : f32 to vector<16x128xf32>
    %224 = arith.maximumf %222, %223 : vector<16x128xf32>
    %cst_51 = arith.constant dense<0.000000e+00> : vector<8x128xf32>
    %225 = tpu.matmul %216, %224, %cst_51 {dimension_numbers = #tpu.dot_dimension_numbers<[1], [0], [0], [1], [0, 0, 1, 1], [], []>} : vector<8x16xf32>, vector<16x128xf32>, vector<8x128xf32> -> vector<8x128xf32>
    %226 = vector.broadcast %217 : vector<8x1xf32> to vector<8x128xf32>
    %227 = arith.addf %225, %226 : vector<8x128xf32>
    %cst_52 = arith.constant 0.000000e+00 : f32
    %228 = vector.broadcast %cst_52 : f32 to vector<8x128xf32>
    %229 = arith.maximumf %227, %228 : vector<8x128xf32>
    %cst_53 = arith.constant dense<0.000000e+00> : vector<1x128xf32>
    %230 = tpu.matmul %218, %229, %cst_53 {dimension_numbers = #tpu.dot_dimension_numbers<[1], [0], [0], [1], [0, 0, 1, 1], [], []>} : vector<1x8xf32>, vector<8x128xf32>, vector<1x128xf32> -> vector<1x128xf32>
    %231 = vector.broadcast %219 : vector<1x1xf32> to vector<1x128xf32>
    %232 = arith.addf %230, %231 : vector<1x128xf32>
    %c0_54 = arith.constant 0 : index
    %c0_55 = arith.constant 0 : index
    %233 = vector.load %arg5[%c0_54, %c0_55] : memref<1x128xf32, #tpu.memory_space<vmem>>, vector<1x128xf32>
    tpu.vector_store %arg5[%c0_54, %c0_55], %232 {strides = array<i32>} : memref<1x128xf32, #tpu.memory_space<vmem>>, vector<1x128xf32>,
    return
  }
  func.func @transform_0(%arg0: i32) -> (i32, i32) {
    %c0_i32 = arith.constant 0 : i32
    %c0_i32_0 = arith.constant 0 : i32
    return %c0_i32, %arg0 : i32, i32
  }
  func.func @transform_1(%arg0: i32) -> (i32, i32) {
    %c0_i32 = arith.constant 0 : i32
    %c0_i32_0 = arith.constant 0 : i32
    %c0_i32_1 = arith.constant 0 : i32
    return %c0_i32, %c0_i32_0 : i32, i32
  }
  func.func @transform_2(%arg0: i32) -> (i32, i32) {
    %c0_i32 = arith.constant 0 : i32
    %c0_i32_0 = arith.constant 0 : i32
    %c0_i32_1 = arith.constant 0 : i32
    return %c0_i32, %c0_i32_0 : i32, i32
  }
  func.func @transform_3(%arg0: i32) -> (i32, i32) {
    %c0_i32 = arith.constant 0 : i32
    %c0_i32_0 = arith.constant 0 : i32
    %c0_i32_1 = arith.constant 0 : i32
    return %c0_i32, %c0_i32_0 : i32, i32
  }
  func.func @transform_4(%arg0: i32) -> (i32, i32) {
    %c0_i32 = arith.constant 0 : i32
    %c0_i32_0 = arith.constant 0 : i32
    return %arg0, %c0_i32 : i32, i32
  }
}

</mosaic_0001>

<llo_original>
// kernel: tpu_custom_call.1
$region0: #{tpu_custom_call.1}
  #allocation0 [shape = 'u32[]', space=smem, size = 0x4, offset = 0x4, fixed_abs, tag = 'smem constant byte address 0x4 - core index']
  #allocation1 [shape = 'u32[144,128]{1,0:T(1,128)}', space=vmem, size = 0x12000, scoped, tag = 'internal scratch']
  %s0 = inlined_call_operand.vmem [shape: f32[8,128], index: 0, kind: input, shape index: {}]
  %s1 = inlined_call_operand.vmem [shape: f32[128,32], index: 1, kind: input, shape index: {}]
  %s2 = inlined_call_operand.vmem [shape: f32[128,2], index: 2, kind: input, shape index: {}]
  %s3 = inlined_call_operand.vmem [shape: f32[32,33], index: 3, kind: input, shape index: {}]
  %s4 = inlined_call_operand.hbm [shape: f32[1,128], index: 4, kind: output, shape index: {}]
  %s5 = sld [smem:[#allocation0]]
  $region26: #{tpu_custom_call.1} parent=0
    _
  %s7 = ssub.s32 1, %s5
  %s8 = scalar_select 0, %s7, %s5
  $region1: #{tpu_custom_call.1} parent=0
    #allocation2 [shape = 'u8[512]{0}', space=vmem, size = 0x400, scoped, tag = 'output window, operand 0, single buffered']
    #allocation3 [shape = 's32[1]{0}', space=sflag, size = 0x4, scoped, tag = 'scoped memory for tpu_custom_call.1']
    %9 = vsyncpa [#allocation3], 0
    // Predicated region
    $region2: #{tpu_custom_call.1} parent=1 // pred_check
      _
    $region3: #{tpu_custom_call.1} parent=1 // pred_check_branch
      %11 = sbr.rel (0) target = $region5
    $region4: #{tpu_custom_call.1} parent=1 // pred_region
      _
    $region5: #{tpu_custom_call.1} parent=1 // pred_fallthru
      _
    // Predicated region
    $region6: #{tpu_custom_call.1} parent=1 // pred_check
      _
    $region7: #{tpu_custom_call.1} parent=1 // pred_check_branch
      %13 = sbr.rel (0) target = $region9
    $region8: #{tpu_custom_call.1} parent=1 // pred_region
      _
    $region9: #{tpu_custom_call.1} parent=1 // pred_fallthru
      _
    // Predicated region
    $region10: #{tpu_custom_call.1} parent=1 // pred_check
      _
    $region11: #{tpu_custom_call.1} parent=1 // pred_check_branch
      %15 = sbr.rel (0) target = $region13
    $region12: #{tpu_custom_call.1} parent=1 // pred_region
      _
    $region13: #{tpu_custom_call.1} parent=1 // pred_fallthru
      _
    // Predicated region
    $region14: #{tpu_custom_call.1} parent=1 // pred_check
      _
    $region15: #{tpu_custom_call.1} parent=1 // pred_check_branch
      %17 = sbr.rel (0) target = $region17
    $region16: #{tpu_custom_call.1} parent=1 // pred_region
      _
    $region17: #{tpu_custom_call.1} parent=1 // pred_fallthru
      _
    %v18 = vld [vmem:[%s1] sm:$0xff]
    %v19 = vld [vmem:[%s1 + $0x8] sm:$0xff]
    %v20 = vld [vmem:[%s1 + $0x10] sm:$0xff]
    %v21 = vld [vmem:[%s1 + $0x18] sm:$0xff]
    %v22 = vld [vmem:[%s1 + $0x20] sm:$0xff]
    %v23 = vld [vmem:[%s1 + $0x28] sm:$0xff]
    %v24 = vld [vmem:[%s1 + $0x30] sm:$0xff]
    %v25 = vld [vmem:[%s1 + $0x38] sm:$0xff]
    %v26 = vld [vmem:[%s1 + $0x40] sm:$0xff]
    %v27 = vld [vmem:[%s1 + $0x48] sm:$0xff]
    %v28 = vld [vmem:[%s1 + $0x50] sm:$0xff]
    %v29 = vld [vmem:[%s1 + $0x58] sm:$0xff]
    %v30 = vld [vmem:[%s1 + $0x60] sm:$0xff]
    %v31 = vld [vmem:[%s1 + $0x68] sm:$0xff]
    %v32 = vld [vmem:[%s1 + $0x70] sm:$0xff]
    %v33 = vld [vmem:[%s1 + $0x78] sm:$0xff]
    %v34 = vld [vmem:[%s2] sm:$0xff]
    %v35 = vld [vmem:[%s2 + $0x8] sm:$0xff]
    %v36 = vld [vmem:[%s2 + $0x10] sm:$0xff]
    %v37 = vld [vmem:[%s2 + $0x18] sm:$0xff]
    %v38 = vld [vmem:[%s2 + $0x20] sm:$0xff]
    %v39 = vld [vmem:[%s2 + $0x28] sm:$0xff]
    %v40 = vld [vmem:[%s2 + $0x30] sm:$0xff]
    %v41 = vld [vmem:[%s2 + $0x38] sm:$0xff]
    %v42 = vld [vmem:[%s2 + $0x40] sm:$0xff]
    %v43 = vld [vmem:[%s2 + $0x48] sm:$0xff]
    %v44 = vld [vmem:[%s2 + $0x50] sm:$0xff]
    %v45 = vld [vmem:[%s2 + $0x58] sm:$0xff]
    %v46 = vld [vmem:[%s2 + $0x60] sm:$0xff]
    %v47 = vld [vmem:[%s2 + $0x68] sm:$0xff]
    %v48 = vld [vmem:[%s2 + $0x70] sm:$0xff]
    %v49 = vld [vmem:[%s2 + $0x78] sm:$0xff]
    %v50 = vld [vmem:[%s0] sm:$0x1]
    %52 = vset.pattern.permute.xlu0 0
    %53 = vperm.xlu0 %52, %v34
    %v54 = vpop.permute.xlu0 %53
    %57 = vset.pattern.permute.xlu0 0
    %58 = vperm.xlu0 %57, %v35
    %v59 = vpop.permute.xlu0 %58
    %62 = vset.pattern.permute.xlu0 0
    %63 = vperm.xlu0 %62, %v36
    %v64 = vpop.permute.xlu0 %63
    %67 = vset.pattern.permute.xlu0 0
    %68 = vperm.xlu0 %67, %v37
    %v69 = vpop.permute.xlu0 %68
    %72 = vset.pattern.permute.xlu0 0
    %73 = vperm.xlu0 %72, %v38
    %v74 = vpop.permute.xlu0 %73
    %77 = vset.pattern.permute.xlu0 0
    %78 = vperm.xlu0 %77, %v39
    %v79 = vpop.permute.xlu0 %78
    %82 = vset.pattern.permute.xlu0 0
    %83 = vperm.xlu0 %82, %v40
    %v84 = vpop.permute.xlu0 %83
    %87 = vset.pattern.permute.xlu0 0
    %88 = vperm.xlu0 %87, %v41
    %v89 = vpop.permute.xlu0 %88
    %92 = vset.pattern.permute.xlu0 0
    %93 = vperm.xlu0 %92, %v42
    %v94 = vpop.permute.xlu0 %93
    %97 = vset.pattern.permute.xlu0 0
    %98 = vperm.xlu0 %97, %v43
    %v99 = vpop.permute.xlu0 %98
    %102 = vset.pattern.permute.xlu0 0
    %103 = vperm.xlu0 %102, %v44
    %v104 = vpop.permute.xlu0 %103
    %107 = vset.pattern.permute.xlu0 0
    %108 = vperm.xlu0 %107, %v45
    %v109 = vpop.permute.xlu0 %108
    %112 = vset.pattern.permute.xlu0 0
    %113 = vperm.xlu0 %112, %v46
    %v114 = vpop.permute.xlu0 %113
    %117 = vset.pattern.permute.xlu0 0
    %118 = vperm.xlu0 %117, %v47
    %v119 = vpop.permute.xlu0 %118
    %122 = vset.pattern.permute.xlu0 0
    %123 = vperm.xlu0 %122, %v48
    %v124 = vpop.permute.xlu0 %123
    %127 = vset.pattern.permute.xlu0 0
    %128 = vperm.xlu0 %127, %v49
    %v129 = vpop.permute.xlu0 %128
    %v131 = vlaneseq
    %v132 = vshrl.u32 %v131, 7
    %v133 = vsub.s32 0, %v132
    %v134 = vrot.slane %v50, %v133
    %v135 = vmul.f32 %v54, %v134
    %v136 = vmul.f32 %v59, %v134
    %v137 = vmul.f32 %v64, %v134
    %v138 = vmul.f32 %v69, %v134
    %v139 = vmul.f32 %v74, %v134
    %v140 = vmul.f32 %v79, %v134
    %v141 = vmul.f32 %v84, %v134
    %v142 = vmul.f32 %v89, %v134
    %v143 = vmul.f32 %v94, %v134
    %v144 = vmul.f32 %v99, %v134
    %v145 = vmul.f32 %v104, %v134
    %v146 = vmul.f32 %v109, %v134
    %v147 = vmul.f32 %v114, %v134
    %v148 = vmul.f32 %v119, %v134
    %v149 = vmul.f32 %v124, %v134
    %v150 = vmul.f32 %v129, %v134
    %vm151 = vcmask 261120
    %v153 = vsel %vm151, %v18, 0
    %v156 = vsel %vm151, %v19, 0
    %v159 = vsel %vm151, %v20, 0
    %v162 = vsel %vm151, %v21, 0
    %v165 = vsel %vm151, %v22, 0
    %v168 = vsel %vm151, %v23, 0
    %v171 = vsel %vm151, %v24, 0
    %v174 = vsel %vm151, %v25, 0
    %v177 = vsel %vm151, %v26, 0
    %v180 = vsel %vm151, %v27, 0
    %v183 = vsel %vm151, %v28, 0
    %v186 = vsel %vm151, %v29, 0
    %v189 = vsel %vm151, %v30, 0
    %v192 = vsel %vm151, %v31, 0
    %v195 = vsel %vm151, %v32, 0
    %v198 = vsel %vm151, %v33, 0
    %200 = vmatprep.subr.mxu0 0.0
    %201 = vmatpush1.msra.mxu0 0.0
    %202 = vmatprep.subr.mxu0 0.0
    %203 = vmatpush1.msra.mxu0 0.0
    %204 = vmatprep.subr.mxu0 0.0
    %205 = vmatpush1.msra.mxu0 0.0
    %206 = vmatprep.subr.mxu0 0.0
    %207 = vmatpush1.msra.mxu0 0.0
    %208 = vmatprep.subr.mxu0 0.0
    %209 = vmatpush1.msra.mxu0 0.0
    %210 = vmatprep.subr.mxu0 0.0
    %211 = vmatpush1.msra.mxu0 0.0
    %212 = vmatprep.subr.mxu0 0.0
    %213 = vmatpush1.msra.mxu0 0.0
    %214 = vmatprep.subr.mxu0 0.0
    %215 = vmatpush1.msra.mxu0 0.0
    %216 = vmatprep.subr.mxu0 0.0
    %217 = vmatpush1.msra.mxu0 0.0
    %218 = vmatprep.subr.mxu0 0.0
    %219 = vmatpush1.msra.mxu0 0.0
    %220 = vmatprep.subr.mxu0 0.0
    %221 = vmatpush1.msra.mxu0 0.0
    %222 = vmatprep.subr.mxu0 0.0
    %223 = vmatpush1.msra.mxu0 0.0
    %224 = vmatprep.subr.mxu0 0.0
    %225 = vmatpush1.msra.mxu0 0.0
    %226 = vmatprep.subr.mxu0 0.0
    %227 = vmatpush1.msra.mxu0 0.0
    %228 = vmatprep.subr.mxu0 0.0
    %229 = vmatpush1.msra.mxu0 0.0
    %230 = vmatprep.subr.mxu0 0.0
    %231 = vmatpush1.msra.mxu0 0.0
    %232 = vmatprep.subr.mxu0 0.0
    %233 = vmatpush2.msra.mxu0 0.0
    %234 = vmatprep.subr.mxu0 0.0
    %235 = vmatpush2.msra.mxu0 0.0
    %236 = vmatprep.subr.mxu0 0.0
    %237 = vmatpush2.msra.mxu0 0.0
    %238 = vmatprep.subr.mxu0 0.0
    %239 = vmatpush2.msra.mxu0 0.0
    %240 = vmatprep.subr.mxu0 0.0
    %241 = vmatpush2.msra.mxu0 0.0
    %242 = vmatprep.subr.mxu0 0.0
    %243 = vmatpush2.msra.mxu0 0.0
    %244 = vmatprep.subr.mxu0 0.0
    %245 = vmatpush2.msra.mxu0 0.0
    %246 = vmatprep.subr.mxu0 0.0
    %247 = vmatpush2.msra.mxu0 0.0
    %248 = vmatprep.subr.mxu0 0.0
    %249 = vmatpush2.msra.mxu0 0.0
    %250 = vmatprep.subr.mxu0 0.0
    %251 = vmatpush2.msra.mxu0 0.0
    %252 = vmatprep.subr.mxu0 0.0
    %253 = vmatpush2.msra.mxu0 0.0
    %254 = vmatprep.subr.mxu0 0.0
    %255 = vmatpush2.msra.mxu0 0.0
    %256 = vmatprep.subr.mxu0 0.0
    %257 = vmatpush2.msra.mxu0 0.0
    %258 = vmatprep.subr.mxu0 0.0
    %259 = vmatpush2.msra.mxu0 0.0
    %260 = vmatprep.subr.mxu0 0.0
    %261 = vmatpush2.msra.mxu0 0.0
    %262 = vmatprep.subr.mxu0 0.0
    %263 = vmatpush2.msra.mxu0 0.0
    %264 = vmatprep.mubr.f32.mxu0 0.0
    %265 = vmatmul.mubr.f32.gmra.mxu0 %v153
    %v266 = vpop.f32.mrf.mxu0
    %v267 = vadd.f32 %v135, %v266
    %v268 = vpop.f32.mrf.mxu0
    %269 = vmatprep.mubr.f32.mxu0 0.0
    %270 = vmatmul.mubr.f32.gmra.mxu0 %v156
    %v271 = vpop.f32.mrf.mxu0
    %v272 = vadd.f32 %v136, %v271
    %v273 = vpop.f32.mrf.mxu0
    %274 = vmatprep.mubr.f32.mxu0 0.0
    %275 = vmatmul.mubr.f32.gmra.mxu0 %v159
    %v276 = vpop.f32.mrf.mxu0
    %v277 = vadd.f32 %v137, %v276
    %v278 = vpop.f32.mrf.mxu0
    %279 = vmatprep.mubr.f32.mxu0 0.0
    %280 = vmatmul.mubr.f32.gmra.mxu0 %v162
    %v281 = vpop.f32.mrf.mxu0
    %v282 = vadd.f32 %v138, %v281
    %v283 = vpop.f32.mrf.mxu0
    %284 = vmatprep.mubr.f32.mxu0 0.0
    %285 = vmatmul.mubr.f32.gmra.mxu0 %v165
    %v286 = vpop.f32.mrf.mxu0
    %v287 = vadd.f32 %v139, %v286
    %v288 = vpop.f32.mrf.mxu0
    %289 = vmatprep.mubr.f32.mxu0 0.0
    %290 = vmatmul.mubr.f32.gmra.mxu0 %v168
    %v291 = vpop.f32.mrf.mxu0
    %v292 = vadd.f32 %v140, %v291
    %v293 = vpop.f32.mrf.mxu0
    %294 = vmatprep.mubr.f32.mxu0 0.0
    %295 = vmatmul.mubr.f32.gmra.mxu0 %v171
    %v296 = vpop.f32.mrf.mxu0
    %v297 = vadd.f32 %v141, %v296
    %v298 = vpop.f32.mrf.mxu0
    %299 = vmatprep.mubr.f32.mxu0 0.0
    %300 = vmatmul.mubr.f32.gmra.mxu0 %v174
    %v301 = vpop.f32.mrf.mxu0
    %v302 = vadd.f32 %v142, %v301
    %v303 = vpop.f32.mrf.mxu0
    %304 = vmatprep.mubr.f32.mxu0 0.0
    %305 = vmatmul.mubr.f32.gmra.mxu0 %v177
    %v306 = vpop.f32.mrf.mxu0
    %v307 = vadd.f32 %v143, %v306
    %v308 = vpop.f32.mrf.mxu0
    %309 = vmatprep.mubr.f32.mxu0 0.0
    %310 = vmatmul.mubr.f32.gmra.mxu0 %v180
    %v311 = vpop.f32.mrf.mxu0
    %v312 = vadd.f32 %v144, %v311
    %v313 = vpop.f32.mrf.mxu0
    %314 = vmatprep.mubr.f32.mxu0 0.0
    %315 = vmatmul.mubr.f32.gmra.mxu0 %v183
    %v316 = vpop.f32.mrf.mxu0
    %v317 = vadd.f32 %v145, %v316
    %v318 = vpop.f32.mrf.mxu0
    %319 = vmatprep.mubr.f32.mxu0 0.0
    %320 = vmatmul.mubr.f32.gmra.mxu0 %v186
    %v321 = vpop.f32.mrf.mxu0
    %v322 = vadd.f32 %v146, %v321
    %v323 = vpop.f32.mrf.mxu0
    %324 = vmatprep.mubr.f32.mxu0 0.0
    %325 = vmatmul.mubr.f32.gmra.mxu0 %v189
    %v326 = vpop.f32.mrf.mxu0
    %v327 = vadd.f32 %v147, %v326
    %v328 = vpop.f32.mrf.mxu0
    %329 = vmatprep.mubr.f32.mxu0 0.0
    %330 = vmatmul.mubr.f32.gmra.mxu0 %v192
    %v331 = vpop.f32.mrf.mxu0
    %v332 = vadd.f32 %v148, %v331
    %v333 = vpop.f32.mrf.mxu0
    %334 = vmatprep.mubr.f32.mxu0 0.0
    %335 = vmatmul.mubr.f32.gmra.mxu0 %v195
    %v336 = vpop.f32.mrf.mxu0
    %v337 = vadd.f32 %v149, %v336
    %v338 = vpop.f32.mrf.mxu0
    %339 = vmatprep.mubr.f32.mxu0 0.0
    %340 = vmatmul.mubr.f32.gmra.mxu0 %v198
    %v341 = vpop.f32.mrf.mxu0
    %v342 = vadd.f32 %v150, %v341
    %v343 = vpop.f32.mrf.mxu0
    %344 = vdwg.mxu0
    %345 = vset.pattern.permute.xlu0 1
    %346 = vperm.xlu0 %345, %v34
    %v347 = vpop.permute.xlu0 %346
    %349 = vset.pattern.permute.xlu0 1
    %350 = vperm.xlu0 %349, %v35
    %v351 = vpop.permute.xlu0 %350
    %353 = vset.pattern.permute.xlu0 1
    %354 = vperm.xlu0 %353, %v36
    %v355 = vpop.permute.xlu0 %354
    %357 = vset.pattern.permute.xlu0 1
    %358 = vperm.xlu0 %357, %v37
    %v359 = vpop.permute.xlu0 %358
    %361 = vset.pattern.permute.xlu0 1
    %362 = vperm.xlu0 %361, %v38
    %v363 = vpop.permute.xlu0 %362
    %365 = vset.pattern.permute.xlu0 1
    %366 = vperm.xlu0 %365, %v39
    %v367 = vpop.permute.xlu0 %366
    %369 = vset.pattern.permute.xlu0 1
    %370 = vperm.xlu0 %369, %v40
    %v371 = vpop.permute.xlu0 %370
    %373 = vset.pattern.permute.xlu0 1
    %374 = vperm.xlu0 %373, %v41
    %v375 = vpop.permute.xlu0 %374
    %377 = vset.pattern.permute.xlu0 1
    %378 = vperm.xlu0 %377, %v42
    %v379 = vpop.permute.xlu0 %378
    %381 = vset.pattern.permute.xlu0 1
    %382 = vperm.xlu0 %381, %v43
    %v383 = vpop.permute.xlu0 %382
    %385 = vset.pattern.permute.xlu0 1
    %386 = vperm.xlu0 %385, %v44
    %v387 = vpop.permute.xlu0 %386
    %389 = vset.pattern.permute.xlu0 1
    %390 = vperm.xlu0 %389, %v45
    %v391 = vpop.permute.xlu0 %390
    %393 = vset.pattern.permute.xlu0 1
    %394 = vperm.xlu0 %393, %v46
    %v395 = vpop.permute.xlu0 %394
    %397 = vset.pattern.permute.xlu0 1
    %398 = vperm.xlu0 %397, %v47
    %v399 = vpop.permute.xlu0 %398
    %401 = vset.pattern.permute.xlu0 1
    %402 = vperm.xlu0 %401, %v48
    %v403 = vpop.permute.xlu0 %402
    %405 = vset.pattern.permute.xlu0 1
    %406 = vperm.xlu0 %405, %v49
    %v407 = vpop.permute.xlu0 %406
    %v409 = vadd.f32 %v267, %v347
    %v410 = vadd.f32 %v272, %v351
    %v411 = vadd.f32 %v277, %v355
    %v412 = vadd.f32 %v282, %v359
    %v413 = vadd.f32 %v287, %v363
    %v414 = vadd.f32 %v292, %v367
    %v415 = vadd.f32 %v297, %v371
    %v416 = vadd.f32 %v302, %v375
    %v417 = vadd.f32 %v307, %v379
    %v418 = vadd.f32 %v312, %v383
    %v419 = vadd.f32 %v317, %v387
    %v420 = vadd.f32 %v322, %v391
    %v421 = vadd.f32 %v327, %v395
    %v422 = vadd.f32 %v332, %v399
    %v423 = vadd.f32 %v337, %v403
    %v424 = vadd.f32 %v342, %v407
    %v425 = vxor.u32 %v409, 2147483648
    %v426 = vxor.u32 %v410, 2147483648
    %v427 = vxor.u32 %v411, 2147483648
    %v428 = vxor.u32 %v412, 2147483648
    %v429 = vxor.u32 %v413, 2147483648
    %v430 = vxor.u32 %v414, 2147483648
    %v431 = vxor.u32 %v415, 2147483648
    %v432 = vxor.u32 %v416, 2147483648
    %v433 = vxor.u32 %v417, 2147483648
    %v434 = vxor.u32 %v418, 2147483648
    %v435 = vxor.u32 %v419, 2147483648
    %v436 = vxor.u32 %v420, 2147483648
    %v437 = vxor.u32 %v421, 2147483648
    %v438 = vxor.u32 %v422, 2147483648
    %v439 = vxor.u32 %v423, 2147483648
    %v440 = vxor.u32 %v424, 2147483648
    %v441 = vmul.f32 %v425, 1.442695
    %v442 = vpow.pop %v441
    %v443 = vmul.f32 %v426, 1.442695
    %v444 = vpow.pop %v443
    %v445 = vmul.f32 %v427, 1.442695
    %v446 = vpow.pop %v445
    %v447 = vmul.f32 %v428, 1.442695
    %v448 = vpow.pop %v447
    %v449 = vmul.f32 %v429, 1.442695
    %v450 = vpow.pop %v449
    %v451 = vmul.f32 %v430, 1.442695
    %v452 = vpow.pop %v451
    %v453 = vmul.f32 %v431, 1.442695
    %v454 = vpow.pop %v453
    %v455 = vmul.f32 %v432, 1.442695
    %v456 = vpow.pop %v455
    %v457 = vmul.f32 %v433, 1.442695
    %v458 = vpow.pop %v457
    %v459 = vmul.f32 %v434, 1.442695
    %v460 = vpow.pop %v459
    %v461 = vmul.f32 %v435, 1.442695
    %v462 = vpow.pop %v461
    %v463 = vmul.f32 %v436, 1.442695
    %v464 = vpow.pop %v463
    %v465 = vmul.f32 %v437, 1.442695
    %v466 = vpow.pop %v465
    %v467 = vmul.f32 %v438, 1.442695
    %v468 = vpow.pop %v467
    %v469 = vmul.f32 %v439, 1.442695
    %v470 = vpow.pop %v469
    %v471 = vmul.f32 %v440, 1.442695
    %v472 = vpow.pop %v471
    %v473 = vadd.f32 %v442, 1.0
    %v474 = vadd.f32 %v444, 1.0
    %v475 = vadd.f32 %v446, 1.0
    %v476 = vadd.f32 %v448, 1.0
    %v477 = vadd.f32 %v450, 1.0
    %v478 = vadd.f32 %v452, 1.0
    %v479 = vadd.f32 %v454, 1.0
    %v480 = vadd.f32 %v456, 1.0
    %v481 = vadd.f32 %v458, 1.0
    %v482 = vadd.f32 %v460, 1.0
    %v483 = vadd.f32 %v462, 1.0
    %v484 = vadd.f32 %v464, 1.0
    %v485 = vadd.f32 %v466, 1.0
    %v486 = vadd.f32 %v468, 1.0
    %v487 = vadd.f32 %v470, 1.0
    %v488 = vadd.f32 %v472, 1.0
    %v489 = vrcp.pop %v473
    %v490 = vmul.f32 1.0, %v489
    %v491 = vrcp.pop %v474
    %v492 = vmul.f32 1.0, %v491
    %v493 = vrcp.pop %v475
    %v494 = vmul.f32 1.0, %v493
    %v495 = vrcp.pop %v476
    %v496 = vmul.f32 1.0, %v495
    %v497 = vrcp.pop %v477
    %v498 = vmul.f32 1.0, %v497
    %v499 = vrcp.pop %v478
    %v500 = vmul.f32 1.0, %v499
    %v501 = vrcp.pop %v479
    %v502 = vmul.f32 1.0, %v501
    %v503 = vrcp.pop %v480
    %v504 = vmul.f32 1.0, %v503
    %v505 = vrcp.pop %v481
    %v506 = vmul.f32 1.0, %v505
    %v507 = vrcp.pop %v482
    %v508 = vmul.f32 1.0, %v507
    %v509 = vrcp.pop %v483
    %v510 = vmul.f32 1.0, %v509
    %v511 = vrcp.pop %v484
    %v512 = vmul.f32 1.0, %v511
    %v513 = vrcp.pop %v485
    %v514 = vmul.f32 1.0, %v513
    %v515 = vrcp.pop %v486
    %v516 = vmul.f32 1.0, %v515
    %v517 = vrcp.pop %v487
    %v518 = vmul.f32 1.0, %v517
    %v519 = vrcp.pop %v488
    %v520 = vmul.f32 1.0, %v519
    %v521 = vmul.f32 %v506, 2.0
    %v522 = vmul.f32 %v508, 2.0
    %v523 = vmul.f32 %v510, 2.0
    %v524 = vmul.f32 %v512, 2.0
    %v525 = vsub.f32 %v521, 1.0
    %v526 = vsub.f32 %v522, 1.0
    %v527 = vsub.f32 %v523, 1.0
    %v528 = vsub.f32 %v524, 1.0
    %v529 = vmul.f32 %v498, 0.0
    %v530 = vmul.f32 %v500, 0.0
    %v531 = vmul.f32 %v502, 0.0
    %v532 = vmul.f32 %v504, 0.0
    %v533 = vmul.f32 %v490, %v525
    %v534 = vmul.f32 %v492, %v526
    %v535 = vmul.f32 %v494, %v527
    %v536 = vmul.f32 %v496, %v528
    %v537 = vadd.f32 %v529, %v533
    %v538 = vadd.f32 %v530, %v534
    %v539 = vadd.f32 %v531, %v535
    %v540 = vadd.f32 %v532, %v536
    %v541 = vtanh.pop %v537
    %v542 = vtanh.pop %v538
    %v543 = vtanh.pop %v539
    %v544 = vtanh.pop %v540
    %v545 = vmul.f32 %v514, %v541
    %v546 = vmul.f32 %v516, %v542
    %v547 = vmul.f32 %v518, %v543
    %v548 = vmul.f32 %v520, %v544
    %v549 = vld [vmem:[%s0 + $0x1] sm:$0x1]
    %v550 = vlaneseq
    %v551 = vshrl.u32 %v550, 7
    %v552 = vsub.s32 0, %v551
    %v553 = vrot.slane %v549, %v552
    %v554 = vmul.f32 %v54, %v553
    %v555 = vmul.f32 %v59, %v553
    %v556 = vmul.f32 %v64, %v553
    %v557 = vmul.f32 %v69, %v553
    %v558 = vmul.f32 %v74, %v553
    %v559 = vmul.f32 %v79, %v553
    %v560 = vmul.f32 %v84, %v553
    %v561 = vmul.f32 %v89, %v553
    %v562 = vmul.f32 %v94, %v553
    %v563 = vmul.f32 %v99, %v553
    %v564 = vmul.f32 %v104, %v553
    %v565 = vmul.f32 %v109, %v553
    %v566 = vmul.f32 %v114, %v553
    %v567 = vmul.f32 %v119, %v553
    %v568 = vmul.f32 %v124, %v553
    %v569 = vmul.f32 %v129, %v553
    %570 = vmatprep.subr.mxu0 0.0
    %571 = vmatpush1.msra.mxu0 0.0
    %572 = vmatprep.subr.mxu0 0.0
    %573 = vmatpush1.msra.mxu0 0.0
    %574 = vmatprep.subr.mxu0 0.0
    %575 = vmatpush1.msra.mxu0 0.0
    %576 = vmatprep.subr.mxu0 0.0
    %577 = vmatpush1.msra.mxu0 0.0
    %578 = vmatprep.subr.mxu0 0.0
    %579 = vmatpush1.msra.mxu0 0.0
    %580 = vmatprep.subr.mxu0 0.0
    %581 = vmatpush1.msra.mxu0 0.0
    %582 = vmatprep.subr.mxu0 0.0
    %583 = vmatpush1.msra.mxu0 0.0
    %584 = vmatprep.subr.mxu0 0.0
    %585 = vmatpush1.msra.mxu0 0.0
    %586 = vmatprep.subr.mxu0 0.0
    %587 = vmatpush1.msra.mxu0 0.0
    %588 = vmatprep.subr.mxu0 0.0
    %589 = vmatpush1.msra.mxu0 0.0
    %590 = vmatprep.subr.mxu0 0.0
    %591 = vmatpush1.msra.mxu0 0.0
    %592 = vmatprep.subr.mxu0 0.0
    %593 = vmatpush1.msra.mxu0 0.0
    %594 = vmatprep.subr.mxu0 0.0
    %595 = vmatpush1.msra.mxu0 %v548
    %596 = vmatprep.subr.mxu0 0.0
    %597 = vmatpush1.msra.mxu0 %v547
    %598 = vmatprep.subr.mxu0 0.0
    %599 = vmatpush1.msra.mxu0 %v546
    %600 = vmatprep.subr.mxu0 0.0
    %601 = vmatpush1.msra.mxu0 %v545
    %602 = vmatprep.subr.mxu0 0.0
    %603 = vmatpush2.msra.mxu0 0.0
    %604 = vmatprep.subr.mxu0 0.0
    %605 = vmatpush2.msra.mxu0 0.0
    %606 = vmatprep.subr.mxu0 0.0
    %607 = vmatpush2.msra.mxu0 0.0
    %608 = vmatprep.subr.mxu0 0.0
    %609 = vmatpush2.msra.mxu0 0.0
    %610 = vmatprep.subr.mxu0 0.0
    %611 = vmatpush2.msra.mxu0 0.0
    %612 = vmatprep.subr.mxu0 0.0
    %613 = vmatpush2.msra.mxu0 0.0
    %614 = vmatprep.subr.mxu0 0.0
    %615 = vmatpush2.msra.mxu0 0.0
    %616 = vmatprep.subr.mxu0 0.0
    %617 = vmatpush2.msra.mxu0 0.0
    %618 = vmatprep.subr.mxu0 0.0
    %619 = vmatpush2.msra.mxu0 0.0
    %620 = vmatprep.subr.mxu0 0.0
    %621 = vmatpush2.msra.mxu0 0.0
    %622 = vmatprep.subr.mxu0 0.0
    %623 = vmatpush2.msra.mxu0 0.0
    %624 = vmatprep.subr.mxu0 0.0
    %625 = vmatpush2.msra.mxu0 0.0
    %626 = vmatprep.subr.mxu0 0.0
    %627 = vmatpush2.msra.mxu0 0.0
    %628 = vmatprep.subr.mxu0 0.0
    %629 = vmatpush2.msra.mxu0 0.0
    %630 = vmatprep.subr.mxu0 0.0
    %631 = vmatpush2.msra.mxu0 0.0
    %632 = vmatprep.subr.mxu0 0.0
    %633 = vmatpush2.msra.mxu0 0.0
    %634 = vmatprep.mubr.f32.mxu0 0.0
    %635 = vmatmul.mubr.f32.gmra.mxu0 %v153
    %v636 = vpop.f32.mrf.mxu0
    %v637 = vadd.f32 %v554, %v636
    %v638 = vpop.f32.mrf.mxu0
    %639 = vmatprep.mubr.f32.mxu0 0.0
    %640 = vmatmul.mubr.f32.gmra.mxu0 %v156
    %v641 = vpop.f32.mrf.mxu0
    %v642 = vadd.f32 %v555, %v641
    %v643 = vpop.f32.mrf.mxu0
    %644 = vmatprep.mubr.f32.mxu0 0.0
    %645 = vmatmul.mubr.f32.gmra.mxu0 %v159
    %v646 = vpop.f32.mrf.mxu0
    %v647 = vadd.f32 %v556, %v646
    %v648 = vpop.f32.mrf.mxu0
    %649 = vmatprep.mubr.f32.mxu0 0.0
    %650 = vmatmul.mubr.f32.gmra.mxu0 %v162
    %v651 = vpop.f32.mrf.mxu0
    %v652 = vadd.f32 %v557, %v651
    %v653 = vpop.f32.mrf.mxu0
    %654 = vmatprep.mubr.f32.mxu0 0.0
    %655 = vmatmul.mubr.f32.gmra.mxu0 %v165
    %v656 = vpop.f32.mrf.mxu0
    %v657 = vadd.f32 %v558, %v656
    %v658 = vpop.f32.mrf.mxu0
    %659 = vmatprep.mubr.f32.mxu0 0.0
    %660 = vmatmul.mubr.f32.gmra.mxu0 %v168
    %v661 = vpop.f32.mrf.mxu0
    %v662 = vadd.f32 %v559, %v661
    %v663 = vpop.f32.mrf.mxu0
    %664 = vmatprep.mubr.f32.mxu0 0.0
    %665 = vmatmul.mubr.f32.gmra.mxu0 %v171
    %v666 = vpop.f32.mrf.mxu0
    %v667 = vadd.f32 %v560, %v666
    %v668 = vpop.f32.mrf.mxu0
    %669 = vmatprep.mubr.f32.mxu0 0.0
    %670 = vmatmul.mubr.f32.gmra.mxu0 %v174
    %v671 = vpop.f32.mrf.mxu0
    %v672 = vadd.f32 %v561, %v671
    %v673 = vpop.f32.mrf.mxu0
    %674 = vmatprep.mubr.f32.mxu0 0.0
    %675 = vmatmul.mubr.f32.gmra.mxu0 %v177
    %v676 = vpop.f32.mrf.mxu0
    %v677 = vadd.f32 %v562, %v676
    %v678 = vpop.f32.mrf.mxu0
    %679 = vmatprep.mubr.f32.mxu0 0.0
    %680 = vmatmul.mubr.f32.gmra.mxu0 %v180
    %v681 = vpop.f32.mrf.mxu0
    %v682 = vadd.f32 %v563, %v681
    %v683 = vpop.f32.mrf.mxu0
    %684 = vmatprep.mubr.f32.mxu0 0.0
    %685 = vmatmul.mubr.f32.gmra.mxu0 %v183
    %v686 = vpop.f32.mrf.mxu0
    %v687 = vadd.f32 %v564, %v686
    %v688 = vpop.f32.mrf.mxu0
    %689 = vmatprep.mubr.f32.mxu0 0.0
    %690 = vmatmul.mubr.f32.gmra.mxu0 %v186
    %v691 = vpop.f32.mrf.mxu0
    %v692 = vadd.f32 %v565, %v691
    %v693 = vpop.f32.mrf.mxu0
    %694 = vmatprep.mubr.f32.mxu0 0.0
    %695 = vmatmul.mubr.f32.gmra.mxu0 %v189
    %v696 = vpop.f32.mrf.mxu0
    %v697 = vadd.f32 %v566, %v696
    %v698 = vpop.f32.mrf.mxu0
    %699 = vmatprep.mubr.f32.mxu0 0.0
    %700 = vmatmul.mubr.f32.gmra.mxu0 %v192
    %v701 = vpop.f32.mrf.mxu0
    %v702 = vadd.f32 %v567, %v701
    %v703 = vpop.f32.mrf.mxu0
    %704 = vmatprep.mubr.f32.mxu0 0.0
    %705 = vmatmul.mubr.f32.gmra.mxu0 %v195
    %v706 = vpop.f32.mrf.mxu0
    %v707 = vadd.f32 %v568, %v706
    %v708 = vpop.f32.mrf.mxu0
    %709 = vmatprep.mubr.f32.mxu0 0.0
    %710 = vmatmul.mubr.f32.gmra.mxu0 %v198
    %v711 = vpop.f32.mrf.mxu0
    %v712 = vadd.f32 %v569, %v711
    %v713 = vpop.f32.mrf.mxu0
    %714 = vdwg.mxu0
    %v715 = vadd.f32 %v637, %v347
    %v716 = vadd.f32 %v642, %v351
    %v717 = vadd.f32 %v647, %v355
    %v718 = vadd.f32 %v652, %v359
    %v719 = vadd.f32 %v657, %v363
    %v720 = vadd.f32 %v662, %v367
    %v721 = vadd.f32 %v667, %v371
    %v722 = vadd.f32 %v672, %v375
    %v723 = vadd.f32 %v677, %v379
    %v724 = vadd.f32 %v682, %v383
    %v725 = vadd.f32 %v687, %v387
    %v726 = vadd.f32 %v692, %v391
    %v727 = vadd.f32 %v697, %v395
    %v728 = vadd.f32 %v702, %v399
    %v729 = vadd.f32 %v707, %v403
    %v730 = vadd.f32 %v712, %v407
    %v731 = vxor.u32 %v715, 2147483648
    %v732 = vxor.u32 %v716, 2147483648
    %v733 = vxor.u32 %v717, 2147483648
    %v734 = vxor.u32 %v718, 2147483648
    %v735 = vxor.u32 %v719, 2147483648
    %v736 = vxor.u32 %v720, 2147483648
    %v737 = vxor.u32 %v721, 2147483648
    %v738 = vxor.u32 %v722, 2147483648
    %v739 = vxor.u32 %v723, 2147483648
    %v740 = vxor.u32 %v724, 2147483648
    %v741 = vxor.u32 %v725, 2147483648
    %v742 = vxor.u32 %v726, 2147483648
    %v743 = vxor.u32 %v727, 2147483648
    %v744 = vxor.u32 %v728, 2147483648
    %v745 = vxor.u32 %v729, 2147483648
    %v746 = vxor.u32 %v730, 2147483648
    %v747 = vmul.f32 %v731, 1.442695
    %v748 = vpow.pop %v747
    %v749 = vmul.f32 %v732, 1.442695
    %v750 = vpow.pop %v749
    %v751 = vmul.f32 %v733, 1.442695
    %v752 = vpow.pop %v751
    %v753 = vmul.f32 %v734, 1.442695
    %v754 = vpow.pop %v753
    %v755 = vmul.f32 %v735, 1.442695
    %v756 = vpow.pop %v755
    %v757 = vmul.f32 %v736, 1.442695
    %v758 = vpow.pop %v757
    %v759 = vmul.f32 %v737, 1.442695
    %v760 = vpow.pop %v759
    %v761 = vmul.f32 %v738, 1.442695
    %v762 = vpow.pop %v761
    %v763 = vmul.f32 %v739, 1.442695
    %v764 = vpow.pop %v763
    %v765 = vmul.f32 %v740, 1.442695
    %v766 = vpow.pop %v765
    %v767 = vmul.f32 %v741, 1.442695
    %v768 = vpow.pop %v767
    %v769 = vmul.f32 %v742, 1.442695
    %v770 = vpow.pop %v769
    %v771 = vmul.f32 %v743, 1.442695
    %v772 = vpow.pop %v771
    %v773 = vmul.f32 %v744, 1.442695
    %v774 = vpow.pop %v773
    %v775 = vmul.f32 %v745, 1.442695
    %v776 = vpow.pop %v775
    %v777 = vmul.f32 %v746, 1.442695
    %v778 = vpow.pop %v777
    %v779 = vadd.f32 %v748, 1.0
    %v780 = vadd.f32 %v750, 1.0
    %v781 = vadd.f32 %v752, 1.0
    %v782 = vadd.f32 %v754, 1.0
    %v783 = vadd.f32 %v756, 1.0
    %v784 = vadd.f32 %v758, 1.0
    %v785 = vadd.f32 %v760, 1.0
    %v786 = vadd.f32 %v762, 1.0
    %v787 = vadd.f32 %v764, 1.0
    %v788 = vadd.f32 %v766, 1.0
    %v789 = vadd.f32 %v768, 1.0
    %v790 = vadd.f32 %v770, 1.0
    %v791 = vadd.f32 %v772, 1.0
    %v792 = vadd.f32 %v774, 1.0
    %v793 = vadd.f32 %v776, 1.0
    %v794 = vadd.f32 %v778, 1.0
    %v795 = vrcp.pop %v779
    %v796 = vmul.f32 1.0, %v795
    %v797 = vrcp.pop %v780
    %v798 = vmul.f32 1.0, %v797
    %v799 = vrcp.pop %v781
    %v800 = vmul.f32 1.0, %v799
    %v801 = vrcp.pop %v782
    %v802 = vmul.f32 1.0, %v801
    %v803 = vrcp.pop %v783
    %v804 = vmul.f32 1.0, %v803
    %v805 = vrcp.pop %v784
    %v806 = vmul.f32 1.0, %v805
    %v807 = vrcp.pop %v785
    %v808 = vmul.f32 1.0, %v807
    %v809 = vrcp.pop %v786
    %v810 = vmul.f32 1.0, %v809
    %v811 = vrcp.pop %v787
    %v812 = vmul.f32 1.0, %v811
    %v813 = vrcp.pop %v788
    %v814 = vmul.f32 1.0, %v813
    %v815 = vrcp.pop %v789
    %v816 = vmul.f32 1.0, %v815
    %v817 = vrcp.pop %v790
    %v818 = vmul.f32 1.0, %v817
    %v819 = vrcp.pop %v791
    %v820 = vmul.f32 1.0, %v819
    %v821 = vrcp.pop %v792
    %v822 = vmul.f32 1.0, %v821
    %v823 = vrcp.pop %v793
    %v824 = vmul.f32 1.0, %v823
    %v825 = vrcp.pop %v794
    %v826 = vmul.f32 1.0, %v825
    %v827 = vmul.f32 %v812, 2.0
    %v828 = vmul.f32 %v814, 2.0
    %v829 = vmul.f32 %v816, 2.0
    %v830 = vmul.f32 %v818, 2.0
    %v831 = vsub.f32 %v827, 1.0
    %v832 = vsub.f32 %v828, 1.0
    %v833 = vsub.f32 %v829, 1.0
    %v834 = vsub.f32 %v830, 1.0
    %v835 = vmul.f32 %v804, %v537
    %v836 = vmul.f32 %v806, %v538
    %v837 = vmul.f32 %v808, %v539
    %v838 = vmul.f32 %v810, %v540
    %v839 = vmul.f32 %v796, %v831
    %v840 = vmul.f32 %v798, %v832
    %v841 = vmul.f32 %v800, %v833
    %v842 = vmul.f32 %v802, %v834
    %v843 = vadd.f32 %v835, %v839
    %v844 = vadd.f32 %v836, %v840
    %v845 = vadd.f32 %v837, %v841
    %v846 = vadd.f32 %v838, %v842
    %v847 = vtanh.pop %v843
    %v848 = vtanh.pop %v844
    %v849 = vtanh.pop %v845
    %v850 = vtanh.pop %v846
    %v851 = vmul.f32 %v820, %v847
    %v852 = vmul.f32 %v822, %v848
    %v853 = vmul.f32 %v824, %v849
    %v854 = vmul.f32 %v826, %v850
    %v855 = vld [vmem:[%s0 + $0x2] sm:$0x1]
    %v856 = vlaneseq
    %v857 = vshrl.u32 %v856, 7
    %v858 = vsub.s32 0, %v857
    %v859 = vrot.slane %v855, %v858
    %v860 = vmul.f32 %v54, %v859
    %v861 = vmul.f32 %v59, %v859
    %v862 = vmul.f32 %v64, %v859
    %v863 = vmul.f32 %v69, %v859
    %v864 = vmul.f32 %v74, %v859
    %v865 = vmul.f32 %v79, %v859
    %v866 = vmul.f32 %v84, %v859
    %v867 = vmul.f32 %v89, %v859
    %v868 = vmul.f32 %v94, %v859
    %v869 = vmul.f32 %v99, %v859
    %v870 = vmul.f32 %v104, %v859
    %v871 = vmul.f32 %v109, %v859
    %v872 = vmul.f32 %v114, %v859
    %v873 = vmul.f32 %v119, %v859
    %v874 = vmul.f32 %v124, %v859
    %v875 = vmul.f32 %v129, %v859
    %876 = vmatprep.subr.mxu0 0.0
    %877 = vmatpush1.msra.mxu0 0.0
    %878 = vmatprep.subr.mxu0 0.0
    %879 = vmatpush1.msra.mxu0 0.0
    %880 = vmatprep.subr.mxu0 0.0
    %881 = vmatpush1.msra.mxu0 0.0
    %882 = vmatprep.subr.mxu0 0.0
    %883 = vmatpush1.msra.mxu0 0.0
    %884 = vmatprep.subr.mxu0 0.0
    %885 = vmatpush1.msra.mxu0 0.0
    %886 = vmatprep.subr.mxu0 0.0
    %887 = vmatpush1.msra.mxu0 0.0
    %888 = vmatprep.subr.mxu0 0.0
    %889 = vmatpush1.msra.mxu0 0.0
    %890 = vmatprep.subr.mxu0 0.0
    %891 = vmatpush1.msra.mxu0 0.0
    %892 = vmatprep.subr.mxu0 0.0
    %893 = vmatpush1.msra.mxu0 0.0
    %894 = vmatprep.subr.mxu0 0.0
    %895 = vmatpush1.msra.mxu0 0.0
    %896 = vmatprep.subr.mxu0 0.0
    %897 = vmatpush1.msra.mxu0 0.0
    %898 = vmatprep.subr.mxu0 0.0
    %899 = vmatpush1.msra.mxu0 0.0
    %900 = vmatprep.subr.mxu0 0.0
    %901 = vmatpush1.msra.mxu0 %v854
    %902 = vmatprep.subr.mxu0 0.0
    %903 = vmatpush1.msra.mxu0 %v853
    %904 = vmatprep.subr.mxu0 0.0
    %905 = vmatpush1.msra.mxu0 %v852
    %906 = vmatprep.subr.mxu0 0.0
    %907 = vmatpush1.msra.mxu0 %v851
    %908 = vmatprep.subr.mxu0 0.0
    %909 = vmatpush2.msra.mxu0 0.0
    %910 = vmatprep.subr.mxu0 0.0
    %911 = vmatpush2.msra.mxu0 0.0
    %912 = vmatprep.subr.mxu0 0.0
    %913 = vmatpush2.msra.mxu0 0.0
    %914 = vmatprep.subr.mxu0 0.0
    %915 = vmatpush2.msra.mxu0 0.0
    %916 = vmatprep.subr.mxu0 0.0
    %917 = vmatpush2.msra.mxu0 0.0
    %918 = vmatprep.subr.mxu0 0.0
    %919 = vmatpush2.msra.mxu0 0.0
    %920 = vmatprep.subr.mxu0 0.0
    %921 = vmatpush2.msra.mxu0 0.0
    %922 = vmatprep.subr.mxu0 0.0
    %923 = vmatpush2.msra.mxu0 0.0
    %924 = vmatprep.subr.mxu0 0.0
    %925 = vmatpush2.msra.mxu0 0.0
    %926 = vmatprep.subr.mxu0 0.0
    %927 = vmatpush2.msra.mxu0 0.0
    %928 = vmatprep.subr.mxu0 0.0
    %929 = vmatpush2.msra.mxu0 0.0
    %930 = vmatprep.subr.mxu0 0.0
    %931 = vmatpush2.msra.mxu0 0.0
    %932 = vmatprep.subr.mxu0 0.0
    %933 = vmatpush2.msra.mxu0 0.0
    %934 = vmatprep.subr.mxu0 0.0
    %935 = vmatpush2.msra.mxu0 0.0
    %936 = vmatprep.subr.mxu0 0.0
    %937 = vmatpush2.msra.mxu0 0.0
    %938 = vmatprep.subr.mxu0 0.0
    %939 = vmatpush2.msra.mxu0 0.0
    %940 = vmatprep.mubr.f32.mxu0 0.0
    %941 = vmatmul.mubr.f32.gmra.mxu0 %v153
    %v942 = vpop.f32.mrf.mxu0
    %v943 = vadd.f32 %v860, %v942
    %v944 = vpop.f32.mrf.mxu0
    %945 = vmatprep.mubr.f32.mxu0 0.0
    %946 = vmatmul.mubr.f32.gmra.mxu0 %v156
    %v947 = vpop.f32.mrf.mxu0
    %v948 = vadd.f32 %v861, %v947
    %v949 = vpop.f32.mrf.mxu0
    %950 = vmatprep.mubr.f32.mxu0 0.0
    %951 = vmatmul.mubr.f32.gmra.mxu0 %v159
    %v952 = vpop.f32.mrf.mxu0
    %v953 = vadd.f32 %v862, %v952
    %v954 = vpop.f32.mrf.mxu0
    %955 = vmatprep.mubr.f32.mxu0 0.0
    %956 = vmatmul.mubr.f32.gmra.mxu0 %v162
    %v957 = vpop.f32.mrf.mxu0
    %v958 = vadd.f32 %v863, %v957
    %v959 = vpop.f32.mrf.mxu0
    %960 = vmatprep.mubr.f32.mxu0 0.0
    %961 = vmatmul.mubr.f32.gmra.mxu0 %v165
    %v962 = vpop.f32.mrf.mxu0
    %v963 = vadd.f32 %v864, %v962
    %v964 = vpop.f32.mrf.mxu0
    %965 = vmatprep.mubr.f32.mxu0 0.0
    %966 = vmatmul.mubr.f32.gmra.mxu0 %v168
    %v967 = vpop.f32.mrf.mxu0
    %v968 = vadd.f32 %v865, %v967
    %v969 = vpop.f32.mrf.mxu0
    %970 = vmatprep.mubr.f32.mxu0 0.0
    %971 = vmatmul.mubr.f32.gmra.mxu0 %v171
    %v972 = vpop.f32.mrf.mxu0
    %v973 = vadd.f32 %v866, %v972
    %v974 = vpop.f32.mrf.mxu0
    %975 = vmatprep.mubr.f32.mxu0 0.0
    %976 = vmatmul.mubr.f32.gmra.mxu0 %v174
    %v977 = vpop.f32.mrf.mxu0
    %v978 = vadd.f32 %v867, %v977
    %v979 = vpop.f32.mrf.mxu0
    %980 = vmatprep.mubr.f32.mxu0 0.0
    %981 = vmatmul.mubr.f32.gmra.mxu0 %v177
    %v982 = vpop.f32.mrf.mxu0
    %v983 = vadd.f32 %v868, %v982
    %v984 = vpop.f32.mrf.mxu0
    %985 = vmatprep.mubr.f32.mxu0 0.0
    %986 = vmatmul.mubr.f32.gmra.mxu0 %v180
    %v987 = vpop.f32.mrf.mxu0
    %v988 = vadd.f32 %v869, %v987
    %v989 = vpop.f32.mrf.mxu0
    %990 = vmatprep.mubr.f32.mxu0 0.0
    %991 = vmatmul.mubr.f32.gmra.mxu0 %v183
    %v992 = vpop.f32.mrf.mxu0
    %v993 = vadd.f32 %v870, %v992
    %v994 = vpop.f32.mrf.mxu0
    %995 = vmatprep.mubr.f32.mxu0 0.0
    %996 = vmatmul.mubr.f32.gmra.mxu0 %v186
    %v997 = vpop.f32.mrf.mxu0
    %v998 = vadd.f32 %v871, %v997
    %v999 = vpop.f32.mrf.mxu0
    %1000 = vmatprep.mubr.f32.mxu0 0.0
    %1001 = vmatmul.mubr.f32.gmra.mxu0 %v189
    %v1002 = vpop.f32.mrf.mxu0
    %v1003 = vadd.f32 %v872, %v1002
    %v1004 = vpop.f32.mrf.mxu0
    %1005 = vmatprep.mubr.f32.mxu0 0.0
    %1006 = vmatmul.mubr.f32.gmra.mxu0 %v192
    %v1007 = vpop.f32.mrf.mxu0
    %v1008 = vadd.f32 %v873, %v1007
    %v1009 = vpop.f32.mrf.mxu0
    %1010 = vmatprep.mubr.f32.mxu0 0.0
    %1011 = vmatmul.mubr.f32.gmra.mxu0 %v195
    %v1012 = vpop.f32.mrf.mxu0
    %v1013 = vadd.f32 %v874, %v1012
    %v1014 = vpop.f32.mrf.mxu0
    %1015 = vmatprep.mubr.f32.mxu0 0.0
    %1016 = vmatmul.mubr.f32.gmra.mxu0 %v198
    %v1017 = vpop.f32.mrf.mxu0
    %v1018 = vadd.f32 %v875, %v1017
    %v1019 = vpop.f32.mrf.mxu0
    %1020 = vdwg.mxu0
    %v1021 = vadd.f32 %v943, %v347
    %v1022 = vadd.f32 %v948, %v351
    %v1023 = vadd.f32 %v953, %v355
    %v1024 = vadd.f32 %v958, %v359
    %v1025 = vadd.f32 %v963, %v363
    %v1026 = vadd.f32 %v968, %v367
    %v1027 = vadd.f32 %v973, %v371
    %v1028 = vadd.f32 %v978, %v375
    %v1029 = vadd.f32 %v983, %v379
    %v1030 = vadd.f32 %v988, %v383
    %v1031 = vadd.f32 %v993, %v387
    %v1032 = vadd.f32 %v998, %v391
    %v1033 = vadd.f32 %v1003, %v395
    %v1034 = vadd.f32 %v1008, %v399
    %v1035 = vadd.f32 %v1013, %v403
    %v1036 = vadd.f32 %v1018, %v407
    %v1037 = vxor.u32 %v1021, 2147483648
    %v1038 = vxor.u32 %v1022, 2147483648
    %v1039 = vxor.u32 %v1023, 2147483648
    %v1040 = vxor.u32 %v1024, 2147483648
    %v1041 = vxor.u32 %v1025, 2147483648
    %v1042 = vxor.u32 %v1026, 2147483648
    %v1043 = vxor.u32 %v1027, 2147483648
    %v1044 = vxor.u32 %v1028, 2147483648
    %v1045 = vxor.u32 %v1029, 2147483648
    %v1046 = vxor.u32 %v1030, 2147483648
    %v1047 = vxor.u32 %v1031, 2147483648
    %v1048 = vxor.u32 %v1032, 2147483648
    %v1049 = vxor.u32 %v1033, 2147483648
    %v1050 = vxor.u32 %v1034, 2147483648
    %v1051 = vxor.u32 %v1035, 2147483648
    %v1052 = vxor.u32 %v1036, 2147483648
    %v1053 = vmul.f32 %v1037, 1.442695
    %v1054 = vpow.pop %v1053
    %v1055 = vmul.f32 %v1038, 1.442695
    %v1056 = vpow.pop %v1055
    %v1057 = vmul.f32 %v1039, 1.442695
    %v1058 = vpow.pop %v1057
    %v1059 = vmul.f32 %v1040, 1.442695
    %v1060 = vpow.pop %v1059
    %v1061 = vmul.f32 %v1041, 1.442695
    %v1062 = vpow.pop %v1061
    %v1063 = vmul.f32 %v1042, 1.442695
    %v1064 = vpow.pop %v1063
    %v1065 = vmul.f32 %v1043, 1.442695
    %v1066 = vpow.pop %v1065
    %v1067 = vmul.f32 %v1044, 1.442695
    %v1068 = vpow.pop %v1067
    %v1069 = vmul.f32 %v1045, 1.442695
    %v1070 = vpow.pop %v1069
    %v1071 = vmul.f32 %v1046, 1.442695
    %v1072 = vpow.pop %v1071
    %v1073 = vmul.f32 %v1047, 1.442695
    %v1074 = vpow.pop %v1073
    %v1075 = vmul.f32 %v1048, 1.442695
    %v1076 = vpow.pop %v1075
    %v1077 = vmul.f32 %v1049, 1.442695
    %v1078 = vpow.pop %v1077
    %v1079 = vmul.f32 %v1050, 1.442695
    %v1080 = vpow.pop %v1079
    %v1081 = vmul.f32 %v1051, 1.442695
    %v1082 = vpow.pop %v1081
    %v1083 = vmul.f32 %v1052, 1.442695
    %v1084 = vpow.pop %v1083
    %v1085 = vadd.f32 %v1054, 1.0
    %v1086 = vadd.f32 %v1056, 1.0
    %v1087 = vadd.f32 %v1058, 1.0
    %v1088 = vadd.f32 %v1060, 1.0
    %v1089 = vadd.f32 %v1062, 1.0
    %v1090 = vadd.f32 %v1064, 1.0
    %v1091 = vadd.f32 %v1066, 1.0
    %v1092 = vadd.f32 %v1068, 1.0
    %v1093 = vadd.f32 %v1070, 1.0
    %v1094 = vadd.f32 %v1072, 1.0
    %v1095 = vadd.f32 %v1074, 1.0
    %v1096 = vadd.f32 %v1076, 1.0
    %v1097 = vadd.f32 %v1078, 1.0
    %v1098 = vadd.f32 %v1080, 1.0
    %v1099 = vadd.f32 %v1082, 1.0
    %v1100 = vadd.f32 %v1084, 1.0
    %v1101 = vrcp.pop %v1085
    %v1102 = vmul.f32 1.0, %v1101
    %v1103 = vrcp.pop %v1086
    %v1104 = vmul.f32 1.0, %v1103
    %v1105 = vrcp.pop %v1087
    %v1106 = vmul.f32 1.0, %v1105
    %v1107 = vrcp.pop %v1088
    %v1108 = vmul.f32 1.0, %v1107
    %v1109 = vrcp.pop %v1089
    %v1110 = vmul.f32 1.0, %v1109
    %v1111 = vrcp.pop %v1090
    %v1112 = vmul.f32 1.0, %v1111
    %v1113 = vrcp.pop %v1091
    %v1114 = vmul.f32 1.0, %v1113
    %v1115 = vrcp.pop %v1092
    %v1116 = vmul.f32 1.0, %v1115
    %v1117 = vrcp.pop %v1093
    %v1118 = vmul.f32 1.0, %v1117
    %v1119 = vrcp.pop %v1094
    %v1120 = vmul.f32 1.0, %v1119
    %v1121 = vrcp.pop %v1095
    %v1122 = vmul.f32 1.0, %v1121
    %v1123 = vrcp.pop %v1096
    %v1124 = vmul.f32 1.0, %v1123
    %v1125 = vrcp.pop %v1097
    %v1126 = vmul.f32 1.0, %v1125
    %v1127 = vrcp.pop %v1098
    %v1128 = vmul.f32 1.0, %v1127
    %v1129 = vrcp.pop %v1099
    %v1130 = vmul.f32 1.0, %v1129
    %v1131 = vrcp.pop %v1100
    %v1132 = vmul.f32 1.0, %v1131
    %v1133 = vmul.f32 %v1118, 2.0
    %v1134 = vmul.f32 %v1120, 2.0
    %v1135 = vmul.f32 %v1122, 2.0
    %v1136 = vmul.f32 %v1124, 2.0
    %v1137 = vsub.f32 %v1133, 1.0
    %v1138 = vsub.f32 %v1134, 1.0
    %v1139 = vsub.f32 %v1135, 1.0
    %v1140 = vsub.f32 %v1136, 1.0
    %v1141 = vmul.f32 %v1110, %v843
    %v1142 = vmul.f32 %v1112, %v844
    %v1143 = vmul.f32 %v1114, %v845
    %v1144 = vmul.f32 %v1116, %v846
    %v1145 = vmul.f32 %v1102, %v1137
    %v1146 = vmul.f32 %v1104, %v1138
    %v1147 = vmul.f32 %v1106, %v1139
    %v1148 = vmul.f32 %v1108, %v1140
    %v1149 = vadd.f32 %v1141, %v1145
    %v1150 = vadd.f32 %v1142, %v1146
    %v1151 = vadd.f32 %v1143, %v1147
    %v1152 = vadd.f32 %v1144, %v1148
    %v1153 = vtanh.pop %v1149
    %v1154 = vtanh.pop %v1150
    %v1155 = vtanh.pop %v1151
    %v1156 = vtanh.pop %v1152
    %v1157 = vmul.f32 %v1126, %v1153
    %v1158 = vmul.f32 %v1128, %v1154
    %v1159 = vmul.f32 %v1130, %v1155
    %v1160 = vmul.f32 %v1132, %v1156
    %v1161 = vld [vmem:[%s0 + $0x3] sm:$0x1]
    %v1162 = vlaneseq
    %v1163 = vshrl.u32 %v1162, 7
    %v1164 = vsub.s32 0, %v1163
    %v1165 = vrot.slane %v1161, %v1164
    %v1166 = vmul.f32 %v54, %v1165
    %v1167 = vmul.f32 %v59, %v1165
    %v1168 = vmul.f32 %v64, %v1165
    %v1169 = vmul.f32 %v69, %v1165
    %v1170 = vmul.f32 %v74, %v1165
    %v1171 = vmul.f32 %v79, %v1165
    %v1172 = vmul.f32 %v84, %v1165
    %v1173 = vmul.f32 %v89, %v1165
    %v1174 = vmul.f32 %v94, %v1165
    %v1175 = vmul.f32 %v99, %v1165
    %v1176 = vmul.f32 %v104, %v1165
    %v1177 = vmul.f32 %v109, %v1165
    %v1178 = vmul.f32 %v114, %v1165
    %v1179 = vmul.f32 %v119, %v1165
    %v1180 = vmul.f32 %v124, %v1165
    %v1181 = vmul.f32 %v129, %v1165
    %1182 = vmatprep.subr.mxu0 0.0
    %1183 = vmatpush1.msra.mxu0 0.0
    %1184 = vmatprep.subr.mxu0 0.0
    %1185 = vmatpush1.msra.mxu0 0.0
    %1186 = vmatprep.subr.mxu0 0.0
    %1187 = vmatpush1.msra.mxu0 0.0
    %1188 = vmatprep.subr.mxu0 0.0
    %1189 = vmatpush1.msra.mxu0 0.0
    %1190 = vmatprep.subr.mxu0 0.0
    %1191 = vmatpush1.msra.mxu0 0.0
    %1192 = vmatprep.subr.mxu0 0.0
    %1193 = vmatpush1.msra.mxu0 0.0
    %1194 = vmatprep.subr.mxu0 0.0
    %1195 = vmatpush1.msra.mxu0 0.0
    %1196 = vmatprep.subr.mxu0 0.0
    %1197 = vmatpush1.msra.mxu0 0.0
    %1198 = vmatprep.subr.mxu0 0.0
    %1199 = vmatpush1.msra.mxu0 0.0
    %1200 = vmatprep.subr.mxu0 0.0
    %1201 = vmatpush1.msra.mxu0 0.0
    %1202 = vmatprep.subr.mxu0 0.0
    %1203 = vmatpush1.msra.mxu0 0.0
    %1204 = vmatprep.subr.mxu0 0.0
    %1205 = vmatpush1.msra.mxu0 0.0
    %1206 = vmatprep.subr.mxu0 0.0
    %1207 = vmatpush1.msra.mxu0 %v1160
    %1208 = vmatprep.subr.mxu0 0.0
    %1209 = vmatpush1.msra.mxu0 %v1159
    %1210 = vmatprep.subr.mxu0 0.0
    %1211 = vmatpush1.msra.mxu0 %v1158
    %1212 = vmatprep.subr.mxu0 0.0
    %1213 = vmatpush1.msra.mxu0 %v1157
    %1214 = vmatprep.subr.mxu0 0.0
    %1215 = vmatpush2.msra.mxu0 0.0
    %1216 = vmatprep.subr.mxu0 0.0
    %1217 = vmatpush2.msra.mxu0 0.0
    %1218 = vmatprep.subr.mxu0 0.0
    %1219 = vmatpush2.msra.mxu0 0.0
    %1220 = vmatprep.subr.mxu0 0.0
    %1221 = vmatpush2.msra.mxu0 0.0
    %1222 = vmatprep.subr.mxu0 0.0
    %1223 = vmatpush2.msra.mxu0 0.0
    %1224 = vmatprep.subr.mxu0 0.0
    %1225 = vmatpush2.msra.mxu0 0.0
    %1226 = vmatprep.subr.mxu0 0.0
    %1227 = vmatpush2.msra.mxu0 0.0
    %1228 = vmatprep.subr.mxu0 0.0
    %1229 = vmatpush2.msra.mxu0 0.0
    %1230 = vmatprep.subr.mxu0 0.0
    %1231 = vmatpush2.msra.mxu0 0.0
    %1232 = vmatprep.subr.mxu0 0.0
    %1233 = vmatpush2.msra.mxu0 0.0
    %1234 = vmatprep.subr.mxu0 0.0
    %1235 = vmatpush2.msra.mxu0 0.0
    %1236 = vmatprep.subr.mxu0 0.0
    %1237 = vmatpush2.msra.mxu0 0.0
    %1238 = vmatprep.subr.mxu0 0.0
    %1239 = vmatpush2.msra.mxu0 0.0
    %1240 = vmatprep.subr.mxu0 0.0
    %1241 = vmatpush2.msra.mxu0 0.0
    %1242 = vmatprep.subr.mxu0 0.0
    %1243 = vmatpush2.msra.mxu0 0.0
    %1244 = vmatprep.subr.mxu0 0.0
    %1245 = vmatpush2.msra.mxu0 0.0
    %1246 = vmatprep.mubr.f32.mxu0 0.0
    %1247 = vmatmul.mubr.f32.gmra.mxu0 %v153
    %v1248 = vpop.f32.mrf.mxu0
    %v1249 = vadd.f32 %v1166, %v1248
    %v1250 = vpop.f32.mrf.mxu0
    %1251 = vmatprep.mubr.f32.mxu0 0.0
    %1252 = vmatmul.mubr.f32.gmra.mxu0 %v156
    %v1253 = vpop.f32.mrf.mxu0
    %v1254 = vadd.f32 %v1167, %v1253
    %v1255 = vpop.f32.mrf.mxu0
    %1256 = vmatprep.mubr.f32.mxu0 0.0
    %1257 = vmatmul.mubr.f32.gmra.mxu0 %v159
    %v1258 = vpop.f32.mrf.mxu0
    %v1259 = vadd.f32 %v1168, %v1258
    %v1260 = vpop.f32.mrf.mxu0
    %1261 = vmatprep.mubr.f32.mxu0 0.0
    %1262 = vmatmul.mubr.f32.gmra.mxu0 %v162
    %v1263 = vpop.f32.mrf.mxu0
    %v1264 = vadd.f32 %v1169, %v1263
    %v1265 = vpop.f32.mrf.mxu0
    %1266 = vmatprep.mubr.f32.mxu0 0.0
    %1267 = vmatmul.mubr.f32.gmra.mxu0 %v165
    %v1268 = vpop.f32.mrf.mxu0
    %v1269 = vadd.f32 %v1170, %v1268
    %v1270 = vpop.f32.mrf.mxu0
    %1271 = vmatprep.mubr.f32.mxu0 0.0
    %1272 = vmatmul.mubr.f32.gmra.mxu0 %v168
    %v1273 = vpop.f32.mrf.mxu0
    %v1274 = vadd.f32 %v1171, %v1273
    %v1275 = vpop.f32.mrf.mxu0
    %1276 = vmatprep.mubr.f32.mxu0 0.0
    %1277 = vmatmul.mubr.f32.gmra.mxu0 %v171
    %v1278 = vpop.f32.mrf.mxu0
    %v1279 = vadd.f32 %v1172, %v1278
    %v1280 = vpop.f32.mrf.mxu0
    %1281 = vmatprep.mubr.f32.mxu0 0.0
    %1282 = vmatmul.mubr.f32.gmra.mxu0 %v174
    %v1283 = vpop.f32.mrf.mxu0
    %v1284 = vadd.f32 %v1173, %v1283
    %v1285 = vpop.f32.mrf.mxu0
    %1286 = vmatprep.mubr.f32.mxu0 0.0
    %1287 = vmatmul.mubr.f32.gmra.mxu0 %v177
    %v1288 = vpop.f32.mrf.mxu0
    %v1289 = vadd.f32 %v1174, %v1288
    %v1290 = vpop.f32.mrf.mxu0
    %1291 = vmatprep.mubr.f32.mxu0 0.0
    %1292 = vmatmul.mubr.f32.gmra.mxu0 %v180
    %v1293 = vpop.f32.mrf.mxu0
    %v1294 = vadd.f32 %v1175, %v1293
    %v1295 = vpop.f32.mrf.mxu0
    %1296 = vmatprep.mubr.f32.mxu0 0.0
    %1297 = vmatmul.mubr.f32.gmra.mxu0 %v183
    %v1298 = vpop.f32.mrf.mxu0
    %v1299 = vadd.f32 %v1176, %v1298
    %v1300 = vpop.f32.mrf.mxu0
    %1301 = vmatprep.mubr.f32.mxu0 0.0
    %1302 = vmatmul.mubr.f32.gmra.mxu0 %v186
    %v1303 = vpop.f32.mrf.mxu0
    %v1304 = vadd.f32 %v1177, %v1303
    %v1305 = vpop.f32.mrf.mxu0
    %1306 = vmatprep.mubr.f32.mxu0 0.0
    %1307 = vmatmul.mubr.f32.gmra.mxu0 %v189
    %v1308 = vpop.f32.mrf.mxu0
    %v1309 = vadd.f32 %v1178, %v1308
    %v1310 = vpop.f32.mrf.mxu0
    %1311 = vmatprep.mubr.f32.mxu0 0.0
    %1312 = vmatmul.mubr.f32.gmra.mxu0 %v192
    %v1313 = vpop.f32.mrf.mxu0
    %v1314 = vadd.f32 %v1179, %v1313
    %v1315 = vpop.f32.mrf.mxu0
    %1316 = vmatprep.mubr.f32.mxu0 0.0
    %1317 = vmatmul.mubr.f32.gmra.mxu0 %v195
    %v1318 = vpop.f32.mrf.mxu0
    %v1319 = vadd.f32 %v1180, %v1318
    %v1320 = vpop.f32.mrf.mxu0
    %1321 = vmatprep.mubr.f32.mxu0 0.0
    %1322 = vmatmul.mubr.f32.gmra.mxu0 %v198
    %v1323 = vpop.f32.mrf.mxu0
    %v1324 = vadd.f32 %v1181, %v1323
    %v1325 = vpop.f32.mrf.mxu0
    %1326 = vdwg.mxu0
    %v1327 = vadd.f32 %v1249, %v347
    %v1328 = vadd.f32 %v1254, %v351
    %v1329 = vadd.f32 %v1259, %v355
    %v1330 = vadd.f32 %v1264, %v359
    %v1331 = vadd.f32 %v1269, %v363
    %v1332 = vadd.f32 %v1274, %v367
    %v1333 = vadd.f32 %v1279, %v371
    %v1334 = vadd.f32 %v1284, %v375
    %v1335 = vadd.f32 %v1289, %v379
    %v1336 = vadd.f32 %v1294, %v383
    %v1337 = vadd.f32 %v1299, %v387
    %v1338 = vadd.f32 %v1304, %v391
    %v1339 = vadd.f32 %v1309, %v395
    %v1340 = vadd.f32 %v1314, %v399
    %v1341 = vadd.f32 %v1319, %v403
    %v1342 = vadd.f32 %v1324, %v407
    %v1343 = vxor.u32 %v1327, 2147483648
    %v1344 = vxor.u32 %v1328, 2147483648
    %v1345 = vxor.u32 %v1329, 2147483648
    %v1346 = vxor.u32 %v1330, 2147483648
    %v1347 = vxor.u32 %v1331, 2147483648
    %v1348 = vxor.u32 %v1332, 2147483648
    %v1349 = vxor.u32 %v1333, 2147483648
    %v1350 = vxor.u32 %v1334, 2147483648
    %v1351 = vxor.u32 %v1335, 2147483648
    %v1352 = vxor.u32 %v1336, 2147483648
    %v1353 = vxor.u32 %v1337, 2147483648
    %v1354 = vxor.u32 %v1338, 2147483648
    %v1355 = vxor.u32 %v1339, 2147483648
    %v1356 = vxor.u32 %v1340, 2147483648
    %v1357 = vxor.u32 %v1341, 2147483648
    %v1358 = vxor.u32 %v1342, 2147483648
    %v1359 = vmul.f32 %v1343, 1.442695
    %v1360 = vpow.pop %v1359
    %v1361 = vmul.f32 %v1344, 1.442695
    %v1362 = vpow.pop %v1361
    %v1363 = vmul.f32 %v1345, 1.442695
    %v1364 = vpow.pop %v1363
    %v1365 = vmul.f32 %v1346, 1.442695
    %v1366 = vpow.pop %v1365
    %v1367 = vmul.f32 %v1347, 1.442695
    %v1368 = vpow.pop %v1367
    %v1369 = vmul.f32 %v1348, 1.442695
    %v1370 = vpow.pop %v1369
    %v1371 = vmul.f32 %v1349, 1.442695
    %v1372 = vpow.pop %v1371
    %v1373 = vmul.f32 %v1350, 1.442695
    %v1374 = vpow.pop %v1373
    %v1375 = vmul.f32 %v1351, 1.442695
    %v1376 = vpow.pop %v1375
    %v1377 = vmul.f32 %v1352, 1.442695
    %v1378 = vpow.pop %v1377
    %v1379 = vmul.f32 %v1353, 1.442695
    %v1380 = vpow.pop %v1379
    %v1381 = vmul.f32 %v1354, 1.442695
    %v1382 = vpow.pop %v1381
    %v1383 = vmul.f32 %v1355, 1.442695
    %v1384 = vpow.pop %v1383
    %v1385 = vmul.f32 %v1356, 1.442695
    %v1386 = vpow.pop %v1385
    %v1387 = vmul.f32 %v1357, 1.442695
    %v1388 = vpow.pop %v1387
    %v1389 = vmul.f32 %v1358, 1.442695
    %v1390 = vpow.pop %v1389
    %v1391 = vadd.f32 %v1360, 1.0
    %v1392 = vadd.f32 %v1362, 1.0
    %v1393 = vadd.f32 %v1364, 1.0
    %v1394 = vadd.f32 %v1366, 1.0
    %v1395 = vadd.f32 %v1368, 1.0
    %v1396 = vadd.f32 %v1370, 1.0
    %v1397 = vadd.f32 %v1372, 1.0
    %v1398 = vadd.f32 %v1374, 1.0
    %v1399 = vadd.f32 %v1376, 1.0
    %v1400 = vadd.f32 %v1378, 1.0
    %v1401 = vadd.f32 %v1380, 1.0
    %v1402 = vadd.f32 %v1382, 1.0
    %v1403 = vadd.f32 %v1384, 1.0
    %v1404 = vadd.f32 %v1386, 1.0
    %v1405 = vadd.f32 %v1388, 1.0
    %v1406 = vadd.f32 %v1390, 1.0
    %v1407 = vrcp.pop %v1391
    %v1408 = vmul.f32 1.0, %v1407
    %v1409 = vrcp.pop %v1392
    %v1410 = vmul.f32 1.0, %v1409
    %v1411 = vrcp.pop %v1393
    %v1412 = vmul.f32 1.0, %v1411
    %v1413 = vrcp.pop %v1394
    %v1414 = vmul.f32 1.0, %v1413
    %v1415 = vrcp.pop %v1395
    %v1416 = vmul.f32 1.0, %v1415
    %v1417 = vrcp.pop %v1396
    %v1418 = vmul.f32 1.0, %v1417
    %v1419 = vrcp.pop %v1397
    %v1420 = vmul.f32 1.0, %v1419
    %v1421 = vrcp.pop %v1398
    %v1422 = vmul.f32 1.0, %v1421
    %v1423 = vrcp.pop %v1399
    %v1424 = vmul.f32 1.0, %v1423
    %v1425 = vrcp.pop %v1400
    %v1426 = vmul.f32 1.0, %v1425
    %v1427 = vrcp.pop %v1401
    %v1428 = vmul.f32 1.0, %v1427
    %v1429 = vrcp.pop %v1402
    %v1430 = vmul.f32 1.0, %v1429
    %v1431 = vrcp.pop %v1403
    %v1432 = vmul.f32 1.0, %v1431
    %v1433 = vrcp.pop %v1404
    %v1434 = vmul.f32 1.0, %v1433
    %v1435 = vrcp.pop %v1405
    %v1436 = vmul.f32 1.0, %v1435
    %v1437 = vrcp.pop %v1406
    %v1438 = vmul.f32 1.0, %v1437
    %v1439 = vmul.f32 %v1424, 2.0
    %v1440 = vmul.f32 %v1426, 2.0
    %v1441 = vmul.f32 %v1428, 2.0
    %v1442 = vmul.f32 %v1430, 2.0
    %v1443 = vsub.f32 %v1439, 1.0
    %v1444 = vsub.f32 %v1440, 1.0
    %v1445 = vsub.f32 %v1441, 1.0
    %v1446 = vsub.f32 %v1442, 1.0
    %v1447 = vmul.f32 %v1416, %v1149
    %v1448 = vmul.f32 %v1418, %v1150
    %v1449 = vmul.f32 %v1420, %v1151
    %v1450 = vmul.f32 %v1422, %v1152
    %v1451 = vmul.f32 %v1408, %v1443
    %v1452 = vmul.f32 %v1410, %v1444
    %v1453 = vmul.f32 %v1412, %v1445
    %v1454 = vmul.f32 %v1414, %v1446
    %v1455 = vadd.f32 %v1447, %v1451
    %v1456 = vadd.f32 %v1448, %v1452
    %v1457 = vadd.f32 %v1449, %v1453
    %v1458 = vadd.f32 %v1450, %v1454
    %v1459 = vtanh.pop %v1455
    %v1460 = vtanh.pop %v1456
    %v1461 = vtanh.pop %v1457
    %v1462 = vtanh.pop %v1458
    %v1463 = vmul.f32 %v1432, %v1459
    %v1464 = vmul.f32 %v1434, %v1460
    %v1465 = vmul.f32 %v1436, %v1461
    %v1466 = vmul.f32 %v1438, %v1462
    %v1467 = vld [vmem:[%s0 + $0x4] sm:$0x1]
    %v1468 = vlaneseq
    %v1469 = vshrl.u32 %v1468, 7
    %v1470 = vsub.s32 0, %v1469
    %v1471 = vrot.slane %v1467, %v1470
    %v1472 = vmul.f32 %v54, %v1471
    %v1473 = vmul.f32 %v59, %v1471
    %v1474 = vmul.f32 %v64, %v1471
    %v1475 = vmul.f32 %v69, %v1471
    %v1476 = vmul.f32 %v74, %v1471
    %v1477 = vmul.f32 %v79, %v1471
    %v1478 = vmul.f32 %v84, %v1471
    %v1479 = vmul.f32 %v89, %v1471
    %v1480 = vmul.f32 %v94, %v1471
    %v1481 = vmul.f32 %v99, %v1471
    %v1482 = vmul.f32 %v104, %v1471
    %v1483 = vmul.f32 %v109, %v1471
    %v1484 = vmul.f32 %v114, %v1471
    %v1485 = vmul.f32 %v119, %v1471
    %v1486 = vmul.f32 %v124, %v1471
    %v1487 = vmul.f32 %v129, %v1471
    %1488 = vmatprep.subr.mxu0 0.0
    %1489 = vmatpush1.msra.mxu0 0.0
    %1490 = vmatprep.subr.mxu0 0.0
    %1491 = vmatpush1.msra.mxu0 0.0
    %1492 = vmatprep.subr.mxu0 0.0
    %1493 = vmatpush1.msra.mxu0 0.0
    %1494 = vmatprep.subr.mxu0 0.0
    %1495 = vmatpush1.msra.mxu0 0.0
    %1496 = vmatprep.subr.mxu0 0.0
    %1497 = vmatpush1.msra.mxu0 0.0
    %1498 = vmatprep.subr.mxu0 0.0
    %1499 = vmatpush1.msra.mxu0 0.0
    %1500 = vmatprep.subr.mxu0 0.0
    %1501 = vmatpush1.msra.mxu0 0.0
    %1502 = vmatprep.subr.mxu0 0.0
    %1503 = vmatpush1.msra.mxu0 0.0
    %1504 = vmatprep.subr.mxu0 0.0
    %1505 = vmatpush1.msra.mxu0 0.0
    %1506 = vmatprep.subr.mxu0 0.0
    %1507 = vmatpush1.msra.mxu0 0.0
    %1508 = vmatprep.subr.mxu0 0.0
    %1509 = vmatpush1.msra.mxu0 0.0
    %1510 = vmatprep.subr.mxu0 0.0
    %1511 = vmatpush1.msra.mxu0 0.0
    %1512 = vmatprep.subr.mxu0 0.0
    %1513 = vmatpush1.msra.mxu0 %v1466
    %1514 = vmatprep.subr.mxu0 0.0
    %1515 = vmatpush1.msra.mxu0 %v1465
    %1516 = vmatprep.subr.mxu0 0.0
    %1517 = vmatpush1.msra.mxu0 %v1464
    %1518 = vmatprep.subr.mxu0 0.0
    %1519 = vmatpush1.msra.mxu0 %v1463
    %1520 = vmatprep.subr.mxu0 0.0
    %1521 = vmatpush2.msra.mxu0 0.0
    %1522 = vmatprep.subr.mxu0 0.0
    %1523 = vmatpush2.msra.mxu0 0.0
    %1524 = vmatprep.subr.mxu0 0.0
    %1525 = vmatpush2.msra.mxu0 0.0
    %1526 = vmatprep.subr.mxu0 0.0
    %1527 = vmatpush2.msra.mxu0 0.0
    %1528 = vmatprep.subr.mxu0 0.0
    %1529 = vmatpush2.msra.mxu0 0.0
    %1530 = vmatprep.subr.mxu0 0.0
    %1531 = vmatpush2.msra.mxu0 0.0
    %1532 = vmatprep.subr.mxu0 0.0
    %1533 = vmatpush2.msra.mxu0 0.0
    %1534 = vmatprep.subr.mxu0 0.0
    %1535 = vmatpush2.msra.mxu0 0.0
    %1536 = vmatprep.subr.mxu0 0.0
    %1537 = vmatpush2.msra.mxu0 0.0
    %1538 = vmatprep.subr.mxu0 0.0
    %1539 = vmatpush2.msra.mxu0 0.0
    %1540 = vmatprep.subr.mxu0 0.0
    %1541 = vmatpush2.msra.mxu0 0.0
    %1542 = vmatprep.subr.mxu0 0.0
    %1543 = vmatpush2.msra.mxu0 0.0
    %1544 = vmatprep.subr.mxu0 0.0
    %1545 = vmatpush2.msra.mxu0 0.0
    %1546 = vmatprep.subr.mxu0 0.0
    %1547 = vmatpush2.msra.mxu0 0.0
    %1548 = vmatprep.subr.mxu0 0.0
    %1549 = vmatpush2.msra.mxu0 0.0
    %1550 = vmatprep.subr.mxu0 0.0
    %1551 = vmatpush2.msra.mxu0 0.0
    %1552 = vmatprep.mubr.f32.mxu0 0.0
    %1553 = vmatmul.mubr.f32.gmra.mxu0 %v153
    %v1554 = vpop.f32.mrf.mxu0
    %v1555 = vadd.f32 %v1472, %v1554
    %v1556 = vpop.f32.mrf.mxu0
    %1557 = vmatprep.mubr.f32.mxu0 0.0
    %1558 = vmatmul.mubr.f32.gmra.mxu0 %v156
    %v1559 = vpop.f32.mrf.mxu0
    %v1560 = vadd.f32 %v1473, %v1559
    %v1561 = vpop.f32.mrf.mxu0
    %1562 = vmatprep.mubr.f32.mxu0 0.0
    %1563 = vmatmul.mubr.f32.gmra.mxu0 %v159
    %v1564 = vpop.f32.mrf.mxu0
    %v1565 = vadd.f32 %v1474, %v1564
    %v1566 = vpop.f32.mrf.mxu0
    %1567 = vmatprep.mubr.f32.mxu0 0.0
    %1568 = vmatmul.mubr.f32.gmra.mxu0 %v162
    %v1569 = vpop.f32.mrf.mxu0
    %v1570 = vadd.f32 %v1475, %v1569
    %v1571 = vpop.f32.mrf.mxu0
    %1572 = vmatprep.mubr.f32.mxu0 0.0
    %1573 = vmatmul.mubr.f32.gmra.mxu0 %v165
    %v1574 = vpop.f32.mrf.mxu0
    %v1575 = vadd.f32 %v1476, %v1574
    %v1576 = vpop.f32.mrf.mxu0
    %1577 = vmatprep.mubr.f32.mxu0 0.0
    %1578 = vmatmul.mubr.f32.gmra.mxu0 %v168
    %v1579 = vpop.f32.mrf.mxu0
    %v1580 = vadd.f32 %v1477, %v1579
    %v1581 = vpop.f32.mrf.mxu0
    %1582 = vmatprep.mubr.f32.mxu0 0.0
    %1583 = vmatmul.mubr.f32.gmra.mxu0 %v171
    %v1584 = vpop.f32.mrf.mxu0
    %v1585 = vadd.f32 %v1478, %v1584
    %v1586 = vpop.f32.mrf.mxu0
    %1587 = vmatprep.mubr.f32.mxu0 0.0
    %1588 = vmatmul.mubr.f32.gmra.mxu0 %v174
    %v1589 = vpop.f32.mrf.mxu0
    %v1590 = vadd.f32 %v1479, %v1589
    %v1591 = vpop.f32.mrf.mxu0
    %1592 = vmatprep.mubr.f32.mxu0 0.0
    %1593 = vmatmul.mubr.f32.gmra.mxu0 %v177
    %v1594 = vpop.f32.mrf.mxu0
    %v1595 = vadd.f32 %v1480, %v1594
    %v1596 = vpop.f32.mrf.mxu0
    %1597 = vmatprep.mubr.f32.mxu0 0.0
    %1598 = vmatmul.mubr.f32.gmra.mxu0 %v180
    %v1599 = vpop.f32.mrf.mxu0
    %v1600 = vadd.f32 %v1481, %v1599
    %v1601 = vpop.f32.mrf.mxu0
    %1602 = vmatprep.mubr.f32.mxu0 0.0
    %1603 = vmatmul.mubr.f32.gmra.mxu0 %v183
    %v1604 = vpop.f32.mrf.mxu0
    %v1605 = vadd.f32 %v1482, %v1604
    %v1606 = vpop.f32.mrf.mxu0
    %1607 = vmatprep.mubr.f32.mxu0 0.0
    %1608 = vmatmul.mubr.f32.gmra.mxu0 %v186
    %v1609 = vpop.f32.mrf.mxu0
    %v1610 = vadd.f32 %v1483, %v1609
    %v1611 = vpop.f32.mrf.mxu0
    %1612 = vmatprep.mubr.f32.mxu0 0.0
    %1613 = vmatmul.mubr.f32.gmra.mxu0 %v189
    %v1614 = vpop.f32.mrf.mxu0
    %v1615 = vadd.f32 %v1484, %v1614
    %v1616 = vpop.f32.mrf.mxu0
    %1617 = vmatprep.mubr.f32.mxu0 0.0
    %1618 = vmatmul.mubr.f32.gmra.mxu0 %v192
    %v1619 = vpop.f32.mrf.mxu0
    %v1620 = vadd.f32 %v1485, %v1619
    %v1621 = vpop.f32.mrf.mxu0
    %1622 = vmatprep.mubr.f32.mxu0 0.0
    %1623 = vmatmul.mubr.f32.gmra.mxu0 %v195
    %v1624 = vpop.f32.mrf.mxu0
    %v1625 = vadd.f32 %v1486, %v1624
    %v1626 = vpop.f32.mrf.mxu0
    %1627 = vmatprep.mubr.f32.mxu0 0.0
    %1628 = vmatmul.mubr.f32.gmra.mxu0 %v198
    %v1629 = vpop.f32.mrf.mxu0
    %v1630 = vadd.f32 %v1487, %v1629
    %v1631 = vpop.f32.mrf.mxu0
    %1632 = vdwg.mxu0
    %v1633 = vadd.f32 %v1555, %v347
    %v1634 = vadd.f32 %v1560, %v351
    %v1635 = vadd.f32 %v1565, %v355
    %v1636 = vadd.f32 %v1570, %v359
    %v1637 = vadd.f32 %v1575, %v363
    %v1638 = vadd.f32 %v1580, %v367
    %v1639 = vadd.f32 %v1585, %v371
    %v1640 = vadd.f32 %v1590, %v375
    %v1641 = vadd.f32 %v1595, %v379
    %v1642 = vadd.f32 %v1600, %v383
    %v1643 = vadd.f32 %v1605, %v387
    %v1644 = vadd.f32 %v1610, %v391
    %v1645 = vadd.f32 %v1615, %v395
    %v1646 = vadd.f32 %v1620, %v399
    %v1647 = vadd.f32 %v1625, %v403
    %v1648 = vadd.f32 %v1630, %v407
    %v1649 = vxor.u32 %v1633, 2147483648
    %v1650 = vxor.u32 %v1634, 2147483648
    %v1651 = vxor.u32 %v1635, 2147483648
    %v1652 = vxor.u32 %v1636, 2147483648
    %v1653 = vxor.u32 %v1637, 2147483648
    %v1654 = vxor.u32 %v1638, 2147483648
    %v1655 = vxor.u32 %v1639, 2147483648
    %v1656 = vxor.u32 %v1640, 2147483648
    %v1657 = vxor.u32 %v1641, 2147483648
    %v1658 = vxor.u32 %v1642, 2147483648
    %v1659 = vxor.u32 %v1643, 2147483648
    %v1660 = vxor.u32 %v1644, 2147483648
    %v1661 = vxor.u32 %v1645, 2147483648
    %v1662 = vxor.u32 %v1646, 2147483648
    %v1663 = vxor.u32 %v1647, 2147483648
    %v1664 = vxor.u32 %v1648, 2147483648
    %v1665 = vmul.f32 %v1649, 1.442695
    %v1666 = vpow.pop %v1665
    %v1667 = vmul.f32 %v1650, 1.442695
    %v1668 = vpow.pop %v1667
    %v1669 = vmul.f32 %v1651, 1.442695
    %v1670 = vpow.pop %v1669
    %v1671 = vmul.f32 %v1652, 1.442695
    %v1672 = vpow.pop %v1671
    %v1673 = vmul.f32 %v1653, 1.442695
    %v1674 = vpow.pop %v1673
    %v1675 = vmul.f32 %v1654, 1.442695
    %v1676 = vpow.pop %v1675
    %v1677 = vmul.f32 %v1655, 1.442695
    %v1678 = vpow.pop %v1677
    %v1679 = vmul.f32 %v1656, 1.442695
    %v1680 = vpow.pop %v1679
    %v1681 = vmul.f32 %v1657, 1.442695
    %v1682 = vpow.pop %v1681
    %v1683 = vmul.f32 %v1658, 1.442695
    %v1684 = vpow.pop %v1683
    %v1685 = vmul.f32 %v1659, 1.442695
    %v1686 = vpow.pop %v1685
    %v1687 = vmul.f32 %v1660, 1.442695
    %v1688 = vpow.pop %v1687
    %v1689 = vmul.f32 %v1661, 1.442695
    %v1690 = vpow.pop %v1689
    %v1691 = vmul.f32 %v1662, 1.442695
    %v1692 = vpow.pop %v1691
    %v1693 = vmul.f32 %v1663, 1.442695
    %v1694 = vpow.pop %v1693
    %v1695 = vmul.f32 %v1664, 1.442695
    %v1696 = vpow.pop %v1695
    %v1697 = vadd.f32 %v1666, 1.0
    %v1698 = vadd.f32 %v1668, 1.0
    %v1699 = vadd.f32 %v1670, 1.0
    %v1700 = vadd.f32 %v1672, 1.0
    %v1701 = vadd.f32 %v1674, 1.0
    %v1702 = vadd.f32 %v1676, 1.0
    %v1703 = vadd.f32 %v1678, 1.0
    %v1704 = vadd.f32 %v1680, 1.0
    %v1705 = vadd.f32 %v1682, 1.0
    %v1706 = vadd.f32 %v1684, 1.0
    %v1707 = vadd.f32 %v1686, 1.0
    %v1708 = vadd.f32 %v1688, 1.0
    %v1709 = vadd.f32 %v1690, 1.0
    %v1710 = vadd.f32 %v1692, 1.0
    %v1711 = vadd.f32 %v1694, 1.0
    %v1712 = vadd.f32 %v1696, 1.0
    %v1713 = vrcp.pop %v1697
    %v1714 = vmul.f32 1.0, %v1713
    %v1715 = vrcp.pop %v1698
    %v1716 = vmul.f32 1.0, %v1715
    %v1717 = vrcp.pop %v1699
    %v1718 = vmul.f32 1.0, %v1717
    %v1719 = vrcp.pop %v1700
    %v1720 = vmul.f32 1.0, %v1719
    %v1721 = vrcp.pop %v1701
    %v1722 = vmul.f32 1.0, %v1721
    %v1723 = vrcp.pop %v1702
    %v1724 = vmul.f32 1.0, %v1723
    %v1725 = vrcp.pop %v1703
    %v1726 = vmul.f32 1.0, %v1725
    %v1727 = vrcp.pop %v1704
    %v1728 = vmul.f32 1.0, %v1727
    %v1729 = vrcp.pop %v1705
    %v1730 = vmul.f32 1.0, %v1729
    %v1731 = vrcp.pop %v1706
    %v1732 = vmul.f32 1.0, %v1731
    %v1733 = vrcp.pop %v1707
    %v1734 = vmul.f32 1.0, %v1733
    %v1735 = vrcp.pop %v1708
    %v1736 = vmul.f32 1.0, %v1735
    %v1737 = vrcp.pop %v1709
    %v1738 = vmul.f32 1.0, %v1737
    %v1739 = vrcp.pop %v1710
    %v1740 = vmul.f32 1.0, %v1739
    %v1741 = vrcp.pop %v1711
    %v1742 = vmul.f32 1.0, %v1741
    %v1743 = vrcp.pop %v1712
    %v1744 = vmul.f32 1.0, %v1743
    %v1745 = vmul.f32 %v1730, 2.0
    %v1746 = vmul.f32 %v1732, 2.0
    %v1747 = vmul.f32 %v1734, 2.0
    %v1748 = vmul.f32 %v1736, 2.0
    %v1749 = vsub.f32 %v1745, 1.0
    %v1750 = vsub.f32 %v1746, 1.0
    %v1751 = vsub.f32 %v1747, 1.0
    %v1752 = vsub.f32 %v1748, 1.0
    %v1753 = vmul.f32 %v1722, %v1455
    %v1754 = vmul.f32 %v1724, %v1456
    %v1755 = vmul.f32 %v1726, %v1457
    %v1756 = vmul.f32 %v1728, %v1458
    %v1757 = vmul.f32 %v1714, %v1749
    %v1758 = vmul.f32 %v1716, %v1750
    %v1759 = vmul.f32 %v1718, %v1751
    %v1760 = vmul.f32 %v1720, %v1752
    %v1761 = vadd.f32 %v1753, %v1757
    %v1762 = vadd.f32 %v1754, %v1758
    %v1763 = vadd.f32 %v1755, %v1759
    %v1764 = vadd.f32 %v1756, %v1760
    %v1765 = vtanh.pop %v1761
    %v1766 = vtanh.pop %v1762
    %v1767 = vtanh.pop %v1763
    %v1768 = vtanh.pop %v1764
    %v1769 = vmul.f32 %v1738, %v1765
    %v1770 = vmul.f32 %v1740, %v1766
    %v1771 = vmul.f32 %v1742, %v1767
    %v1772 = vmul.f32 %v1744, %v1768
    %v1773 = vld [vmem:[%s0 + $0x5] sm:$0x1]
    %v1774 = vlaneseq
    %v1775 = vshrl.u32 %v1774, 7
    %v1776 = vsub.s32 0, %v1775
    %v1777 = vrot.slane %v1773, %v1776
    %v1778 = vmul.f32 %v54, %v1777
    %v1779 = vmul.f32 %v59, %v1777
    %v1780 = vmul.f32 %v64, %v1777
    %v1781 = vmul.f32 %v69, %v1777
    %v1782 = vmul.f32 %v74, %v1777
    %v1783 = vmul.f32 %v79, %v1777
    %v1784 = vmul.f32 %v84, %v1777
    %v1785 = vmul.f32 %v89, %v1777
    %v1786 = vmul.f32 %v94, %v1777
    %v1787 = vmul.f32 %v99, %v1777
    %v1788 = vmul.f32 %v104, %v1777
    %v1789 = vmul.f32 %v109, %v1777
    %v1790 = vmul.f32 %v114, %v1777
    %v1791 = vmul.f32 %v119, %v1777
    %v1792 = vmul.f32 %v124, %v1777
    %v1793 = vmul.f32 %v129, %v1777
    %1794 = vmatprep.subr.mxu0 0.0
    %1795 = vmatpush1.msra.mxu0 0.0
    %1796 = vmatprep.subr.mxu0 0.0
    %1797 = vmatpush1.msra.mxu0 0.0
    %1798 = vmatprep.subr.mxu0 0.0
    %1799 = vmatpush1.msra.mxu0 0.0
    %1800 = vmatprep.subr.mxu0 0.0
    %1801 = vmatpush1.msra.mxu0 0.0
    %1802 = vmatprep.subr.mxu0 0.0
    %1803 = vmatpush1.msra.mxu0 0.0
    %1804 = vmatprep.subr.mxu0 0.0
    %1805 = vmatpush1.msra.mxu0 0.0
    %1806 = vmatprep.subr.mxu0 0.0
    %1807 = vmatpush1.msra.mxu0 0.0
    %1808 = vmatprep.subr.mxu0 0.0
    %1809 = vmatpush1.msra.mxu0 0.0
    %1810 = vmatprep.subr.mxu0 0.0
    %1811 = vmatpush1.msra.mxu0 0.0
    %1812 = vmatprep.subr.mxu0 0.0
    %1813 = vmatpush1.msra.mxu0 0.0
    %1814 = vmatprep.subr.mxu0 0.0
    %1815 = vmatpush1.msra.mxu0 0.0
    %1816 = vmatprep.subr.mxu0 0.0
    %1817 = vmatpush1.msra.mxu0 0.0
    %1818 = vmatprep.subr.mxu0 0.0
    %1819 = vmatpush1.msra.mxu0 %v1772
    %1820 = vmatprep.subr.mxu0 0.0
    %1821 = vmatpush1.msra.mxu0 %v1771
    %1822 = vmatprep.subr.mxu0 0.0
    %1823 = vmatpush1.msra.mxu0 %v1770
    %1824 = vmatprep.subr.mxu0 0.0
    %1825 = vmatpush1.msra.mxu0 %v1769
    %1826 = vmatprep.subr.mxu0 0.0
    %1827 = vmatpush2.msra.mxu0 0.0
    %1828 = vmatprep.subr.mxu0 0.0
    %1829 = vmatpush2.msra.mxu0 0.0
    %1830 = vmatprep.subr.mxu0 0.0
    %1831 = vmatpush2.msra.mxu0 0.0
    %1832 = vmatprep.subr.mxu0 0.0
    %1833 = vmatpush2.msra.mxu0 0.0
    %1834 = vmatprep.subr.mxu0 0.0
    %1835 = vmatpush2.msra.mxu0 0.0
    %1836 = vmatprep.subr.mxu0 0.0
    %1837 = vmatpush2.msra.mxu0 0.0
    %1838 = vmatprep.subr.mxu0 0.0
    %1839 = vmatpush2.msra.mxu0 0.0
    %1840 = vmatprep.subr.mxu0 0.0
    %1841 = vmatpush2.msra.mxu0 0.0
    %1842 = vmatprep.subr.mxu0 0.0
    %1843 = vmatpush2.msra.mxu0 0.0
    %1844 = vmatprep.subr.mxu0 0.0
    %1845 = vmatpush2.msra.mxu0 0.0
    %1846 = vmatprep.subr.mxu0 0.0
    %1847 = vmatpush2.msra.mxu0 0.0
    %1848 = vmatprep.subr.mxu0 0.0
    %1849 = vmatpush2.msra.mxu0 0.0
    %1850 = vmatprep.subr.mxu0 0.0
    %1851 = vmatpush2.msra.mxu0 0.0
    %1852 = vmatprep.subr.mxu0 0.0
    %1853 = vmatpush2.msra.mxu0 0.0
    %1854 = vmatprep.subr.mxu0 0.0
    %1855 = vmatpush2.msra.mxu0 0.0
    %1856 = vmatprep.subr.mxu0 0.0
    %1857 = vmatpush2.msra.mxu0 0.0
    %1858 = vmatprep.mubr.f32.mxu0 0.0
    %1859 = vmatmul.mubr.f32.gmra.mxu0 %v153
    %v1860 = vpop.f32.mrf.mxu0
    %v1861 = vadd.f32 %v1778, %v1860
    %v1862 = vpop.f32.mrf.mxu0
    %1863 = vmatprep.mubr.f32.mxu0 0.0
    %1864 = vmatmul.mubr.f32.gmra.mxu0 %v156
    %v1865 = vpop.f32.mrf.mxu0
    %v1866 = vadd.f32 %v1779, %v1865
    %v1867 = vpop.f32.mrf.mxu0
    %1868 = vmatprep.mubr.f32.mxu0 0.0
    %1869 = vmatmul.mubr.f32.gmra.mxu0 %v159
    %v1870 = vpop.f32.mrf.mxu0
    %v1871 = vadd.f32 %v1780, %v1870
    %v1872 = vpop.f32.mrf.mxu0
    %1873 = vmatprep.mubr.f32.mxu0 0.0
    %1874 = vmatmul.mubr.f32.gmra.mxu0 %v162
    %v1875 = vpop.f32.mrf.mxu0
    %v1876 = vadd.f32 %v1781, %v1875
    %v1877 = vpop.f32.mrf.mxu0
    %1878 = vmatprep.mubr.f32.mxu0 0.0
    %1879 = vmatmul.mubr.f32.gmra.mxu0 %v165
    %v1880 = vpop.f32.mrf.mxu0
    %v1881 = vadd.f32 %v1782, %v1880
    %v1882 = vpop.f32.mrf.mxu0
    %1883 = vmatprep.mubr.f32.mxu0 0.0
    %1884 = vmatmul.mubr.f32.gmra.mxu0 %v168
    %v1885 = vpop.f32.mrf.mxu0
    %v1886 = vadd.f32 %v1783, %v1885
    %v1887 = vpop.f32.mrf.mxu0
    %1888 = vmatprep.mubr.f32.mxu0 0.0
    %1889 = vmatmul.mubr.f32.gmra.mxu0 %v171
    %v1890 = vpop.f32.mrf.mxu0
    %v1891 = vadd.f32 %v1784, %v1890
    %v1892 = vpop.f32.mrf.mxu0
    %1893 = vmatprep.mubr.f32.mxu0 0.0
    %1894 = vmatmul.mubr.f32.gmra.mxu0 %v174
    %v1895 = vpop.f32.mrf.mxu0
    %v1896 = vadd.f32 %v1785, %v1895
    %v1897 = vpop.f32.mrf.mxu0
    %1898 = vmatprep.mubr.f32.mxu0 0.0
    %1899 = vmatmul.mubr.f32.gmra.mxu0 %v177
    %v1900 = vpop.f32.mrf.mxu0
    %v1901 = vadd.f32 %v1786, %v1900
    %v1902 = vpop.f32.mrf.mxu0
    %1903 = vmatprep.mubr.f32.mxu0 0.0
    %1904 = vmatmul.mubr.f32.gmra.mxu0 %v180
    %v1905 = vpop.f32.mrf.mxu0
    %v1906 = vadd.f32 %v1787, %v1905
    %v1907 = vpop.f32.mrf.mxu0
    %1908 = vmatprep.mubr.f32.mxu0 0.0
    %1909 = vmatmul.mubr.f32.gmra.mxu0 %v183
    %v1910 = vpop.f32.mrf.mxu0
    %v1911 = vadd.f32 %v1788, %v1910
    %v1912 = vpop.f32.mrf.mxu0
    %1913 = vmatprep.mubr.f32.mxu0 0.0
    %1914 = vmatmul.mubr.f32.gmra.mxu0 %v186
    %v1915 = vpop.f32.mrf.mxu0
    %v1916 = vadd.f32 %v1789, %v1915
    %v1917 = vpop.f32.mrf.mxu0
    %1918 = vmatprep.mubr.f32.mxu0 0.0
    %1919 = vmatmul.mubr.f32.gmra.mxu0 %v189
    %v1920 = vpop.f32.mrf.mxu0
    %v1921 = vadd.f32 %v1790, %v1920
    %v1922 = vpop.f32.mrf.mxu0
    %1923 = vmatprep.mubr.f32.mxu0 0.0
    %1924 = vmatmul.mubr.f32.gmra.mxu0 %v192
    %v1925 = vpop.f32.mrf.mxu0
    %v1926 = vadd.f32 %v1791, %v1925
    %v1927 = vpop.f32.mrf.mxu0
    %1928 = vmatprep.mubr.f32.mxu0 0.0
    %1929 = vmatmul.mubr.f32.gmra.mxu0 %v195
    %v1930 = vpop.f32.mrf.mxu0
    %v1931 = vadd.f32 %v1792, %v1930
    %v1932 = vpop.f32.mrf.mxu0
    %1933 = vmatprep.mubr.f32.mxu0 0.0
    %1934 = vmatmul.mubr.f32.gmra.mxu0 %v198
    %v1935 = vpop.f32.mrf.mxu0
    %v1936 = vadd.f32 %v1793, %v1935
    %v1937 = vpop.f32.mrf.mxu0
    %1938 = vdwg.mxu0
    %v1939 = vadd.f32 %v1861, %v347
    %v1940 = vadd.f32 %v1866, %v351
    %v1941 = vadd.f32 %v1871, %v355
    %v1942 = vadd.f32 %v1876, %v359
    %v1943 = vadd.f32 %v1881, %v363
    %v1944 = vadd.f32 %v1886, %v367
    %v1945 = vadd.f32 %v1891, %v371
    %v1946 = vadd.f32 %v1896, %v375
    %v1947 = vadd.f32 %v1901, %v379
    %v1948 = vadd.f32 %v1906, %v383
    %v1949 = vadd.f32 %v1911, %v387
    %v1950 = vadd.f32 %v1916, %v391
    %v1951 = vadd.f32 %v1921, %v395
    %v1952 = vadd.f32 %v1926, %v399
    %v1953 = vadd.f32 %v1931, %v403
    %v1954 = vadd.f32 %v1936, %v407
    %v1955 = vxor.u32 %v1939, 2147483648
    %v1956 = vxor.u32 %v1940, 2147483648
    %v1957 = vxor.u32 %v1941, 2147483648
    %v1958 = vxor.u32 %v1942, 2147483648
    %v1959 = vxor.u32 %v1943, 2147483648
    %v1960 = vxor.u32 %v1944, 2147483648
    %v1961 = vxor.u32 %v1945, 2147483648
    %v1962 = vxor.u32 %v1946, 2147483648
    %v1963 = vxor.u32 %v1947, 2147483648
    %v1964 = vxor.u32 %v1948, 2147483648
    %v1965 = vxor.u32 %v1949, 2147483648
    %v1966 = vxor.u32 %v1950, 2147483648
    %v1967 = vxor.u32 %v1951, 2147483648
    %v1968 = vxor.u32 %v1952, 2147483648
    %v1969 = vxor.u32 %v1953, 2147483648
    %v1970 = vxor.u32 %v1954, 2147483648
    %v1971 = vmul.f32 %v1955, 1.442695
    %v1972 = vpow.pop %v1971
    %v1973 = vmul.f32 %v1956, 1.442695
    %v1974 = vpow.pop %v1973
    %v1975 = vmul.f32 %v1957, 1.442695
    %v1976 = vpow.pop %v1975
    %v1977 = vmul.f32 %v1958, 1.442695
    %v1978 = vpow.pop %v1977
    %v1979 = vmul.f32 %v1959, 1.442695
    %v1980 = vpow.pop %v1979
    %v1981 = vmul.f32 %v1960, 1.442695
    %v1982 = vpow.pop %v1981
    %v1983 = vmul.f32 %v1961, 1.442695
    %v1984 = vpow.pop %v1983
    %v1985 = vmul.f32 %v1962, 1.442695
    %v1986 = vpow.pop %v1985
    %v1987 = vmul.f32 %v1963, 1.442695
    %v1988 = vpow.pop %v1987
    %v1989 = vmul.f32 %v1964, 1.442695
    %v1990 = vpow.pop %v1989
    %v1991 = vmul.f32 %v1965, 1.442695
    %v1992 = vpow.pop %v1991
    %v1993 = vmul.f32 %v1966, 1.442695
    %v1994 = vpow.pop %v1993
    %v1995 = vmul.f32 %v1967, 1.442695
    %v1996 = vpow.pop %v1995
    %v1997 = vmul.f32 %v1968, 1.442695
    %v1998 = vpow.pop %v1997
    %v1999 = vmul.f32 %v1969, 1.442695
    %v2000 = vpow.pop %v1999
    %v2001 = vmul.f32 %v1970, 1.442695
    %v2002 = vpow.pop %v2001
    %v2003 = vadd.f32 %v1972, 1.0
    %v2004 = vadd.f32 %v1974, 1.0
    %v2005 = vadd.f32 %v1976, 1.0
    %v2006 = vadd.f32 %v1978, 1.0
    %v2007 = vadd.f32 %v1980, 1.0
    %v2008 = vadd.f32 %v1982, 1.0
    %v2009 = vadd.f32 %v1984, 1.0
    %v2010 = vadd.f32 %v1986, 1.0
    %v2011 = vadd.f32 %v1988, 1.0
    %v2012 = vadd.f32 %v1990, 1.0
    %v2013 = vadd.f32 %v1992, 1.0
    %v2014 = vadd.f32 %v1994, 1.0
    %v2015 = vadd.f32 %v1996, 1.0
    %v2016 = vadd.f32 %v1998, 1.0
    %v2017 = vadd.f32 %v2000, 1.0
    %v2018 = vadd.f32 %v2002, 1.0
    %v2019 = vrcp.pop %v2003
    %v2020 = vmul.f32 1.0, %v2019
    %v2021 = vrcp.pop %v2004
    %v2022 = vmul.f32 1.0, %v2021
    %v2023 = vrcp.pop %v2005
    %v2024 = vmul.f32 1.0, %v2023
    %v2025 = vrcp.pop %v2006
    %v2026 = vmul.f32 1.0, %v2025
    %v2027 = vrcp.pop %v2007
    %v2028 = vmul.f32 1.0, %v2027
    %v2029 = vrcp.pop %v2008
    %v2030 = vmul.f32 1.0, %v2029
    %v2031 = vrcp.pop %v2009
    %v2032 = vmul.f32 1.0, %v2031
    %v2033 = vrcp.pop %v2010
    %v2034 = vmul.f32 1.0, %v2033
    %v2035 = vrcp.pop %v2011
    %v2036 = vmul.f32 1.0, %v2035
    %v2037 = vrcp.pop %v2012
    %v2038 = vmul.f32 1.0, %v2037
    %v2039 = vrcp.pop %v2013
    %v2040 = vmul.f32 1.0, %v2039
    %v2041 = vrcp.pop %v2014
    %v2042 = vmul.f32 1.0, %v2041
    %v2043 = vrcp.pop %v2015
    %v2044 = vmul.f32 1.0, %v2043
    %v2045 = vrcp.pop %v2016
    %v2046 = vmul.f32 1.0, %v2045
    %v2047 = vrcp.pop %v2017
    %v2048 = vmul.f32 1.0, %v2047
    %v2049 = vrcp.pop %v2018
    %v2050 = vmul.f32 1.0, %v2049
    %v2051 = vmul.f32 %v2036, 2.0
    %v2052 = vmul.f32 %v2038, 2.0
    %v2053 = vmul.f32 %v2040, 2.0
    %v2054 = vmul.f32 %v2042, 2.0
    %v2055 = vsub.f32 %v2051, 1.0
    %v2056 = vsub.f32 %v2052, 1.0
    %v2057 = vsub.f32 %v2053, 1.0
    %v2058 = vsub.f32 %v2054, 1.0
    %v2059 = vmul.f32 %v2028, %v1761
    %v2060 = vmul.f32 %v2030, %v1762
    %v2061 = vmul.f32 %v2032, %v1763
    %v2062 = vmul.f32 %v2034, %v1764
    %v2063 = vmul.f32 %v2020, %v2055
    %v2064 = vmul.f32 %v2022, %v2056
    %v2065 = vmul.f32 %v2024, %v2057
    %v2066 = vmul.f32 %v2026, %v2058
    %v2067 = vadd.f32 %v2059, %v2063
    %v2068 = vadd.f32 %v2060, %v2064
    %v2069 = vadd.f32 %v2061, %v2065
    %v2070 = vadd.f32 %v2062, %v2066
    %v2071 = vtanh.pop %v2067
    %v2072 = vtanh.pop %v2068
    %v2073 = vtanh.pop %v2069
    %v2074 = vtanh.pop %v2070
    %v2075 = vmul.f32 %v2044, %v2071
    %v2076 = vmul.f32 %v2046, %v2072
    %v2077 = vmul.f32 %v2048, %v2073
    %v2078 = vmul.f32 %v2050, %v2074
    %v2079 = vld [vmem:[%s0 + $0x6] sm:$0x1]
    %v2080 = vlaneseq
    %v2081 = vshrl.u32 %v2080, 7
    %v2082 = vsub.s32 0, %v2081
    %v2083 = vrot.slane %v2079, %v2082
    %v2084 = vmul.f32 %v54, %v2083
    %v2085 = vmul.f32 %v59, %v2083
    %v2086 = vmul.f32 %v64, %v2083
    %v2087 = vmul.f32 %v69, %v2083
    %v2088 = vmul.f32 %v74, %v2083
    %v2089 = vmul.f32 %v79, %v2083
    %v2090 = vmul.f32 %v84, %v2083
    %v2091 = vmul.f32 %v89, %v2083
    %v2092 = vmul.f32 %v94, %v2083
    %v2093 = vmul.f32 %v99, %v2083
    %v2094 = vmul.f32 %v104, %v2083
    %v2095 = vmul.f32 %v109, %v2083
    %v2096 = vmul.f32 %v114, %v2083
    %v2097 = vmul.f32 %v119, %v2083
    %v2098 = vmul.f32 %v124, %v2083
    %v2099 = vmul.f32 %v129, %v2083
    %2100 = vmatprep.subr.mxu0 0.0
    %2101 = vmatpush1.msra.mxu0 0.0
    %2102 = vmatprep.subr.mxu0 0.0
    %2103 = vmatpush1.msra.mxu0 0.0
    %2104 = vmatprep.subr.mxu0 0.0
    %2105 = vmatpush1.msra.mxu0 0.0
    %2106 = vmatprep.subr.mxu0 0.0
    %2107 = vmatpush1.msra.mxu0 0.0
    %2108 = vmatprep.subr.mxu0 0.0
    %2109 = vmatpush1.msra.mxu0 0.0
    %2110 = vmatprep.subr.mxu0 0.0
    %2111 = vmatpush1.msra.mxu0 0.0
    %2112 = vmatprep.subr.mxu0 0.0
    %2113 = vmatpush1.msra.mxu0 0.0
    %2114 = vmatprep.subr.mxu0 0.0
    %2115 = vmatpush1.msra.mxu0 0.0
    %2116 = vmatprep.subr.mxu0 0.0
    %2117 = vmatpush1.msra.mxu0 0.0
    %2118 = vmatprep.subr.mxu0 0.0
    %2119 = vmatpush1.msra.mxu0 0.0
    %2120 = vmatprep.subr.mxu0 0.0
    %2121 = vmatpush1.msra.mxu0 0.0
    %2122 = vmatprep.subr.mxu0 0.0
    %2123 = vmatpush1.msra.mxu0 0.0
    %2124 = vmatprep.subr.mxu0 0.0
    %2125 = vmatpush1.msra.mxu0 %v2078
    %2126 = vmatprep.subr.mxu0 0.0
    %2127 = vmatpush1.msra.mxu0 %v2077
    %2128 = vmatprep.subr.mxu0 0.0
    %2129 = vmatpush1.msra.mxu0 %v2076
    %2130 = vmatprep.subr.mxu0 0.0
    %2131 = vmatpush1.msra.mxu0 %v2075
    %2132 = vmatprep.subr.mxu0 0.0
    %2133 = vmatpush2.msra.mxu0 0.0
    %2134 = vmatprep.subr.mxu0 0.0
    %2135 = vmatpush2.msra.mxu0 0.0
    %2136 = vmatprep.subr.mxu0 0.0
    %2137 = vmatpush2.msra.mxu0 0.0
    %2138 = vmatprep.subr.mxu0 0.0
    %2139 = vmatpush2.msra.mxu0 0.0
    %2140 = vmatprep.subr.mxu0 0.0
    %2141 = vmatpush2.msra.mxu0 0.0
    %2142 = vmatprep.subr.mxu0 0.0
    %2143 = vmatpush2.msra.mxu0 0.0
    %2144 = vmatprep.subr.mxu0 0.0
    %2145 = vmatpush2.msra.mxu0 0.0
    %2146 = vmatprep.subr.mxu0 0.0
    %2147 = vmatpush2.msra.mxu0 0.0
    %2148 = vmatprep.subr.mxu0 0.0
    %2149 = vmatpush2.msra.mxu0 0.0
    %2150 = vmatprep.subr.mxu0 0.0
    %2151 = vmatpush2.msra.mxu0 0.0
    %2152 = vmatprep.subr.mxu0 0.0
    %2153 = vmatpush2.msra.mxu0 0.0
    %2154 = vmatprep.subr.mxu0 0.0
    %2155 = vmatpush2.msra.mxu0 0.0
    %2156 = vmatprep.subr.mxu0 0.0
    %2157 = vmatpush2.msra.mxu0 0.0
    %2158 = vmatprep.subr.mxu0 0.0
    %2159 = vmatpush2.msra.mxu0 0.0
    %2160 = vmatprep.subr.mxu0 0.0
    %2161 = vmatpush2.msra.mxu0 0.0
    %2162 = vmatprep.subr.mxu0 0.0
    %2163 = vmatpush2.msra.mxu0 0.0
    %2164 = vmatprep.mubr.f32.mxu0 0.0
    %2165 = vmatmul.mubr.f32.gmra.mxu0 %v153
    %v2166 = vpop.f32.mrf.mxu0
    %v2167 = vadd.f32 %v2084, %v2166
    %v2168 = vpop.f32.mrf.mxu0
    %2169 = vmatprep.mubr.f32.mxu0 0.0
    %2170 = vmatmul.mubr.f32.gmra.mxu0 %v156
    %v2171 = vpop.f32.mrf.mxu0
    %v2172 = vadd.f32 %v2085, %v2171
    %v2173 = vpop.f32.mrf.mxu0
    %2174 = vmatprep.mubr.f32.mxu0 0.0
    %2175 = vmatmul.mubr.f32.gmra.mxu0 %v159
    %v2176 = vpop.f32.mrf.mxu0
    %v2177 = vadd.f32 %v2086, %v2176
    %v2178 = vpop.f32.mrf.mxu0
    %2179 = vmatprep.mubr.f32.mxu0 0.0
    %2180 = vmatmul.mubr.f32.gmra.mxu0 %v162
    %v2181 = vpop.f32.mrf.mxu0
    %v2182 = vadd.f32 %v2087, %v2181
    %v2183 = vpop.f32.mrf.mxu0
    %2184 = vmatprep.mubr.f32.mxu0 0.0
    %2185 = vmatmul.mubr.f32.gmra.mxu0 %v165
    %v2186 = vpop.f32.mrf.mxu0
    %v2187 = vadd.f32 %v2088, %v2186
    %v2188 = vpop.f32.mrf.mxu0
    %2189 = vmatprep.mubr.f32.mxu0 0.0
    %2190 = vmatmul.mubr.f32.gmra.mxu0 %v168
    %v2191 = vpop.f32.mrf.mxu0
    %v2192 = vadd.f32 %v2089, %v2191
    %v2193 = vpop.f32.mrf.mxu0
    %2194 = vmatprep.mubr.f32.mxu0 0.0
    %2195 = vmatmul.mubr.f32.gmra.mxu0 %v171
    %v2196 = vpop.f32.mrf.mxu0
    %v2197 = vadd.f32 %v2090, %v2196
    %v2198 = vpop.f32.mrf.mxu0
    %2199 = vmatprep.mubr.f32.mxu0 0.0
    %2200 = vmatmul.mubr.f32.gmra.mxu0 %v174
    %v2201 = vpop.f32.mrf.mxu0
    %v2202 = vadd.f32 %v2091, %v2201
    %v2203 = vpop.f32.mrf.mxu0
    %2204 = vmatprep.mubr.f32.mxu0 0.0
    %2205 = vmatmul.mubr.f32.gmra.mxu0 %v177
    %v2206 = vpop.f32.mrf.mxu0
    %v2207 = vadd.f32 %v2092, %v2206
    %v2208 = vpop.f32.mrf.mxu0
    %2209 = vmatprep.mubr.f32.mxu0 0.0
    %2210 = vmatmul.mubr.f32.gmra.mxu0 %v180
    %v2211 = vpop.f32.mrf.mxu0
    %v2212 = vadd.f32 %v2093, %v2211
    %v2213 = vpop.f32.mrf.mxu0
    %2214 = vmatprep.mubr.f32.mxu0 0.0
    %2215 = vmatmul.mubr.f32.gmra.mxu0 %v183
    %v2216 = vpop.f32.mrf.mxu0
    %v2217 = vadd.f32 %v2094, %v2216
    %v2218 = vpop.f32.mrf.mxu0
    %2219 = vmatprep.mubr.f32.mxu0 0.0
    %2220 = vmatmul.mubr.f32.gmra.mxu0 %v186
    %v2221 = vpop.f32.mrf.mxu0
    %v2222 = vadd.f32 %v2095, %v2221
    %v2223 = vpop.f32.mrf.mxu0
    %2224 = vmatprep.mubr.f32.mxu0 0.0
    %2225 = vmatmul.mubr.f32.gmra.mxu0 %v189
    %v2226 = vpop.f32.mrf.mxu0
    %v2227 = vadd.f32 %v2096, %v2226
    %v2228 = vpop.f32.mrf.mxu0
    %2229 = vmatprep.mubr.f32.mxu0 0.0
    %2230 = vmatmul.mubr.f32.gmra.mxu0 %v192
    %v2231 = vpop.f32.mrf.mxu0
    %v2232 = vadd.f32 %v2097, %v2231
    %v2233 = vpop.f32.mrf.mxu0
    %2234 = vmatprep.mubr.f32.mxu0 0.0
    %2235 = vmatmul.mubr.f32.gmra.mxu0 %v195
    %v2236 = vpop.f32.mrf.mxu0
    %v2237 = vadd.f32 %v2098, %v2236
    %v2238 = vpop.f32.mrf.mxu0
    %2239 = vmatprep.mubr.f32.mxu0 0.0
    %2240 = vmatmul.mubr.f32.gmra.mxu0 %v198
    %v2241 = vpop.f32.mrf.mxu0
    %v2242 = vadd.f32 %v2099, %v2241
    %v2243 = vpop.f32.mrf.mxu0
    %2244 = vdwg.mxu0
    %v2245 = vadd.f32 %v2167, %v347
    %v2246 = vadd.f32 %v2172, %v351
    %v2247 = vadd.f32 %v2177, %v355
    %v2248 = vadd.f32 %v2182, %v359
    %v2249 = vadd.f32 %v2187, %v363
    %v2250 = vadd.f32 %v2192, %v367
    %v2251 = vadd.f32 %v2197, %v371
    %v2252 = vadd.f32 %v2202, %v375
    %v2253 = vadd.f32 %v2207, %v379
    %v2254 = vadd.f32 %v2212, %v383
    %v2255 = vadd.f32 %v2217, %v387
    %v2256 = vadd.f32 %v2222, %v391
    %v2257 = vadd.f32 %v2227, %v395
    %v2258 = vadd.f32 %v2232, %v399
    %v2259 = vadd.f32 %v2237, %v403
    %v2260 = vadd.f32 %v2242, %v407
    %v2261 = vxor.u32 %v2245, 2147483648
    %v2262 = vxor.u32 %v2246, 2147483648
    %v2263 = vxor.u32 %v2247, 2147483648
    %v2264 = vxor.u32 %v2248, 2147483648
    %v2265 = vxor.u32 %v2249, 2147483648
    %v2266 = vxor.u32 %v2250, 2147483648
    %v2267 = vxor.u32 %v2251, 2147483648
    %v2268 = vxor.u32 %v2252, 2147483648
    %v2269 = vxor.u32 %v2253, 2147483648
    %v2270 = vxor.u32 %v2254, 2147483648
    %v2271 = vxor.u32 %v2255, 2147483648
    %v2272 = vxor.u32 %v2256, 2147483648
    %v2273 = vxor.u32 %v2257, 2147483648
    %v2274 = vxor.u32 %v2258, 2147483648
    %v2275 = vxor.u32 %v2259, 2147483648
    %v2276 = vxor.u32 %v2260, 2147483648
    %v2277 = vmul.f32 %v2261, 1.442695
    %v2278 = vpow.pop %v2277
    %v2279 = vmul.f32 %v2262, 1.442695
    %v2280 = vpow.pop %v2279
    %v2281 = vmul.f32 %v2263, 1.442695
    %v2282 = vpow.pop %v2281
    %v2283 = vmul.f32 %v2264, 1.442695
    %v2284 = vpow.pop %v2283
    %v2285 = vmul.f32 %v2265, 1.442695
    %v2286 = vpow.pop %v2285
    %v2287 = vmul.f32 %v2266, 1.442695
    %v2288 = vpow.pop %v2287
    %v2289 = vmul.f32 %v2267, 1.442695
    %v2290 = vpow.pop %v2289
    %v2291 = vmul.f32 %v2268, 1.442695
    %v2292 = vpow.pop %v2291
    %v2293 = vmul.f32 %v2269, 1.442695
    %v2294 = vpow.pop %v2293
    %v2295 = vmul.f32 %v2270, 1.442695
    %v2296 = vpow.pop %v2295
    %v2297 = vmul.f32 %v2271, 1.442695
    %v2298 = vpow.pop %v2297
    %v2299 = vmul.f32 %v2272, 1.442695
    %v2300 = vpow.pop %v2299
    %v2301 = vmul.f32 %v2273, 1.442695
    %v2302 = vpow.pop %v2301
    %v2303 = vmul.f32 %v2274, 1.442695
    %v2304 = vpow.pop %v2303
    %v2305 = vmul.f32 %v2275, 1.442695
    %v2306 = vpow.pop %v2305
    %v2307 = vmul.f32 %v2276, 1.442695
    %v2308 = vpow.pop %v2307
    %v2309 = vadd.f32 %v2278, 1.0
    %v2310 = vadd.f32 %v2280, 1.0
    %v2311 = vadd.f32 %v2282, 1.0
    %v2312 = vadd.f32 %v2284, 1.0
    %v2313 = vadd.f32 %v2286, 1.0
    %v2314 = vadd.f32 %v2288, 1.0
    %v2315 = vadd.f32 %v2290, 1.0
    %v2316 = vadd.f32 %v2292, 1.0
    %v2317 = vadd.f32 %v2294, 1.0
    %v2318 = vadd.f32 %v2296, 1.0
    %v2319 = vadd.f32 %v2298, 1.0
    %v2320 = vadd.f32 %v2300, 1.0
    %v2321 = vadd.f32 %v2302, 1.0
    %v2322 = vadd.f32 %v2304, 1.0
    %v2323 = vadd.f32 %v2306, 1.0
    %v2324 = vadd.f32 %v2308, 1.0
    %v2325 = vrcp.pop %v2309
    %v2326 = vmul.f32 1.0, %v2325
    %v2327 = vrcp.pop %v2310
    %v2328 = vmul.f32 1.0, %v2327
    %v2329 = vrcp.pop %v2311
    %v2330 = vmul.f32 1.0, %v2329
    %v2331 = vrcp.pop %v2312
    %v2332 = vmul.f32 1.0, %v2331
    %v2333 = vrcp.pop %v2313
    %v2334 = vmul.f32 1.0, %v2333
    %v2335 = vrcp.pop %v2314
    %v2336 = vmul.f32 1.0, %v2335
    %v2337 = vrcp.pop %v2315
    %v2338 = vmul.f32 1.0, %v2337
    %v2339 = vrcp.pop %v2316
    %v2340 = vmul.f32 1.0, %v2339
    %v2341 = vrcp.pop %v2317
    %v2342 = vmul.f32 1.0, %v2341
    %v2343 = vrcp.pop %v2318
    %v2344 = vmul.f32 1.0, %v2343
    %v2345 = vrcp.pop %v2319
    %v2346 = vmul.f32 1.0, %v2345
    %v2347 = vrcp.pop %v2320
    %v2348 = vmul.f32 1.0, %v2347
    %v2349 = vrcp.pop %v2321
    %v2350 = vmul.f32 1.0, %v2349
    %v2351 = vrcp.pop %v2322
    %v2352 = vmul.f32 1.0, %v2351
    %v2353 = vrcp.pop %v2323
    %v2354 = vmul.f32 1.0, %v2353
    %v2355 = vrcp.pop %v2324
    %v2356 = vmul.f32 1.0, %v2355
    %v2357 = vmul.f32 %v2342, 2.0
    %v2358 = vmul.f32 %v2344, 2.0
    %v2359 = vmul.f32 %v2346, 2.0
    %v2360 = vmul.f32 %v2348, 2.0
    %v2361 = vsub.f32 %v2357, 1.0
    %v2362 = vsub.f32 %v2358, 1.0
    %v2363 = vsub.f32 %v2359, 1.0
    %v2364 = vsub.f32 %v2360, 1.0
    %v2365 = vmul.f32 %v2334, %v2067
    %v2366 = vmul.f32 %v2336, %v2068
    %v2367 = vmul.f32 %v2338, %v2069
    %v2368 = vmul.f32 %v2340, %v2070
    %v2369 = vmul.f32 %v2326, %v2361
    %v2370 = vmul.f32 %v2328, %v2362
    %v2371 = vmul.f32 %v2330, %v2363
    %v2372 = vmul.f32 %v2332, %v2364
    %v2373 = vadd.f32 %v2365, %v2369
    %v2374 = vadd.f32 %v2366, %v2370
    %v2375 = vadd.f32 %v2367, %v2371
    %v2376 = vadd.f32 %v2368, %v2372
    %v2377 = vtanh.pop %v2373
    %v2378 = vtanh.pop %v2374
    %v2379 = vtanh.pop %v2375
    %v2380 = vtanh.pop %v2376
    %v2381 = vmul.f32 %v2350, %v2377
    %v2382 = vmul.f32 %v2352, %v2378
    %v2383 = vmul.f32 %v2354, %v2379
    %v2384 = vmul.f32 %v2356, %v2380
    %v2385 = vld [vmem:[%s0 + $0x7] sm:$0x1]
    %v2386 = vlaneseq
    %v2387 = vshrl.u32 %v2386, 7
    %v2388 = vsub.s32 0, %v2387
    %v2389 = vrot.slane %v2385, %v2388
    %v2390 = vmul.f32 %v54, %v2389
    %v2391 = vmul.f32 %v59, %v2389
    %v2392 = vmul.f32 %v64, %v2389
    %v2393 = vmul.f32 %v69, %v2389
    %v2394 = vmul.f32 %v74, %v2389
    %v2395 = vmul.f32 %v79, %v2389
    %v2396 = vmul.f32 %v84, %v2389
    %v2397 = vmul.f32 %v89, %v2389
    %v2398 = vmul.f32 %v94, %v2389
    %v2399 = vmul.f32 %v99, %v2389
    %v2400 = vmul.f32 %v104, %v2389
    %v2401 = vmul.f32 %v109, %v2389
    %v2402 = vmul.f32 %v114, %v2389
    %v2403 = vmul.f32 %v119, %v2389
    %v2404 = vmul.f32 %v124, %v2389
    %v2405 = vmul.f32 %v129, %v2389
    %2406 = vmatprep.subr.mxu0 0.0
    %2407 = vmatpush1.msra.mxu0 0.0
    %2408 = vmatprep.subr.mxu0 0.0
    %2409 = vmatpush1.msra.mxu0 0.0
    %2410 = vmatprep.subr.mxu0 0.0
    %2411 = vmatpush1.msra.mxu0 0.0
    %2412 = vmatprep.subr.mxu0 0.0
    %2413 = vmatpush1.msra.mxu0 0.0
    %2414 = vmatprep.subr.mxu0 0.0
    %2415 = vmatpush1.msra.mxu0 0.0
    %2416 = vmatprep.subr.mxu0 0.0
    %2417 = vmatpush1.msra.mxu0 0.0
    %2418 = vmatprep.subr.mxu0 0.0
    %2419 = vmatpush1.msra.mxu0 0.0
    %2420 = vmatprep.subr.mxu0 0.0
    %2421 = vmatpush1.msra.mxu0 0.0
    %2422 = vmatprep.subr.mxu0 0.0
    %2423 = vmatpush1.msra.mxu0 0.0
    %2424 = vmatprep.subr.mxu0 0.0
    %2425 = vmatpush1.msra.mxu0 0.0
    %2426 = vmatprep.subr.mxu0 0.0
    %2427 = vmatpush1.msra.mxu0 0.0
    %2428 = vmatprep.subr.mxu0 0.0
    %2429 = vmatpush1.msra.mxu0 0.0
    %2430 = vmatprep.subr.mxu0 0.0
    %2431 = vmatpush1.msra.mxu0 %v2384
    %2432 = vmatprep.subr.mxu0 0.0
    %2433 = vmatpush1.msra.mxu0 %v2383
    %2434 = vmatprep.subr.mxu0 0.0
    %2435 = vmatpush1.msra.mxu0 %v2382
    %2436 = vmatprep.subr.mxu0 0.0
    %2437 = vmatpush1.msra.mxu0 %v2381
    %2438 = vmatprep.subr.mxu0 0.0
    %2439 = vmatpush2.msra.mxu0 0.0
    %2440 = vmatprep.subr.mxu0 0.0
    %2441 = vmatpush2.msra.mxu0 0.0
    %2442 = vmatprep.subr.mxu0 0.0
    %2443 = vmatpush2.msra.mxu0 0.0
    %2444 = vmatprep.subr.mxu0 0.0
    %2445 = vmatpush2.msra.mxu0 0.0
    %2446 = vmatprep.subr.mxu0 0.0
    %2447 = vmatpush2.msra.mxu0 0.0
    %2448 = vmatprep.subr.mxu0 0.0
    %2449 = vmatpush2.msra.mxu0 0.0
    %2450 = vmatprep.subr.mxu0 0.0
    %2451 = vmatpush2.msra.mxu0 0.0
    %2452 = vmatprep.subr.mxu0 0.0
    %2453 = vmatpush2.msra.mxu0 0.0
    %2454 = vmatprep.subr.mxu0 0.0
    %2455 = vmatpush2.msra.mxu0 0.0
    %2456 = vmatprep.subr.mxu0 0.0
    %2457 = vmatpush2.msra.mxu0 0.0
    %2458 = vmatprep.subr.mxu0 0.0
    %2459 = vmatpush2.msra.mxu0 0.0
    %2460 = vmatprep.subr.mxu0 0.0
    %2461 = vmatpush2.msra.mxu0 0.0
    %2462 = vmatprep.subr.mxu0 0.0
    %2463 = vmatpush2.msra.mxu0 0.0
    %2464 = vmatprep.subr.mxu0 0.0
    %2465 = vmatpush2.msra.mxu0 0.0
    %2466 = vmatprep.subr.mxu0 0.0
    %2467 = vmatpush2.msra.mxu0 0.0
    %2468 = vmatprep.subr.mxu0 0.0
    %2469 = vmatpush2.msra.mxu0 0.0
    %2470 = vmatprep.mubr.f32.mxu0 0.0
    %2471 = vmatmul.mubr.f32.gmra.mxu0 %v153
    %v2472 = vpop.f32.mrf.mxu0
    %v2473 = vadd.f32 %v2390, %v2472
    %v2474 = vpop.f32.mrf.mxu0
    %2475 = vmatprep.mubr.f32.mxu0 0.0
    %2476 = vmatmul.mubr.f32.gmra.mxu0 %v156
    %v2477 = vpop.f32.mrf.mxu0
    %v2478 = vadd.f32 %v2391, %v2477
    %v2479 = vpop.f32.mrf.mxu0
    %2480 = vmatprep.mubr.f32.mxu0 0.0
    %2481 = vmatmul.mubr.f32.gmra.mxu0 %v159
    %v2482 = vpop.f32.mrf.mxu0
    %v2483 = vadd.f32 %v2392, %v2482
    %v2484 = vpop.f32.mrf.mxu0
    %2485 = vmatprep.mubr.f32.mxu0 0.0
    %2486 = vmatmul.mubr.f32.gmra.mxu0 %v162
    %v2487 = vpop.f32.mrf.mxu0
    %v2488 = vadd.f32 %v2393, %v2487
    %v2489 = vpop.f32.mrf.mxu0
    %2490 = vmatprep.mubr.f32.mxu0 0.0
    %2491 = vmatmul.mubr.f32.gmra.mxu0 %v165
    %v2492 = vpop.f32.mrf.mxu0
    %v2493 = vadd.f32 %v2394, %v2492
    %v2494 = vpop.f32.mrf.mxu0
    %2495 = vmatprep.mubr.f32.mxu0 0.0
    %2496 = vmatmul.mubr.f32.gmra.mxu0 %v168
    %v2497 = vpop.f32.mrf.mxu0
    %v2498 = vadd.f32 %v2395, %v2497
    %v2499 = vpop.f32.mrf.mxu0
    %2500 = vmatprep.mubr.f32.mxu0 0.0
    %2501 = vmatmul.mubr.f32.gmra.mxu0 %v171
    %v2502 = vpop.f32.mrf.mxu0
    %v2503 = vadd.f32 %v2396, %v2502
    %v2504 = vpop.f32.mrf.mxu0
    %2505 = vmatprep.mubr.f32.mxu0 0.0
    %2506 = vmatmul.mubr.f32.gmra.mxu0 %v174
    %v2507 = vpop.f32.mrf.mxu0
    %v2508 = vadd.f32 %v2397, %v2507
    %v2509 = vpop.f32.mrf.mxu0
    %2510 = vmatprep.mubr.f32.mxu0 0.0
    %2511 = vmatmul.mubr.f32.gmra.mxu0 %v177
    %v2512 = vpop.f32.mrf.mxu0
    %v2513 = vadd.f32 %v2398, %v2512
    %v2514 = vpop.f32.mrf.mxu0
    %2515 = vmatprep.mubr.f32.mxu0 0.0
    %2516 = vmatmul.mubr.f32.gmra.mxu0 %v180
    %v2517 = vpop.f32.mrf.mxu0
    %v2518 = vadd.f32 %v2399, %v2517
    %v2519 = vpop.f32.mrf.mxu0
    %2520 = vmatprep.mubr.f32.mxu0 0.0
    %2521 = vmatmul.mubr.f32.gmra.mxu0 %v183
    %v2522 = vpop.f32.mrf.mxu0
    %v2523 = vadd.f32 %v2400, %v2522
    %v2524 = vpop.f32.mrf.mxu0
    %2525 = vmatprep.mubr.f32.mxu0 0.0
    %2526 = vmatmul.mubr.f32.gmra.mxu0 %v186
    %v2527 = vpop.f32.mrf.mxu0
    %v2528 = vadd.f32 %v2401, %v2527
    %v2529 = vpop.f32.mrf.mxu0
    %2530 = vmatprep.mubr.f32.mxu0 0.0
    %2531 = vmatmul.mubr.f32.gmra.mxu0 %v189
    %v2532 = vpop.f32.mrf.mxu0
    %v2533 = vadd.f32 %v2402, %v2532
    %v2534 = vpop.f32.mrf.mxu0
    %2535 = vmatprep.mubr.f32.mxu0 0.0
    %2536 = vmatmul.mubr.f32.gmra.mxu0 %v192
    %v2537 = vpop.f32.mrf.mxu0
    %v2538 = vadd.f32 %v2403, %v2537
    %v2539 = vpop.f32.mrf.mxu0
    %2540 = vmatprep.mubr.f32.mxu0 0.0
    %2541 = vmatmul.mubr.f32.gmra.mxu0 %v195
    %v2542 = vpop.f32.mrf.mxu0
    %v2543 = vadd.f32 %v2404, %v2542
    %v2544 = vpop.f32.mrf.mxu0
    %2545 = vmatprep.mubr.f32.mxu0 0.0
    %2546 = vmatmul.mubr.f32.gmra.mxu0 %v198
    %v2547 = vpop.f32.mrf.mxu0
    %v2548 = vadd.f32 %v2405, %v2547
    %v2549 = vpop.f32.mrf.mxu0
    %2550 = vdwg.mxu0
    %v2551 = vadd.f32 %v2473, %v347
    %v2552 = vadd.f32 %v2478, %v351
    %v2553 = vadd.f32 %v2483, %v355
    %v2554 = vadd.f32 %v2488, %v359
    %v2555 = vadd.f32 %v2493, %v363
    %v2556 = vadd.f32 %v2498, %v367
    %v2557 = vadd.f32 %v2503, %v371
    %v2558 = vadd.f32 %v2508, %v375
    %v2559 = vadd.f32 %v2513, %v379
    %v2560 = vadd.f32 %v2518, %v383
    %v2561 = vadd.f32 %v2523, %v387
    %v2562 = vadd.f32 %v2528, %v391
    %v2563 = vadd.f32 %v2533, %v395
    %v2564 = vadd.f32 %v2538, %v399
    %v2565 = vadd.f32 %v2543, %v403
    %v2566 = vadd.f32 %v2548, %v407
    %v2567 = vxor.u32 %v2551, 2147483648
    %v2568 = vxor.u32 %v2552, 2147483648
    %v2569 = vxor.u32 %v2553, 2147483648
    %v2570 = vxor.u32 %v2554, 2147483648
    %v2571 = vxor.u32 %v2555, 2147483648
    %v2572 = vxor.u32 %v2556, 2147483648
    %v2573 = vxor.u32 %v2557, 2147483648
    %v2574 = vxor.u32 %v2558, 2147483648
    %v2575 = vxor.u32 %v2559, 2147483648
    %v2576 = vxor.u32 %v2560, 2147483648
    %v2577 = vxor.u32 %v2561, 2147483648
    %v2578 = vxor.u32 %v2562, 2147483648
    %v2579 = vxor.u32 %v2563, 2147483648
    %v2580 = vxor.u32 %v2564, 2147483648
    %v2581 = vxor.u32 %v2565, 2147483648
    %v2582 = vxor.u32 %v2566, 2147483648
    %v2583 = vmul.f32 %v2567, 1.442695
    %v2584 = vpow.pop %v2583
    %v2585 = vmul.f32 %v2568, 1.442695
    %v2586 = vpow.pop %v2585
    %v2587 = vmul.f32 %v2569, 1.442695
    %v2588 = vpow.pop %v2587
    %v2589 = vmul.f32 %v2570, 1.442695
    %v2590 = vpow.pop %v2589
    %v2591 = vmul.f32 %v2571, 1.442695
    %v2592 = vpow.pop %v2591
    %v2593 = vmul.f32 %v2572, 1.442695
    %v2594 = vpow.pop %v2593
    %v2595 = vmul.f32 %v2573, 1.442695
    %v2596 = vpow.pop %v2595
    %v2597 = vmul.f32 %v2574, 1.442695
    %v2598 = vpow.pop %v2597
    %v2599 = vmul.f32 %v2575, 1.442695
    %v2600 = vpow.pop %v2599
    %v2601 = vmul.f32 %v2576, 1.442695
    %v2602 = vpow.pop %v2601
    %v2603 = vmul.f32 %v2577, 1.442695
    %v2604 = vpow.pop %v2603
    %v2605 = vmul.f32 %v2578, 1.442695
    %v2606 = vpow.pop %v2605
    %v2607 = vmul.f32 %v2579, 1.442695
    %v2608 = vpow.pop %v2607
    %v2609 = vmul.f32 %v2580, 1.442695
    %v2610 = vpow.pop %v2609
    %v2611 = vmul.f32 %v2581, 1.442695
    %v2612 = vpow.pop %v2611
    %v2613 = vmul.f32 %v2582, 1.442695
    %v2614 = vpow.pop %v2613
    %v2615 = vadd.f32 %v2584, 1.0
    %v2616 = vadd.f32 %v2586, 1.0
    %v2617 = vadd.f32 %v2588, 1.0
    %v2618 = vadd.f32 %v2590, 1.0
    %v2619 = vadd.f32 %v2592, 1.0
    %v2620 = vadd.f32 %v2594, 1.0
    %v2621 = vadd.f32 %v2596, 1.0
    %v2622 = vadd.f32 %v2598, 1.0
    %v2623 = vadd.f32 %v2600, 1.0
    %v2624 = vadd.f32 %v2602, 1.0
    %v2625 = vadd.f32 %v2604, 1.0
    %v2626 = vadd.f32 %v2606, 1.0
    %v2627 = vadd.f32 %v2608, 1.0
    %v2628 = vadd.f32 %v2610, 1.0
    %v2629 = vadd.f32 %v2612, 1.0
    %v2630 = vadd.f32 %v2614, 1.0
    %v2631 = vrcp.pop %v2615
    %v2632 = vmul.f32 1.0, %v2631
    %v2633 = vrcp.pop %v2616
    %v2634 = vmul.f32 1.0, %v2633
    %v2635 = vrcp.pop %v2617
    %v2636 = vmul.f32 1.0, %v2635
    %v2637 = vrcp.pop %v2618
    %v2638 = vmul.f32 1.0, %v2637
    %v2639 = vrcp.pop %v2619
    %v2640 = vmul.f32 1.0, %v2639
    %v2641 = vrcp.pop %v2620
    %v2642 = vmul.f32 1.0, %v2641
    %v2643 = vrcp.pop %v2621
    %v2644 = vmul.f32 1.0, %v2643
    %v2645 = vrcp.pop %v2622
    %v2646 = vmul.f32 1.0, %v2645
    %v2647 = vrcp.pop %v2623
    %v2648 = vmul.f32 1.0, %v2647
    %v2649 = vrcp.pop %v2624
    %v2650 = vmul.f32 1.0, %v2649
    %v2651 = vrcp.pop %v2625
    %v2652 = vmul.f32 1.0, %v2651
    %v2653 = vrcp.pop %v2626
    %v2654 = vmul.f32 1.0, %v2653
    %v2655 = vrcp.pop %v2627
    %v2656 = vmul.f32 1.0, %v2655
    %v2657 = vrcp.pop %v2628
    %v2658 = vmul.f32 1.0, %v2657
    %v2659 = vrcp.pop %v2629
    %v2660 = vmul.f32 1.0, %v2659
    %v2661 = vrcp.pop %v2630
    %v2662 = vmul.f32 1.0, %v2661
    %v2663 = vmul.f32 %v2648, 2.0
    %v2664 = vmul.f32 %v2650, 2.0
    %v2665 = vmul.f32 %v2652, 2.0
    %v2666 = vmul.f32 %v2654, 2.0
    %v2667 = vsub.f32 %v2663, 1.0
    %v2668 = vsub.f32 %v2664, 1.0
    %v2669 = vsub.f32 %v2665, 1.0
    %v2670 = vsub.f32 %v2666, 1.0
    %v2671 = vmul.f32 %v2640, %v2373
    %v2672 = vmul.f32 %v2642, %v2374
    %v2673 = vmul.f32 %v2644, %v2375
    %v2674 = vmul.f32 %v2646, %v2376
    %v2675 = vmul.f32 %v2632, %v2667
    %v2676 = vmul.f32 %v2634, %v2668
    %v2677 = vmul.f32 %v2636, %v2669
    %v2678 = vmul.f32 %v2638, %v2670
    %v2679 = vadd.f32 %v2671, %v2675
    %v2680 = vadd.f32 %v2672, %v2676
    %v2681 = vadd.f32 %v2673, %v2677
    %v2682 = vadd.f32 %v2674, %v2678
    %v2683 = vtanh.pop %v2679
    %v2684 = vtanh.pop %v2680
    %v2685 = vtanh.pop %v2681
    %v2686 = vtanh.pop %v2682
    %v2687 = vmul.f32 %v2656, %v2683
    %v2688 = vmul.f32 %v2658, %v2684
    %v2689 = vmul.f32 %v2660, %v2685
    %v2690 = vmul.f32 %v2662, %v2686
    %v2691 = vld [vmem:[%s3] sm:$0xff]
    %v2692 = vld [vmem:[%s3 + $0x8] sm:$0xff]
    %v2693 = vld [vmem:[%s3 + $0x10] sm:$0xff]
    %v2694 = vld [vmem:[%s3 + $0x18] sm:$0xff]
    %2696 = vset.pattern.permute.xlu0 32
    %2697 = vperm.xlu0 %2696, %v2691
    %v2698 = vpop.permute.xlu0 %2697
    %2701 = vset.pattern.permute.xlu0 32
    %2702 = vperm.xlu0 %2701, %v2692
    %v2703 = vpop.permute.xlu0 %2702
    %v2705 = vsel %vm151, %v2691, 0
    %v2707 = vsel %vm151, %v2692, 0
    %2709 = vmatprep.subr.mxu0 0.0
    %2710 = vmatpush1.msra.mxu0 0.0
    %2711 = vmatprep.subr.mxu0 0.0
    %2712 = vmatpush1.msra.mxu0 0.0
    %2713 = vmatprep.subr.mxu0 0.0
    %2714 = vmatpush1.msra.mxu0 0.0
    %2715 = vmatprep.subr.mxu0 0.0
    %2716 = vmatpush1.msra.mxu0 0.0
    %2717 = vmatprep.subr.mxu0 0.0
    %2718 = vmatpush1.msra.mxu0 0.0
    %2719 = vmatprep.subr.mxu0 0.0
    %2720 = vmatpush1.msra.mxu0 0.0
    %2721 = vmatprep.subr.mxu0 0.0
    %2722 = vmatpush1.msra.mxu0 0.0
    %2723 = vmatprep.subr.mxu0 0.0
    %2724 = vmatpush1.msra.mxu0 0.0
    %2725 = vmatprep.subr.mxu0 0.0
    %2726 = vmatpush1.msra.mxu0 0.0
    %2727 = vmatprep.subr.mxu0 0.0
    %2728 = vmatpush1.msra.mxu0 0.0
    %2729 = vmatprep.subr.mxu0 0.0
    %2730 = vmatpush1.msra.mxu0 0.0
    %2731 = vmatprep.subr.mxu0 0.0
    %2732 = vmatpush1.msra.mxu0 0.0
    %2733 = vmatprep.subr.mxu0 0.0
    %2734 = vmatpush1.msra.mxu0 %v2690
    %2735 = vmatprep.subr.mxu0 0.0
    %2736 = vmatpush1.msra.mxu0 %v2689
    %2737 = vmatprep.subr.mxu0 0.0
    %2738 = vmatpush1.msra.mxu0 %v2688
    %2739 = vmatprep.subr.mxu0 0.0
    %2740 = vmatpush1.msra.mxu0 %v2687
    %2741 = vmatprep.subr.mxu0 0.0
    %2742 = vmatpush2.msra.mxu0 0.0
    %2743 = vmatprep.subr.mxu0 0.0
    %2744 = vmatpush2.msra.mxu0 0.0
    %2745 = vmatprep.subr.mxu0 0.0
    %2746 = vmatpush2.msra.mxu0 0.0
    %2747 = vmatprep.subr.mxu0 0.0
    %2748 = vmatpush2.msra.mxu0 0.0
    %2749 = vmatprep.subr.mxu0 0.0
    %2750 = vmatpush2.msra.mxu0 0.0
    %2751 = vmatprep.subr.mxu0 0.0
    %2752 = vmatpush2.msra.mxu0 0.0
    %2753 = vmatprep.subr.mxu0 0.0
    %2754 = vmatpush2.msra.mxu0 0.0
    %2755 = vmatprep.subr.mxu0 0.0
    %2756 = vmatpush2.msra.mxu0 0.0
    %2757 = vmatprep.subr.mxu0 0.0
    %2758 = vmatpush2.msra.mxu0 0.0
    %2759 = vmatprep.subr.mxu0 0.0
    %2760 = vmatpush2.msra.mxu0 0.0
    %2761 = vmatprep.subr.mxu0 0.0
    %2762 = vmatpush2.msra.mxu0 0.0
    %2763 = vmatprep.subr.mxu0 0.0
    %2764 = vmatpush2.msra.mxu0 0.0
    %2765 = vmatprep.subr.mxu0 0.0
    %2766 = vmatpush2.msra.mxu0 0.0
    %2767 = vmatprep.subr.mxu0 0.0
    %2768 = vmatpush2.msra.mxu0 0.0
    %2769 = vmatprep.subr.mxu0 0.0
    %2770 = vmatpush2.msra.mxu0 0.0
    %2771 = vmatprep.subr.mxu0 0.0
    %2772 = vmatpush2.msra.mxu0 0.0
    %2773 = vmatprep.mubr.f32.mxu0 0.0
    %2774 = vmatmul.mubr.f32.gmra.mxu0 %v2705
    %v2775 = vpop.f32.mrf.mxu0
    %v2776 = vadd.f32 %v2698, %v2775
    %v2777 = vpop.f32.mrf.mxu0
    %2778 = vmatprep.mubr.f32.mxu0 0.0
    %2779 = vmatmul.mubr.f32.gmra.mxu0 %v2707
    %v2780 = vpop.f32.mrf.mxu0
    %v2781 = vadd.f32 %v2703, %v2780
    %v2782 = vpop.f32.mrf.mxu0
    %2783 = vdwg.mxu0
    %v2784 = vmax.f32 %v2776, 0.0
    %v2785 = vmax.f32 %v2781, 0.0
    %2787 = vset.pattern.permute.xlu0 16
    %2788 = vperm.xlu0 %2787, %v2693
    %v2789 = vpop.permute.xlu0 %2788
    %vm2791 = vcmask 130048
    %v2792 = vsel %vm2791, %v2693, 0
    %2794 = vmatprep.subr.mxu0 0.0
    %2795 = vmatpush1.msra.mxu0 0.0
    %2796 = vmatprep.subr.mxu0 0.0
    %2797 = vmatpush1.msra.mxu0 0.0
    %2798 = vmatprep.subr.mxu0 0.0
    %2799 = vmatpush1.msra.mxu0 0.0
    %2800 = vmatprep.subr.mxu0 0.0
    %2801 = vmatpush1.msra.mxu0 0.0
    %2802 = vmatprep.subr.mxu0 0.0
    %2803 = vmatpush1.msra.mxu0 0.0
    %2804 = vmatprep.subr.mxu0 0.0
    %2805 = vmatpush1.msra.mxu0 0.0
    %2806 = vmatprep.subr.mxu0 0.0
    %2807 = vmatpush1.msra.mxu0 0.0
    %2808 = vmatprep.subr.mxu0 0.0
    %2809 = vmatpush1.msra.mxu0 0.0
    %2810 = vmatprep.subr.mxu0 0.0
    %2811 = vmatpush1.msra.mxu0 0.0
    %2812 = vmatprep.subr.mxu0 0.0
    %2813 = vmatpush1.msra.mxu0 0.0
    %2814 = vmatprep.subr.mxu0 0.0
    %2815 = vmatpush1.msra.mxu0 0.0
    %2816 = vmatprep.subr.mxu0 0.0
    %2817 = vmatpush1.msra.mxu0 0.0
    %2818 = vmatprep.subr.mxu0 0.0
    %2819 = vmatpush1.msra.mxu0 0.0
    %2820 = vmatprep.subr.mxu0 0.0
    %2821 = vmatpush1.msra.mxu0 0.0
    %2822 = vmatprep.subr.mxu0 0.0
    %2823 = vmatpush1.msra.mxu0 %v2785
    %2824 = vmatprep.subr.mxu0 0.0
    %2825 = vmatpush1.msra.mxu0 %v2784
    %2826 = vmatprep.subr.mxu0 0.0
    %2827 = vmatpush2.msra.mxu0 0.0
    %2828 = vmatprep.subr.mxu0 0.0
    %2829 = vmatpush2.msra.mxu0 0.0
    %2830 = vmatprep.subr.mxu0 0.0
    %2831 = vmatpush2.msra.mxu0 0.0
    %2832 = vmatprep.subr.mxu0 0.0
    %2833 = vmatpush2.msra.mxu0 0.0
    %2834 = vmatprep.subr.mxu0 0.0
    %2835 = vmatpush2.msra.mxu0 0.0
    %2836 = vmatprep.subr.mxu0 0.0
    %2837 = vmatpush2.msra.mxu0 0.0
    %2838 = vmatprep.subr.mxu0 0.0
    %2839 = vmatpush2.msra.mxu0 0.0
    %2840 = vmatprep.subr.mxu0 0.0
    %2841 = vmatpush2.msra.mxu0 0.0
    %2842 = vmatprep.subr.mxu0 0.0
    %2843 = vmatpush2.msra.mxu0 0.0
    %2844 = vmatprep.subr.mxu0 0.0
    %2845 = vmatpush2.msra.mxu0 0.0
    %2846 = vmatprep.subr.mxu0 0.0
    %2847 = vmatpush2.msra.mxu0 0.0
    %2848 = vmatprep.subr.mxu0 0.0
    %2849 = vmatpush2.msra.mxu0 0.0
    %2850 = vmatprep.subr.mxu0 0.0
    %2851 = vmatpush2.msra.mxu0 0.0
    %2852 = vmatprep.subr.mxu0 0.0
    %2853 = vmatpush2.msra.mxu0 0.0
    %2854 = vmatprep.subr.mxu0 0.0
    %2855 = vmatpush2.msra.mxu0 0.0
    %2856 = vmatprep.subr.mxu0 0.0
    %2857 = vmatpush2.msra.mxu0 0.0
    %2858 = vmatprep.mubr.f32.mxu0 0.0
    %2859 = vmatmul.mubr.f32.gmra.mxu0 %v2792
    %v2860 = vpop.f32.mrf.mxu0
    %v2861 = vadd.f32 %v2789, %v2860
    %v2862 = vpop.f32.mrf.mxu0
    %2863 = vdwg.mxu0
    %v2864 = vmax.f32 %v2861, 0.0
    %2866 = vset.pattern.permute.xlu0 8
    %2867 = vperm.xlu0 %2866, %v2694
    %v2868 = vpop.permute.xlu0 %2867
    %vm2870 = vcmask 64512
    %v2871 = vsel %vm2870, %v2694, 0
    %2873 = vmatprep.subr.mxu0 0.0
    %2874 = vmatpush1.msra.mxu0 0.0
    %2875 = vmatprep.subr.mxu0 0.0
    %2876 = vmatpush1.msra.mxu0 0.0
    %2877 = vmatprep.subr.mxu0 0.0
    %2878 = vmatpush1.msra.mxu0 0.0
    %2879 = vmatprep.subr.mxu0 0.0
    %2880 = vmatpush1.msra.mxu0 0.0
    %2881 = vmatprep.subr.mxu0 0.0
    %2882 = vmatpush1.msra.mxu0 0.0
    %2883 = vmatprep.subr.mxu0 0.0
    %2884 = vmatpush1.msra.mxu0 0.0
    %2885 = vmatprep.subr.mxu0 0.0
    %2886 = vmatpush1.msra.mxu0 0.0
    %2887 = vmatprep.subr.mxu0 0.0
    %2888 = vmatpush1.msra.mxu0 0.0
    %2889 = vmatprep.subr.mxu0 0.0
    %2890 = vmatpush1.msra.mxu0 0.0
    %2891 = vmatprep.subr.mxu0 0.0
    %2892 = vmatpush1.msra.mxu0 0.0
    %2893 = vmatprep.subr.mxu0 0.0
    %2894 = vmatpush1.msra.mxu0 0.0
    %2895 = vmatprep.subr.mxu0 0.0
    %2896 = vmatpush1.msra.mxu0 0.0
    %2897 = vmatprep.subr.mxu0 0.0
    %2898 = vmatpush1.msra.mxu0 0.0
    %2899 = vmatprep.subr.mxu0 0.0
    %2900 = vmatpush1.msra.mxu0 0.0
    %2901 = vmatprep.subr.mxu0 0.0
    %2902 = vmatpush1.msra.mxu0 0.0
    %2903 = vmatprep.subr.mxu0 0.0
    %2904 = vmatpush1.msra.mxu0 %v2864
    %2905 = vmatprep.subr.mxu0 0.0
    %2906 = vmatpush2.msra.mxu0 0.0
    %2907 = vmatprep.subr.mxu0 0.0
    %2908 = vmatpush2.msra.mxu0 0.0
    %2909 = vmatprep.subr.mxu0 0.0
    %2910 = vmatpush2.msra.mxu0 0.0
    %2911 = vmatprep.subr.mxu0 0.0
    %2912 = vmatpush2.msra.mxu0 0.0
    %2913 = vmatprep.subr.mxu0 0.0
    %2914 = vmatpush2.msra.mxu0 0.0
    %2915 = vmatprep.subr.mxu0 0.0
    %2916 = vmatpush2.msra.mxu0 0.0
    %2917 = vmatprep.subr.mxu0 0.0
    %2918 = vmatpush2.msra.mxu0 0.0
    %2919 = vmatprep.subr.mxu0 0.0
    %2920 = vmatpush2.msra.mxu0 0.0
    %2921 = vmatprep.subr.mxu0 0.0
    %2922 = vmatpush2.msra.mxu0 0.0
    %2923 = vmatprep.subr.mxu0 0.0
    %2924 = vmatpush2.msra.mxu0 0.0
    %2925 = vmatprep.subr.mxu0 0.0
    %2926 = vmatpush2.msra.mxu0 0.0
    %2927 = vmatprep.subr.mxu0 0.0
    %2928 = vmatpush2.msra.mxu0 0.0
    %2929 = vmatprep.subr.mxu0 0.0
    %2930 = vmatpush2.msra.mxu0 0.0
    %2931 = vmatprep.subr.mxu0 0.0
    %2932 = vmatpush2.msra.mxu0 0.0
    %2933 = vmatprep.subr.mxu0 0.0
    %2934 = vmatpush2.msra.mxu0 0.0
    %2935 = vmatprep.subr.mxu0 0.0
    %2936 = vmatpush2.msra.mxu0 0.0
    %2937 = vmatprep.mubr.f32.mxu0 0.0
    %2938 = vmatmul.mubr.f32.gmra.mxu0 %v2871
    %v2939 = vpop.f32.mrf.mxu0
    %v2940 = vadd.f32 %v2868, %v2939
    %v2941 = vpop.f32.mrf.mxu0
    %2942 = vdwg.mxu0
    %2943 = vst [vmem:[#allocation2] sm:$0x1] %v2940
    // Predicated region
    $region18: #{tpu_custom_call.1} parent=1 // pred_check
      _
    $region19: #{tpu_custom_call.1} parent=1 // pred_check_branch
      %2945 = sbr.rel (0) target = $region21
    $region20: #{tpu_custom_call.1} parent=1 // pred_region
      %s2947 = ssub.s32 16, 16
      %2948 = vsyncadd [#allocation3], %s2947
      %s2950 = sshll.u32 [#allocation2], 4
      %s2951 = int_to_ptr.vmem [resolvable:$true] %s2950
      %2953 = dma.vmem_to_hbm [thread:$0]  %s2951, 16, %s4, [#allocation3]
    $region21: #{tpu_custom_call.1} parent=1 // pred_fallthru
      _
    // Predicated region
    $region22: #{tpu_custom_call.1} parent=1 // pred_check
      _
    $region23: #{tpu_custom_call.1} parent=1 // pred_check_branch
      %2955 = sbr.rel (0) target = $region25
    $region24: #{tpu_custom_call.1} parent=1 // pred_region
      %2956 = dma.done [#allocation3], 16
    $region25: #{tpu_custom_call.1} parent=1 // pred_fallthru
      _
    %2957 = vsyncpa [#allocation3], 1

</llo_original>
